<compile_context>
chip_gen: v7x
topology: tpu7x:2x2x1
jax: 0.10.0
libtpu: 0.0.40
codegen_flags: <defaults>
</compile_context>

<pallas_src>
import functools

import jax
import jax.numpy as jnp
from jax.experimental import pallas as pl
from jax.experimental.pallas import tpu as pltpu


_LANE = 128
_SUBLANE = 8
# > 32 MiB scoped default, < 64 MiB physical VMEM on v7x (safe on v5e/v6e too).
_VMEM_LIMIT = 48 * 1024 * 1024


def _round_up(x, m):
    return (x + m - 1) // m * m


def _pick_tile(n_pad):
    # n_pad is always a multiple of 128; prefer bigger MXU-friendly tiles.
    for t in (512, 256, 128):
        if n_pad % t == 0:
            return t
    return n_pad


# ----------------------------------------------------------------------------
# Fused multi-tower GCN stack:
#   for each layer l, for each tower t:  X_t <- tanh(A_norm @ (X_t @ W_{l,t}) + b_{l,t})
# Towers live side-by-side in the lane dimension: X = [X_0 | X_1 | ...]
# so a single streamed A_norm tile feeds all towers.
# ----------------------------------------------------------------------------

def _gcn_stack_kernel(a_ref, x_ref, w_ref, b_ref, xs_ref,
                      acc_ref, act_ref, xw_ref, *, tm, tk, d_pad, num_towers):
    l = pl.program_id(0)
    m = pl.program_id(1)
    k = pl.program_id(2)
    nk = pl.num_programs(2)

    # Very first grid step: stage the (padded, concatenated) input features
    # into the resident activation scratch.
    @pl.when((l == 0) & (m == 0) & (k == 0))
    def _():
        act_ref[...] = x_ref[...]

    # Start of every layer: hoist XW_t = X_t @ W_{l,t} out of the tiled A-loop
    # (computed once per layer per tower, cast to bf16 to feed the MXU).
    @pl.when((m == 0) & (k == 0))
    def _():
        for ti in range(num_towers):          # static unroll over towers
            lo = ti * d_pad
            xw = jnp.dot(act_ref[:, pl.ds(lo, d_pad)], w_ref[0, ti],
                         preferred_element_type=jnp.float32)
            xw_ref[:, pl.ds(lo, d_pad)] = xw.astype(jnp.bfloat16)

    @pl.when(k == 0)
    def _():
        acc_ref[...] = jnp.zeros_like(acc_ref)

    # A_norm[m-tile, k-tile] @ XW[k-tile, :]  (bf16 x bf16 -> f32 accumulate),
    # one MXU contraction covering all towers at once.
    k_off = pl.multiple_of(k * tk, tk)
    acc_ref[...] += jnp.dot(a_ref[...], xw_ref[pl.ds(k_off, tk), :],
                            preferred_element_type=jnp.float32)

    # Finalize the row tile: f32 tanh epilogue, write the layer output and
    # update the resident activation used by the next layer.
    @pl.when(k == nk - 1)
    def _():
        y = jnp.tanh(acc_ref[...] + b_ref[0])
        m_off = pl.multiple_of(m * tm, tm)
        act_ref[pl.ds(m_off, tm), :] = y
        xs_ref[0] = y


def gcn_stack(a_norm_bf16, x_pad, w_stack, b_stack):
    """Run a whole stack of (multi-tower) GCNConv+Tanh layers in ONE pallas_call.

    a_norm_bf16 : [N_pad, N_pad]            bf16 (streamed tile by tile)
    x_pad       : [N_pad, T*D_pad]          f32  (zero padded, lane dense)
    w_stack     : [L, T, D_pad, D_pad]      f32  (zero padded per layer/tower)
    b_stack     : [L, 1, T*D_pad]           f32
    returns xs  : [L, N_pad, T*D_pad]       f32  (per-layer activations)
    """
    n_pad = a_norm_bf16.shape[0]
    num_layers, num_towers, d_pad, _ = w_stack.shape
    td = num_towers * d_pad
    t = _pick_tile(n_pad)
    grid = (num_layers, n_pad // t, n_pad // t)

    return pl.pallas_call(
        functools.partial(_gcn_stack_kernel, tm=t, tk=t,
                          d_pad=d_pad, num_towers=num_towers),
        out_shape=jax.ShapeDtypeStruct((num_layers, n_pad, td), jnp.float32),
        grid_spec=pltpu.PrefetchScalarGridSpec(
            num_scalar_prefetch=0,
            grid=grid,
            in_specs=[
                pl.BlockSpec((t, t), lambda l, m, k: (m, k)),            # A tile
                pl.BlockSpec((n_pad, td), lambda l, m, k: (0, 0)),       # X (fetched once)
                pl.BlockSpec((1, num_towers, d_pad, d_pad),
                             lambda l, m, k: (l, 0, 0, 0)),              # W_l (per tower)
                pl.BlockSpec((1, 1, td), lambda l, m, k: (l, 0, 0)),     # b_l
            ],
            out_specs=pl.BlockSpec((1, t, td), lambda l, m, k: (l, m, 0)),
            scratch_shapes=[
                pltpu.VMEM((t, td), jnp.float32),        # f32 accumulator
                pltpu.VMEM((n_pad, td), jnp.float32),    # resident activations
                pltpu.VMEM((n_pad, td), jnp.bfloat16),   # hoisted XW (MXU feed)
            ]),
        compiler_params=pltpu.CompilerParams(
            # layer / row / K axes all carry accumulator & activation deps.
            dimension_semantics=("arbitrary", "arbitrary", "arbitrary"),
            vmem_limit_bytes=_VMEM_LIMIT),
    )(a_norm_bf16, x_pad, w_stack, b_stack)


# ----------------------------------------------------------------------------
# Proximity recovery:  sigmoid(X @ X^T) * block_diag_mask   (tiled N x N)
# ----------------------------------------------------------------------------

def _prox_recovery_kernel(xr_ref, xc_ref, br_ref, bc_ref, o_ref):
    # X[m-tile] @ X[n-tile]^T via dot_general contracting the last dims
    # (MXU transposed-B contraction; no explicit transpose / extra buffer).
    s = jax.lax.dot_general(
        xr_ref[...], xc_ref[...],
        dimension_numbers=(((1,), (1,)), ((), ())),
        preferred_element_type=jnp.float32)
    # sigmoid = 1 / (1 + exp(-s)) : exp + approx reciprocal land on the EUP.
    sig = pl.reciprocal(1.0 + jnp.exp(-s), approx=True)
    # Block-diagonal mask rebuilt in-kernel from per-node graph ids.
    mask = (br_ref[...] == bc_ref[...]).astype(jnp.float32)
    o_ref[...] = sig * mask


def proximity_recovery(x_bf16, batch_r, batch_c):
    n_pad, d_pad = x_bf16.shape
    t = _pick_tile(n_pad)
    return pl.pallas_call(
        _prox_recovery_kernel,
        out_shape=jax.ShapeDtypeStruct((n_pad, n_pad), jnp.float32),
        grid_spec=pltpu.PrefetchScalarGridSpec(
            num_scalar_prefetch=0,
            grid=(n_pad // t, n_pad // t),
            in_specs=[
                pl.BlockSpec((t, d_pad), lambda i, j: (i, 0)),   # X row tile
                pl.BlockSpec((t, d_pad), lambda i, j: (j, 0)),   # X col tile
                pl.BlockSpec((t, 1), lambda i, j: (i, 0)),       # row graph ids
                pl.BlockSpec((1, t), lambda i, j: (0, j)),       # col graph ids
            ],
            out_specs=pl.BlockSpec((t, t), lambda i, j: (i, j))),
        compiler_params=pltpu.CompilerParams(
            dimension_semantics=("parallel", "parallel"),   # megacore on v7x
            vmem_limit_bytes=_VMEM_LIMIT),
    )(x_bf16, x_bf16, batch_r, batch_c)


# ----------------------------------------------------------------------------
# scatter_mean over graphs:  (Sel @ X) * (1 / counts)
# ----------------------------------------------------------------------------

def _segment_mean_kernel(sel_ref, x_ref, inv_ref, o_ref, acc_ref):
    k = pl.program_id(0)

    @pl.when(k == 0)
    def _():
        acc_ref[...] = jnp.zeros_like(acc_ref)

    acc_ref[...] += jnp.dot(sel_ref[...], x_ref[...],
                            preferred_element_type=jnp.float32)

    @pl.when(k == pl.num_programs(0) - 1)
    def _():
        # multiply by precomputed 1/count instead of dividing per element
        o_ref[...] = acc_ref[...] * inv_ref[...]


def segment_mean(sel, x, inv_counts):
    g_pad, n_pad = sel.shape
    d = x.shape[1]
    t = _pick_tile(n_pad)
    return pl.pallas_call(
        _segment_mean_kernel,
        out_shape=jax.ShapeDtypeStruct((g_pad, d), jnp.float32),
        grid_spec=pltpu.PrefetchScalarGridSpec(
            num_scalar_prefetch=0,
            grid=(n_pad // t,),
            in_specs=[
                pl.BlockSpec((g_pad, t), lambda k: (0, k)),
                pl.BlockSpec((t, d), lambda k: (k, 0)),
                pl.BlockSpec((g_pad, 1), lambda k: (0, 0)),
            ],
            out_specs=pl.BlockSpec((g_pad, d), lambda k: (0, 0)),
            scratch_shapes=[pltpu.VMEM((g_pad, d), jnp.float32)]),
        compiler_params=pltpu.CompilerParams(
            dimension_semantics=("arbitrary",),
            vmem_limit_bytes=_VMEM_LIMIT),
    )(sel, x, inv_counts)


# ----------------------------------------------------------------------------
# Glue: parameter init, GCN normalization, padding / stacking helpers
# ----------------------------------------------------------------------------

def glorot(key, fan_in, fan_out):
    limit = jnp.sqrt(6.0 / (fan_in + fan_out))
    return jax.random.uniform(key, (fan_in, fan_out), jnp.float32, -limit, limit)


def init_gcn_stack_params(key, dims):
    """dims = [d0, d1, ..., dk] -> list of (W [di, di+1], b [1, di+1])."""
    params = []
    for i in range(len(dims) - 1):
        key, sub = jax.random.split(key)
        w = glorot(sub, dims[i], dims[i + 1])
        b = jnp.zeros((1, dims[i + 1]), jnp.float32)   # GCNConv bias init
        params.append((w, b))
    return key, params


def gcn_normalize(adj):
    """A_norm = D^{-1/2} (A + I) D^{-1/2} (GCNConv default normalization)."""
    n = adj.shape[0]
    a_hat = adj + jnp.eye(n, dtype=jnp.float32)
    deg = jnp.sum(a_hat, axis=1)
    d_inv_sqrt = jnp.where(deg > 0, 1.0 / jnp.sqrt(deg), 0.0)
    return a_hat * d_inv_sqrt[:, None] * d_inv_sqrt[None, :]


def _pad_2d(x, rows, cols):
    return jnp.zeros((rows, cols), x.dtype).at[:x.shape[0], :x.shape[1]].set(x)


def _stack_tower_params(towers, d_pad):
    """towers: list of T lists, each a list of L (W, b) pairs (same L).

    Returns W [L, T, D_pad, D_pad] and b [L, 1, T*D_pad] (zero padded).
    """
    num_towers = len(towers)
    num_layers = len(towers[0])
    assert all(len(p) == num_layers for p in towers)
    w = jnp.zeros((num_layers, num_towers, d_pad, d_pad), jnp.float32)
    b = jnp.zeros((num_layers, 1, num_towers * d_pad), jnp.float32)
    for ti, params in enumerate(towers):
        for i, (wi, bi) in enumerate(params):
            w = w.at[i, ti, :wi.shape[0], :wi.shape[1]].set(wi)
            b = b.at[i, :, ti * d_pad: ti * d_pad + bi.shape[1]].set(bi)
    return w, b


# ----------------------------------------------------------------------------
# ExtractCL forward
# ----------------------------------------------------------------------------

def extract_cl_forward(all_params, attrs, edge_index, batch, num_graphs):
    n, attrs_dim = attrs.shape
    hidden_dim = all_params["p_enc"][0][0].shape[1]
    gnn_layers_num = len(all_params["p_enc"])

    d_pad = _round_up(max(attrs_dim, hidden_dim), _LANE)
    n_pad = _round_up(n, _LANE)
    g_pad = _round_up(num_graphs, _SUBLANE)

    # dense adjacency (unweighted), GCN normalization, pad + cast to bf16
    adj = jnp.zeros((n, n), jnp.float32).at[edge_index[0], edge_index[1]].set(1.0)
    a_pad = _pad_2d(gcn_normalize(adj), n_pad, n_pad).astype(jnp.bfloat16)

    # node attributes, zero padded to a lane-dense feature width; duplicated
    # side-by-side for the (proximity | feature) encoder towers
    attrs_pad = _pad_2d(attrs, n_pad, d_pad)
    attrs_cat = jnp.concatenate([attrs_pad, attrs_pad], axis=1)

    # per-node graph ids (padded nodes get -1 so they never match a real graph)
    batch_pad = jnp.full((n_pad,), -1, jnp.int32).at[:n].set(batch)
    batch_r = batch_pad.astype(jnp.float32).reshape(n_pad, 1)
    batch_c = batch_pad.astype(jnp.float32).reshape(1, n_pad)

    # one-hot graph selector + guarded 1/count for scatter_mean
    sel = (jnp.arange(g_pad, dtype=jnp.int32)[:, None] == batch_pad[None, :]
           ).astype(jnp.float32)
    counts = jnp.sum(sel, axis=1, keepdims=True)
    inv_counts = 1.0 / jnp.maximum(counts, 1.0)

    # original proximity = sparse_coo_tensor(edge_index, ones).to_dense()
    original_proximity = jnp.zeros((n, n), jnp.float32).at[
        edge_index[0], edge_index[1]].add(1.0)

    # ---- fused encoders: [proximity tower | feature tower] ------------------
    enc_w, enc_b = _stack_tower_params(
        [all_params["p_enc"], all_params["f_enc"]], d_pad)
    enc_xs = gcn_stack(a_pad, attrs_cat, enc_w, enc_b)       # [L, N_pad, 2*D_pad]

    knowledge_cat = enc_xs[-1]                                # [N_pad, 2*D_pad]
    knowledge_mean = segment_mean(sel, knowledge_cat, inv_counts)
    proximity_knowledge_mean = knowledge_mean[:num_graphs, :hidden_dim]
    feature_knowledge_mean = knowledge_mean[:num_graphs, d_pad:d_pad + hidden_dim]
    p_e_xs = [enc_xs[i, :n, :hidden_dim] for i in range(gnn_layers_num)]
    f_e_xs = [enc_xs[i, :n, d_pad:d_pad + hidden_dim] for i in range(gnn_layers_num)]

    # ---- fused decoders: first L layers of [proximity | feature] ------------
    dec_w, dec_b = _stack_tower_params(
        [all_params["p_dec"], all_params["f_dec"][:gnn_layers_num]], d_pad)
    dec_xs = gcn_stack(a_pad, knowledge_cat, dec_w, dec_b)    # [L, N_pad, 2*D_pad]
    p_d_xs = [dec_xs[i, :n, :hidden_dim] for i in range(gnn_layers_num)]
    f_d_xs = [dec_xs[i, :n, d_pad:d_pad + hidden_dim] for i in range(gnn_layers_num)]

    # proximity recovery from the proximity decoder's last layer
    prox_last = dec_xs[-1, :, :d_pad]
    prox_rec_pad = proximity_recovery(
        prox_last.astype(jnp.bfloat16), batch_r, batch_c)
    proximity_recovery_ = prox_rec_pad[:n, :n]

    # extra feature-decoder layer (hidden_dim -> attrs_dim), single-tower
    fd_extra_w, fd_extra_b = _stack_tower_params(
        [[all_params["f_dec"][gnn_layers_num]]], d_pad)
    feat_last = dec_xs[-1, :, d_pad:]
    f_rec_xs = gcn_stack(a_pad, feat_last, fd_extra_w, fd_extra_b)  # [1, N_pad, D_pad]
    feature_recovery = f_rec_xs[0, :n, :attrs_dim]

    return (proximity_knowledge_mean, proximity_recovery_, original_proximity,
            feature_knowledge_mean, feature_recovery, attrs,
            p_e_xs, p_d_xs, f_e_xs, f_d_xs)


# ----------------------------------------------------------------------------
# Driver
# ----------------------------------------------------------------------------

if __name__ == "__main__":
    ATTRS_DIM = 16
    HIDDEN_DIM = 32
    GNN_LAYERS_NUM = 2
    NODES_PER_GRAPH = 8
    NUM_GRAPHS = 2
    N = NODES_PER_GRAPH * NUM_GRAPHS

    key = jax.random.PRNGKey(0)

    key, sub = jax.random.split(key)
    attrs = jax.random.normal(sub, (N, ATTRS_DIM), jnp.float32)

    # ring graph inside each of the 2 graphs (both directions)
    src, dst = [], []
    for g in range(NUM_GRAPHS):
        off = g * NODES_PER_GRAPH
        for kk in range(NODES_PER_GRAPH):
            a, b = off + kk, off + (kk + 1) % NODES_PER_GRAPH
            src += [a, b]
            dst += [b, a]
    edge_index = jnp.array([src, dst], dtype=jnp.int32)          # [2, 32]
    batch = jnp.repeat(jnp.arange(NUM_GRAPHS, dtype=jnp.int32),
                       NODES_PER_GRAPH)                           # [16]

    key, p_enc = init_gcn_stack_params(
        key, [ATTRS_DIM] + [HIDDEN_DIM] * GNN_LAYERS_NUM)
    key, f_enc = init_gcn_stack_params(
        key, [ATTRS_DIM] + [HIDDEN_DIM] * GNN_LAYERS_NUM)
    key, p_dec = init_gcn_stack_params(
        key, [HIDDEN_DIM] * (GNN_LAYERS_NUM + 1))
    key, f_dec = init_gcn_stack_params(
        key, [HIDDEN_DIM] * (GNN_LAYERS_NUM + 1) + [ATTRS_DIM])

    all_params = {"p_enc": p_enc, "p_dec": p_dec,
                  "f_enc": f_enc, "f_dec": f_dec}

    fwd = jax.jit(functools.partial(extract_cl_forward, num_graphs=NUM_GRAPHS))
    out = fwd(all_params, attrs, edge_index, batch)
    jax.block_until_ready(out)

    (p_k_mean, p_rec, orig_prox, f_k_mean, f_rec, attrs_out,
     p_e_xs, p_d_xs, f_e_xs, f_d_xs) = out
    assert p_k_mean.shape == (NUM_GRAPHS, HIDDEN_DIM)
    assert p_rec.shape == (N, N)
    assert orig_prox.shape == (N, N)
    assert f_k_mean.shape == (NUM_GRAPHS, HIDDEN_DIM)
    assert f_rec.shape == (N, ATTRS_DIM)
    assert attrs_out.shape == (N, ATTRS_DIM)
    assert len(p_e_xs) == len(p_d_xs) == len(f_e_xs) == len(f_d_xs) == GNN_LAYERS_NUM
    assert all(x.shape == (N, HIDDEN_DIM) for x in p_e_xs + p_d_xs + f_e_xs + f_d_xs)

    print("KERNEL_OK")
</pallas_src>

<mosaic_0001>
module attributes {stable_mosaic.version = 11 : i64} {
  func.func private @main(%arg0: i32) attributes {dimension_semantics = [#tpu.dimension_semantics<core_parallel>], iteration_bounds = array<i64: 2>, tpu.core_type = #tpu.core_type<sc_scalar_subcore>, window_params = []} {
    return
  }
}

module attributes {stable_mosaic.version = 11 : i64} {
  func.func private @main(%arg0: i32) attributes {dimension_semantics = [#tpu.dimension_semantics<core_parallel>], iteration_bounds = array<i64: 2>, tpu.core_type = #tpu.core_type<sc_scalar_subcore>, window_params = []} {
    return
  }
}

module attributes {stable_mosaic.version = 11 : i64} {
  func.func @_gcn_stack_kernel(%arg0: i32, %arg1: i32, %arg2: i32, %arg3: memref<128x128xbf16, #tpu.memory_space<vmem>>, %arg4: memref<128x256xf32, #tpu.memory_space<vmem>>, %arg5: memref<1x2x128x128xf32, #tpu.memory_space<vmem>>, %arg6: memref<1x1x256xf32, #tpu.memory_space<vmem>>, %arg7: memref<1x128x256xf32, #tpu.memory_space<vmem>>, %arg8: memref<128x256xf32, #tpu.memory_space<vmem>>, %arg9: memref<128x256xf32, #tpu.memory_space<vmem>>, %arg10: memref<128x256xbf16, #tpu.memory_space<vmem>>) attributes {dimension_semantics = [#tpu.dimension_semantics<arbitrary>, #tpu.dimension_semantics<arbitrary>, #tpu.dimension_semantics<arbitrary>], iteration_bounds = array<i64: 2, 1, 1>, scalar_prefetch = 0 : i64, scratch_operands = 3 : i64, tpu.core_type = #tpu.core_type<tc>, window_params = [{transform_indices = @transform_0, window_bounds = array<i64: 128, 128>}, {pipeline_mode = #tpu.pipeline_mode<synchronous>, transform_indices = @transform_1, window_bounds = array<i64: 128, 256>}, {transform_indices = @transform_2, window_bounds = array<i64: 1, 2, 128, 128>}, {transform_indices = @transform_3, window_bounds = array<i64: 1, 1, 256>}, {transform_indices = @transform_4, window_bounds = array<i64: 1, 128, 256>}]} {
    %c0_i32 = arith.constant 0 : i32
    %0 = arith.cmpi eq, %arg0, %c0_i32 : i32
    %c0_i32_0 = arith.constant 0 : i32
    %1 = arith.cmpi eq, %arg1, %c0_i32_0 : i32
    %2 = arith.andi %0, %1 : i1
    %c0_i32_1 = arith.constant 0 : i32
    %3 = arith.cmpi eq, %arg2, %c0_i32_1 : i32
    %4 = arith.andi %2, %3 : i1
    %5 = arith.extui %4 : i1 to i32
    %c0_i32_2 = arith.constant 0 : i32
    %6 = arith.cmpi ne, %5, %c0_i32_2 : i32
    scf.if %6 {
      %c0_16 = arith.constant 0 : index
      %c0_17 = arith.constant 0 : index
      %27 = vector.load %arg4[%c0_16, %c0_17] : memref<128x256xf32, #tpu.memory_space<vmem>>, vector<128x256xf32>
      %c0_18 = arith.constant 0 : index
      %c0_19 = arith.constant 0 : index
      %28 = vector.load %arg9[%c0_18, %c0_19] : memref<128x256xf32, #tpu.memory_space<vmem>>, vector<128x256xf32>
      tpu.vector_store %arg9[%c0_18, %c0_19], %27 {strides = array<i32>} : memref<128x256xf32, #tpu.memory_space<vmem>>, vector<128x256xf32>,
    } else {
    }
    %c0_i32_3 = arith.constant 0 : i32
    %7 = arith.cmpi eq, %arg1, %c0_i32_3 : i32
    %c0_i32_4 = arith.constant 0 : i32
    %8 = arith.cmpi eq, %arg2, %c0_i32_4 : i32
    %9 = arith.andi %7, %8 : i1
    %10 = arith.extui %9 : i1 to i32
    %c0_i32_5 = arith.constant 0 : i32
    %11 = arith.cmpi ne, %10, %c0_i32_5 : i32
    scf.if %11 {
      %c0_16 = arith.constant 0 : index
      %c0_17 = arith.constant 0 : index
      %27 = vector.load %arg9[%c0_16, %c0_17] : memref<128x256xf32, #tpu.memory_space<vmem>>, vector<128x128xf32>
      %c0_18 = arith.constant 0 : index
      %c0_19 = arith.constant 0 : index
      %c0_20 = arith.constant 0 : index
      %c0_21 = arith.constant 0 : index
      %28 = vector.load %arg5[%c0_18, %c0_19, %c0_20, %c0_21] : memref<1x2x128x128xf32, #tpu.memory_space<vmem>>, vector<1x1x128x128xf32>
      %29 = vector.shape_cast %28 : vector<1x1x128x128xf32> to vector<128x128xf32>
      %cst_22 = arith.constant dense<0.000000e+00> : vector<128x128xf32>
      %30 = tpu.matmul %27, %29, %cst_22 {dimension_numbers = #tpu.dot_dimension_numbers<[1], [0], [0], [1], [0, 0, 1, 1], [], []>} : vector<128x128xf32>, vector<128x128xf32>, vector<128x128xf32> -> vector<128x128xf32>
      %31 = arith.truncf %30 : vector<128x128xf32> to vector<128x128xbf16>
      %c0_23 = arith.constant 0 : index
      %c0_24 = arith.constant 0 : index
      %32 = vector.load %arg10[%c0_23, %c0_24] : memref<128x256xbf16, #tpu.memory_space<vmem>>, vector<128x128xbf16>
      tpu.vector_store %arg10[%c0_23, %c0_24], %31 {strides = array<i32>} : memref<128x256xbf16, #tpu.memory_space<vmem>>, vector<128x128xbf16>,
      %c0_25 = arith.constant 0 : index
      %c128 = arith.constant 128 : index
      %33 = vector.load %arg9[%c0_25, %c128] : memref<128x256xf32, #tpu.memory_space<vmem>>, vector<128x128xf32>
      %c0_26 = arith.constant 0 : index
      %c1 = arith.constant 1 : index
      %c0_27 = arith.constant 0 : index
      %c0_28 = arith.constant 0 : index
      %34 = vector.load %arg5[%c0_26, %c1, %c0_27, %c0_28] : memref<1x2x128x128xf32, #tpu.memory_space<vmem>>, vector<1x1x128x128xf32>
      %35 = vector.shape_cast %34 : vector<1x1x128x128xf32> to vector<128x128xf32>
      %cst_29 = arith.constant dense<0.000000e+00> : vector<128x128xf32>
      %36 = tpu.matmul %33, %35, %cst_29 {dimension_numbers = #tpu.dot_dimension_numbers<[1], [0], [0], [1], [0, 0, 1, 1], [], []>} : vector<128x128xf32>, vector<128x128xf32>, vector<128x128xf32> -> vector<128x128xf32>
      %37 = arith.truncf %36 : vector<128x128xf32> to vector<128x128xbf16>
      %c0_30 = arith.constant 0 : index
      %c128_31 = arith.constant 128 : index
      %38 = vector.load %arg10[%c0_30, %c128_31] : memref<128x256xbf16, #tpu.memory_space<vmem>>, vector<128x128xbf16>
      tpu.vector_store %arg10[%c0_30, %c128_31], %37 {strides = array<i32>} : memref<128x256xbf16, #tpu.memory_space<vmem>>, vector<128x128xbf16>,
    } else {
    }
    %c0_i32_6 = arith.constant 0 : i32
    %12 = arith.cmpi eq, %arg2, %c0_i32_6 : i32
    %13 = arith.extui %12 : i1 to i32
    %c0_i32_7 = arith.constant 0 : i32
    %14 = arith.cmpi ne, %13, %c0_i32_7 : i32
    scf.if %14 {
      %cst_16 = arith.constant 0.000000e+00 : f32
      %27 = vector.broadcast %cst_16 : f32 to vector<128x256xf32>
      %c0_17 = arith.constant 0 : index
      %c0_18 = arith.constant 0 : index
      %28 = vector.load %arg8[%c0_17, %c0_18] : memref<128x256xf32, #tpu.memory_space<vmem>>, vector<128x256xf32>
      tpu.vector_store %arg8[%c0_17, %c0_18], %27 {strides = array<i32>} : memref<128x256xf32, #tpu.memory_space<vmem>>, vector<128x256xf32>,
    } else {
    }
    %c128_i32 = arith.constant 128 : i32
    %15 = arith.muli %arg2, %c128_i32 : i32
    %16 = tpu.assume_multiple %15, 128 : i32
    %c0 = arith.constant 0 : index
    %c0_8 = arith.constant 0 : index
    %17 = vector.load %arg8[%c0, %c0_8] : memref<128x256xf32, #tpu.memory_space<vmem>>, vector<128x256xf32>
    %c0_9 = arith.constant 0 : index
    %c0_10 = arith.constant 0 : index
    %18 = vector.load %arg3[%c0_9, %c0_10] : memref<128x128xbf16, #tpu.memory_space<vmem>>, vector<128x128xbf16>
    %19 = arith.index_cast %16 : i32 to index
    %c0_11 = arith.constant 0 : index
    %20 = vector.load %arg10[%19, %c0_11] : memref<128x256xbf16, #tpu.memory_space<vmem>>, vector<128x256xbf16>
    %cst = arith.constant dense<0.000000e+00> : vector<128x256xf32>
    %21 = tpu.matmul %18, %20, %cst {dimension_numbers = #tpu.dot_dimension_numbers<[1], [0], [0], [1], [0, 0, 1, 1], [], []>} : vector<128x128xbf16>, vector<128x256xbf16>, vector<128x256xf32> -> vector<128x256xf32>
    %22 = arith.addf %17, %21 : vector<128x256xf32>
    %c0_12 = arith.constant 0 : index
    %c0_13 = arith.constant 0 : index
    %23 = vector.load %arg8[%c0_12, %c0_13] : memref<128x256xf32, #tpu.memory_space<vmem>>, vector<128x256xf32>
    tpu.vector_store %arg8[%c0_12, %c0_13], %22 {strides = array<i32>} : memref<128x256xf32, #tpu.memory_space<vmem>>, vector<128x256xf32>,
    %c0_i32_14 = arith.constant 0 : i32
    %24 = arith.cmpi eq, %arg2, %c0_i32_14 : i32
    %25 = arith.extui %24 : i1 to i32
    %c0_i32_15 = arith.constant 0 : i32
    %26 = arith.cmpi ne, %25, %c0_i32_15 : i32
    scf.if %26 {
      %c0_16 = arith.constant 0 : index
      %c0_17 = arith.constant 0 : index
      %27 = vector.load %arg8[%c0_16, %c0_17] : memref<128x256xf32, #tpu.memory_space<vmem>>, vector<128x256xf32>
      %c0_18 = arith.constant 0 : index
      %c0_19 = arith.constant 0 : index
      %c0_20 = arith.constant 0 : index
      %28 = vector.load %arg6[%c0_18, %c0_19, %c0_20] : memref<1x1x256xf32, #tpu.memory_space<vmem>>, vector<1x1x256xf32>
      %29 = vector.shape_cast %28 : vector<1x1x256xf32> to vector<1x256xf32>
      %30 = vector.broadcast %29 : vector<1x256xf32> to vector<128x256xf32>
      %31 = arith.addf %27, %30 : vector<128x256xf32>
      %32 = math.tanh %31 : vector<128x256xf32>
      %c128_i32_21 = arith.constant 128 : i32
      %33 = arith.muli %arg1, %c128_i32_21 : i32
      %34 = tpu.assume_multiple %33, 128 : i32
      %35 = arith.index_cast %34 : i32 to index
      %c0_22 = arith.constant 0 : index
      %36 = vector.load %arg9[%35, %c0_22] : memref<128x256xf32, #tpu.memory_space<vmem>>, vector<128x256xf32>
      tpu.vector_store %arg9[%35, %c0_22], %32 {strides = array<i32>} : memref<128x256xf32, #tpu.memory_space<vmem>>, vector<128x256xf32>,
      %c0_23 = arith.constant 0 : index
      %c0_24 = arith.constant 0 : index
      %c0_25 = arith.constant 0 : index
      %37 = vector.load %arg7[%c0_23, %c0_24, %c0_25] : memref<1x128x256xf32, #tpu.memory_space<vmem>>, vector<1x128x256xf32>
      %38 = vector.shape_cast %37 : vector<1x128x256xf32> to vector<128x256xf32>
      %39 = vector.shape_cast %32 : vector<128x256xf32> to vector<1x128x256xf32>
      tpu.vector_store %arg7[%c0_23, %c0_24, %c0_25], %39 {strides = array<i32>} : memref<1x128x256xf32, #tpu.memory_space<vmem>>, vector<1x128x256xf32>,
    } else {
    }
    return
  }
  func.func @transform_0(%arg0: i32, %arg1: i32, %arg2: i32) -> (i32, i32) {
    %c0_i32 = arith.constant 0 : i32
    return %arg1, %arg2 : i32, i32
  }
  func.func @transform_1(%arg0: i32, %arg1: i32, %arg2: i32) -> (i32, i32) {
    %c0_i32 = arith.constant 0 : i32
    %c0_i32_0 = arith.constant 0 : i32
    %c0_i32_1 = arith.constant 0 : i32
    return %c0_i32, %c0_i32_0 : i32, i32
  }
  func.func @transform_2(%arg0: i32, %arg1: i32, %arg2: i32) -> (i32, i32, i32, i32) {
    %c0_i32 = arith.constant 0 : i32
    %c0_i32_0 = arith.constant 0 : i32
    %c0_i32_1 = arith.constant 0 : i32
    %c0_i32_2 = arith.constant 0 : i32
    return %arg0, %c0_i32, %c0_i32_0, %c0_i32_1 : i32, i32, i32, i32
  }
  func.func @transform_3(%arg0: i32, %arg1: i32, %arg2: i32) -> (i32, i32, i32) {
    %c0_i32 = arith.constant 0 : i32
    %c0_i32_0 = arith.constant 0 : i32
    %c0_i32_1 = arith.constant 0 : i32
    return %arg0, %c0_i32, %c0_i32_0 : i32, i32, i32
  }
  func.func @transform_4(%arg0: i32, %arg1: i32, %arg2: i32) -> (i32, i32, i32) {
    %c0_i32 = arith.constant 0 : i32
    %c0_i32_0 = arith.constant 0 : i32
    return %arg0, %arg1, %c0_i32 : i32, i32, i32
  }
}

module attributes {stable_mosaic.version = 11 : i64} {
  func.func @_gcn_stack_kernel(%arg0: i32, %arg1: i32, %arg2: i32, %arg3: memref<128x128xbf16, #tpu.memory_space<vmem>>, %arg4: memref<128x128xf32, #tpu.memory_space<vmem>>, %arg5: memref<1x1x128x128xf32, #tpu.memory_space<vmem>>, %arg6: memref<1x1x128xf32, #tpu.memory_space<vmem>>, %arg7: memref<1x128x128xf32, #tpu.memory_space<vmem>>, %arg8: memref<128x128xf32, #tpu.memory_space<vmem>>, %arg9: memref<128x128xf32, #tpu.memory_space<vmem>>, %arg10: memref<128x128xbf16, #tpu.memory_space<vmem>>) attributes {dimension_semantics = [#tpu.dimension_semantics<arbitrary>, #tpu.dimension_semantics<arbitrary>, #tpu.dimension_semantics<arbitrary>], iteration_bounds = array<i64: 1, 1, 1>, scalar_prefetch = 0 : i64, scratch_operands = 3 : i64, tpu.core_type = #tpu.core_type<tc>, window_params = [{transform_indices = @transform_0, window_bounds = array<i64: 128, 128>}, {pipeline_mode = #tpu.pipeline_mode<synchronous>, transform_indices = @transform_1, window_bounds = array<i64: 128, 128>}, {transform_indices = @transform_2, window_bounds = array<i64: 1, 1, 128, 128>}, {transform_indices = @transform_3, window_bounds = array<i64: 1, 1, 128>}, {transform_indices = @transform_4, window_bounds = array<i64: 1, 128, 128>}]} {
    %c0_i32 = arith.constant 0 : i32
    %0 = arith.cmpi eq, %arg0, %c0_i32 : i32
    %c0_i32_0 = arith.constant 0 : i32
    %1 = arith.cmpi eq, %arg1, %c0_i32_0 : i32
    %2 = arith.andi %0, %1 : i1
    %c0_i32_1 = arith.constant 0 : i32
    %3 = arith.cmpi eq, %arg2, %c0_i32_1 : i32
    %4 = arith.andi %2, %3 : i1
    %5 = arith.extui %4 : i1 to i32
    %c0_i32_2 = arith.constant 0 : i32
    %6 = arith.cmpi ne, %5, %c0_i32_2 : i32
    scf.if %6 {
      %c0_16 = arith.constant 0 : index
      %c0_17 = arith.constant 0 : index
      %27 = vector.load %arg4[%c0_16, %c0_17] : memref<128x128xf32, #tpu.memory_space<vmem>>, vector<128x128xf32>
      %c0_18 = arith.constant 0 : index
      %c0_19 = arith.constant 0 : index
      %28 = vector.load %arg9[%c0_18, %c0_19] : memref<128x128xf32, #tpu.memory_space<vmem>>, vector<128x128xf32>
      tpu.vector_store %arg9[%c0_18, %c0_19], %27 {strides = array<i32>} : memref<128x128xf32, #tpu.memory_space<vmem>>, vector<128x128xf32>,
    } else {
    }
    %c0_i32_3 = arith.constant 0 : i32
    %7 = arith.cmpi eq, %arg1, %c0_i32_3 : i32
    %c0_i32_4 = arith.constant 0 : i32
    %8 = arith.cmpi eq, %arg2, %c0_i32_4 : i32
    %9 = arith.andi %7, %8 : i1
    %10 = arith.extui %9 : i1 to i32
    %c0_i32_5 = arith.constant 0 : i32
    %11 = arith.cmpi ne, %10, %c0_i32_5 : i32
    scf.if %11 {
      %c0_16 = arith.constant 0 : index
      %c0_17 = arith.constant 0 : index
      %27 = vector.load %arg9[%c0_16, %c0_17] : memref<128x128xf32, #tpu.memory_space<vmem>>, vector<128x128xf32>
      %c0_18 = arith.constant 0 : index
      %c0_19 = arith.constant 0 : index
      %c0_20 = arith.constant 0 : index
      %c0_21 = arith.constant 0 : index
      %28 = vector.load %arg5[%c0_18, %c0_19, %c0_20, %c0_21] : memref<1x1x128x128xf32, #tpu.memory_space<vmem>>, vector<1x1x128x128xf32>
      %29 = vector.shape_cast %28 : vector<1x1x128x128xf32> to vector<128x128xf32>
      %cst_22 = arith.constant dense<0.000000e+00> : vector<128x128xf32>
      %30 = tpu.matmul %27, %29, %cst_22 {dimension_numbers = #tpu.dot_dimension_numbers<[1], [0], [0], [1], [0, 0, 1, 1], [], []>} : vector<128x128xf32>, vector<128x128xf32>, vector<128x128xf32> -> vector<128x128xf32>
      %31 = arith.truncf %30 : vector<128x128xf32> to vector<128x128xbf16>
      %c0_23 = arith.constant 0 : index
      %c0_24 = arith.constant 0 : index
      %32 = vector.load %arg10[%c0_23, %c0_24] : memref<128x128xbf16, #tpu.memory_space<vmem>>, vector<128x128xbf16>
      tpu.vector_store %arg10[%c0_23, %c0_24], %31 {strides = array<i32>} : memref<128x128xbf16, #tpu.memory_space<vmem>>, vector<128x128xbf16>,
    } else {
    }
    %c0_i32_6 = arith.constant 0 : i32
    %12 = arith.cmpi eq, %arg2, %c0_i32_6 : i32
    %13 = arith.extui %12 : i1 to i32
    %c0_i32_7 = arith.constant 0 : i32
    %14 = arith.cmpi ne, %13, %c0_i32_7 : i32
    scf.if %14 {
      %cst_16 = arith.constant 0.000000e+00 : f32
      %27 = vector.broadcast %cst_16 : f32 to vector<128x128xf32>
      %c0_17 = arith.constant 0 : index
      %c0_18 = arith.constant 0 : index
      %28 = vector.load %arg8[%c0_17, %c0_18] : memref<128x128xf32, #tpu.memory_space<vmem>>, vector<128x128xf32>
      tpu.vector_store %arg8[%c0_17, %c0_18], %27 {strides = array<i32>} : memref<128x128xf32, #tpu.memory_space<vmem>>, vector<128x128xf32>,
    } else {
    }
    %c128_i32 = arith.constant 128 : i32
    %15 = arith.muli %arg2, %c128_i32 : i32
    %16 = tpu.assume_multiple %15, 128 : i32
    %c0 = arith.constant 0 : index
    %c0_8 = arith.constant 0 : index
    %17 = vector.load %arg8[%c0, %c0_8] : memref<128x128xf32, #tpu.memory_space<vmem>>, vector<128x128xf32>
    %c0_9 = arith.constant 0 : index
    %c0_10 = arith.constant 0 : index
    %18 = vector.load %arg3[%c0_9, %c0_10] : memref<128x128xbf16, #tpu.memory_space<vmem>>, vector<128x128xbf16>
    %19 = arith.index_cast %16 : i32 to index
    %c0_11 = arith.constant 0 : index
    %20 = vector.load %arg10[%19, %c0_11] : memref<128x128xbf16, #tpu.memory_space<vmem>>, vector<128x128xbf16>
    %cst = arith.constant dense<0.000000e+00> : vector<128x128xf32>
    %21 = tpu.matmul %18, %20, %cst {dimension_numbers = #tpu.dot_dimension_numbers<[1], [0], [0], [1], [0, 0, 1, 1], [], []>} : vector<128x128xbf16>, vector<128x128xbf16>, vector<128x128xf32> -> vector<128x128xf32>
    %22 = arith.addf %17, %21 : vector<128x128xf32>
    %c0_12 = arith.constant 0 : index
    %c0_13 = arith.constant 0 : index
    %23 = vector.load %arg8[%c0_12, %c0_13] : memref<128x128xf32, #tpu.memory_space<vmem>>, vector<128x128xf32>
    tpu.vector_store %arg8[%c0_12, %c0_13], %22 {strides = array<i32>} : memref<128x128xf32, #tpu.memory_space<vmem>>, vector<128x128xf32>,
    %c0_i32_14 = arith.constant 0 : i32
    %24 = arith.cmpi eq, %arg2, %c0_i32_14 : i32
    %25 = arith.extui %24 : i1 to i32
    %c0_i32_15 = arith.constant 0 : i32
    %26 = arith.cmpi ne, %25, %c0_i32_15 : i32
    scf.if %26 {
      %c0_16 = arith.constant 0 : index
      %c0_17 = arith.constant 0 : index
      %27 = vector.load %arg8[%c0_16, %c0_17] : memref<128x128xf32, #tpu.memory_space<vmem>>, vector<128x128xf32>
      %c0_18 = arith.constant 0 : index
      %c0_19 = arith.constant 0 : index
      %c0_20 = arith.constant 0 : index
      %28 = vector.load %arg6[%c0_18, %c0_19, %c0_20] : memref<1x1x128xf32, #tpu.memory_space<vmem>>, vector<1x1x128xf32>
      %29 = vector.shape_cast %28 : vector<1x1x128xf32> to vector<1x128xf32>
      %30 = vector.broadcast %29 : vector<1x128xf32> to vector<128x128xf32>
      %31 = arith.addf %27, %30 : vector<128x128xf32>
      %32 = math.tanh %31 : vector<128x128xf32>
      %c128_i32_21 = arith.constant 128 : i32
      %33 = arith.muli %arg1, %c128_i32_21 : i32
      %34 = tpu.assume_multiple %33, 128 : i32
      %35 = arith.index_cast %34 : i32 to index
      %c0_22 = arith.constant 0 : index
      %36 = vector.load %arg9[%35, %c0_22] : memref<128x128xf32, #tpu.memory_space<vmem>>, vector<128x128xf32>
      tpu.vector_store %arg9[%35, %c0_22], %32 {strides = array<i32>} : memref<128x128xf32, #tpu.memory_space<vmem>>, vector<128x128xf32>,
      %c0_23 = arith.constant 0 : index
      %c0_24 = arith.constant 0 : index
      %c0_25 = arith.constant 0 : index
      %37 = vector.load %arg7[%c0_23, %c0_24, %c0_25] : memref<1x128x128xf32, #tpu.memory_space<vmem>>, vector<1x128x128xf32>
      %38 = vector.shape_cast %37 : vector<1x128x128xf32> to vector<128x128xf32>
      %39 = vector.shape_cast %32 : vector<128x128xf32> to vector<1x128x128xf32>
      tpu.vector_store %arg7[%c0_23, %c0_24, %c0_25], %39 {strides = array<i32>} : memref<1x128x128xf32, #tpu.memory_space<vmem>>, vector<1x128x128xf32>,
    } else {
    }
    return
  }
  func.func @transform_0(%arg0: i32, %arg1: i32, %arg2: i32) -> (i32, i32) {
    %c0_i32 = arith.constant 0 : i32
    return %arg1, %arg2 : i32, i32
  }
  func.func @transform_1(%arg0: i32, %arg1: i32, %arg2: i32) -> (i32, i32) {
    %c0_i32 = arith.constant 0 : i32
    %c0_i32_0 = arith.constant 0 : i32
    %c0_i32_1 = arith.constant 0 : i32
    return %c0_i32, %c0_i32_0 : i32, i32
  }
  func.func @transform_2(%arg0: i32, %arg1: i32, %arg2: i32) -> (i32, i32, i32, i32) {
    %c0_i32 = arith.constant 0 : i32
    %c0_i32_0 = arith.constant 0 : i32
    %c0_i32_1 = arith.constant 0 : i32
    %c0_i32_2 = arith.constant 0 : i32
    return %arg0, %c0_i32, %c0_i32_0, %c0_i32_1 : i32, i32, i32, i32
  }
  func.func @transform_3(%arg0: i32, %arg1: i32, %arg2: i32) -> (i32, i32, i32) {
    %c0_i32 = arith.constant 0 : i32
    %c0_i32_0 = arith.constant 0 : i32
    %c0_i32_1 = arith.constant 0 : i32
    return %arg0, %c0_i32, %c0_i32_0 : i32, i32, i32
  }
  func.func @transform_4(%arg0: i32, %arg1: i32, %arg2: i32) -> (i32, i32, i32) {
    %c0_i32 = arith.constant 0 : i32
    %c0_i32_0 = arith.constant 0 : i32
    return %arg0, %arg1, %c0_i32 : i32, i32, i32
  }
}

module attributes {stable_mosaic.version = 11 : i64} {
  func.func @_prox_recovery_kernel(%arg0: i32, %arg1: i32, %arg2: memref<128x128xbf16, #tpu.memory_space<vmem>>, %arg3: memref<128x128xbf16, #tpu.memory_space<vmem>>, %arg4: memref<128x1xf32, #tpu.memory_space<vmem>>, %arg5: memref<1x128xf32, #tpu.memory_space<vmem>>, %arg6: memref<128x128xf32, #tpu.memory_space<vmem>>) attributes {dimension_semantics = [#tpu.dimension_semantics<parallel>, #tpu.dimension_semantics<parallel>], iteration_bounds = array<i64: 1, 1>, scalar_prefetch = 0 : i64, scratch_operands = 0 : i64, tpu.core_type = #tpu.core_type<tc>, window_params = [{transform_indices = @transform_0, window_bounds = array<i64: 128, 128>}, {transform_indices = @transform_1, window_bounds = array<i64: 128, 128>}, {transform_indices = @transform_2, window_bounds = array<i64: 128, 1>}, {transform_indices = @transform_3, window_bounds = array<i64: 1, 128>}, {transform_indices = @transform_4, window_bounds = array<i64: 128, 128>}]} {
    %c0 = arith.constant 0 : index
    %c0_0 = arith.constant 0 : index
    %0 = vector.load %arg2[%c0, %c0_0] : memref<128x128xbf16, #tpu.memory_space<vmem>>, vector<128x128xbf16>
    %c0_1 = arith.constant 0 : index
    %c0_2 = arith.constant 0 : index
    %1 = vector.load %arg3[%c0_1, %c0_2] : memref<128x128xbf16, #tpu.memory_space<vmem>>, vector<128x128xbf16>
    %cst = arith.constant dense<0.000000e+00> : vector<128x128xf32>
    %2 = tpu.matmul %0, %1, %cst {dimension_numbers = #tpu.dot_dimension_numbers<[1], [1], [0], [0], [0, 0, 1, 0], [], []>} : vector<128x128xbf16>, vector<128x128xbf16>, vector<128x128xf32> -> vector<128x128xf32>
    %cst_3 = arith.constant 0.000000e+00 : f32
    %3 = vector.broadcast %cst_3 : f32 to vector<128x128xf32>
    %4 = arith.subf %3, %2 : vector<128x128xf32>
    %5 = math.exp %4 : vector<128x128xf32>
    %cst_4 = arith.constant 1.000000e+00 : f32
    %6 = vector.broadcast %cst_4 : f32 to vector<128x128xf32>
    %7 = arith.addf %6, %5 : vector<128x128xf32>
    %8 = tpu.reciprocal %7 {approx = true} : vector<128x128xf32> -> vector<128x128xf32>
    %c0_5 = arith.constant 0 : index
    %c0_6 = arith.constant 0 : index
    %9 = vector.load %arg4[%c0_5, %c0_6] : memref<128x1xf32, #tpu.memory_space<vmem>>, vector<128x1xf32>
    %c0_7 = arith.constant 0 : index
    %c0_8 = arith.constant 0 : index
    %10 = vector.load %arg5[%c0_7, %c0_8] : memref<1x128xf32, #tpu.memory_space<vmem>>, vector<1x128xf32>
    %11 = vector.broadcast %9 : vector<128x1xf32> to vector<128x128xf32>
    %12 = vector.broadcast %10 : vector<1x128xf32> to vector<128x128xf32>
    %13 = arith.cmpf oeq, %11, %12 : vector<128x128xf32>
    %14 = arith.extui %13 : vector<128x128xi1> to vector<128x128xi32>
    %15 = arith.sitofp %14 : vector<128x128xi32> to vector<128x128xf32>
    %16 = arith.mulf %8, %15 : vector<128x128xf32>
    %c0_9 = arith.constant 0 : index
    %c0_10 = arith.constant 0 : index
    %17 = vector.load %arg6[%c0_9, %c0_10] : memref<128x128xf32, #tpu.memory_space<vmem>>, vector<128x128xf32>
    tpu.vector_store %arg6[%c0_9, %c0_10], %16 {strides = array<i32>} : memref<128x128xf32, #tpu.memory_space<vmem>>, vector<128x128xf32>,
    return
  }
  func.func @transform_0(%arg0: i32, %arg1: i32) -> (i32, i32) {
    %c0_i32 = arith.constant 0 : i32
    %c0_i32_0 = arith.constant 0 : i32
    return %arg0, %c0_i32 : i32, i32
  }
  func.func @transform_1(%arg0: i32, %arg1: i32) -> (i32, i32) {
    %c0_i32 = arith.constant 0 : i32
    %c0_i32_0 = arith.constant 0 : i32
    return %arg1, %c0_i32 : i32, i32
  }
  func.func @transform_2(%arg0: i32, %arg1: i32) -> (i32, i32) {
    %c0_i32 = arith.constant 0 : i32
    %c0_i32_0 = arith.constant 0 : i32
    return %arg0, %c0_i32 : i32, i32
  }
  func.func @transform_3(%arg0: i32, %arg1: i32) -> (i32, i32) {
    %c0_i32 = arith.constant 0 : i32
    %c0_i32_0 = arith.constant 0 : i32
    return %c0_i32, %arg1 : i32, i32
  }
  func.func @transform_4(%arg0: i32, %arg1: i32) -> (i32, i32) {
    %c0_i32 = arith.constant 0 : i32
    return %arg0, %arg1 : i32, i32
  }
}

module attributes {stable_mosaic.version = 11 : i64} {
  func.func @_segment_mean_kernel(%arg0: i32, %arg1: memref<8x128xf32, #tpu.memory_space<vmem>>, %arg2: memref<128x256xf32, #tpu.memory_space<vmem>>, %arg3: memref<8x1xf32, #tpu.memory_space<vmem>>, %arg4: memref<8x256xf32, #tpu.memory_space<vmem>>, %arg5: memref<8x256xf32, #tpu.memory_space<vmem>>) attributes {dimension_semantics = [#tpu.dimension_semantics<arbitrary>], iteration_bounds = array<i64: 1>, scalar_prefetch = 0 : i64, scratch_operands = 1 : i64, tpu.core_type = #tpu.core_type<tc>, window_params = [{transform_indices = @transform_0, window_bounds = array<i64: 8, 128>}, {transform_indices = @transform_1, window_bounds = array<i64: 128, 256>}, {pipeline_mode = #tpu.pipeline_mode<synchronous>, transform_indices = @transform_2, window_bounds = array<i64: 8, 1>}, {pipeline_mode = #tpu.pipeline_mode<synchronous>, transform_indices = @transform_3, window_bounds = array<i64: 8, 256>}]} {
    %c0_i32 = arith.constant 0 : i32
    %0 = arith.cmpi eq, %arg0, %c0_i32 : i32
    %1 = arith.extui %0 : i1 to i32
    %c0_i32_0 = arith.constant 0 : i32
    %2 = arith.cmpi ne, %1, %c0_i32_0 : i32
    scf.if %2 {
      %cst_10 = arith.constant 0.000000e+00 : f32
      %12 = vector.broadcast %cst_10 : f32 to vector<8x256xf32>
      %c0_11 = arith.constant 0 : index
      %c0_12 = arith.constant 0 : index
      %13 = vector.load %arg5[%c0_11, %c0_12] : memref<8x256xf32, #tpu.memory_space<vmem>>, vector<8x256xf32>
      tpu.vector_store %arg5[%c0_11, %c0_12], %12 {strides = array<i32>} : memref<8x256xf32, #tpu.memory_space<vmem>>, vector<8x256xf32>,
    } else {
    }
    %c0 = arith.constant 0 : index
    %c0_1 = arith.constant 0 : index
    %3 = vector.load %arg5[%c0, %c0_1] : memref<8x256xf32, #tpu.memory_space<vmem>>, vector<8x256xf32>
    %c0_2 = arith.constant 0 : index
    %c0_3 = arith.constant 0 : index
    %4 = vector.load %arg1[%c0_2, %c0_3] : memref<8x128xf32, #tpu.memory_space<vmem>>, vector<8x128xf32>
    %c0_4 = arith.constant 0 : index
    %c0_5 = arith.constant 0 : index
    %5 = vector.load %arg2[%c0_4, %c0_5] : memref<128x256xf32, #tpu.memory_space<vmem>>, vector<128x256xf32>
    %cst = arith.constant dense<0.000000e+00> : vector<8x256xf32>
    %6 = tpu.matmul %4, %5, %cst {dimension_numbers = #tpu.dot_dimension_numbers<[1], [0], [0], [1], [0, 0, 1, 1], [], []>} : vector<8x128xf32>, vector<128x256xf32>, vector<8x256xf32> -> vector<8x256xf32>
    %7 = arith.addf %3, %6 : vector<8x256xf32>
    %c0_6 = arith.constant 0 : index
    %c0_7 = arith.constant 0 : index
    %8 = vector.load %arg5[%c0_6, %c0_7] : memref<8x256xf32, #tpu.memory_space<vmem>>, vector<8x256xf32>
    tpu.vector_store %arg5[%c0_6, %c0_7], %7 {strides = array<i32>} : memref<8x256xf32, #tpu.memory_space<vmem>>, vector<8x256xf32>,
    %c0_i32_8 = arith.constant 0 : i32
    %9 = arith.cmpi eq, %arg0, %c0_i32_8 : i32
    %10 = arith.extui %9 : i1 to i32
    %c0_i32_9 = arith.constant 0 : i32
    %11 = arith.cmpi ne, %10, %c0_i32_9 : i32
    scf.if %11 {
      %c0_10 = arith.constant 0 : index
      %c0_11 = arith.constant 0 : index
      %12 = vector.load %arg5[%c0_10, %c0_11] : memref<8x256xf32, #tpu.memory_space<vmem>>, vector<8x256xf32>
      %c0_12 = arith.constant 0 : index
      %c0_13 = arith.constant 0 : index
      %13 = vector.load %arg3[%c0_12, %c0_13] : memref<8x1xf32, #tpu.memory_space<vmem>>, vector<8x1xf32>
      %14 = vector.broadcast %13 : vector<8x1xf32> to vector<8x256xf32>
      %15 = arith.mulf %12, %14 : vector<8x256xf32>
      %c0_14 = arith.constant 0 : index
      %c0_15 = arith.constant 0 : index
      %16 = vector.load %arg4[%c0_14, %c0_15] : memref<8x256xf32, #tpu.memory_space<vmem>>, vector<8x256xf32>
      tpu.vector_store %arg4[%c0_14, %c0_15], %15 {strides = array<i32>} : memref<8x256xf32, #tpu.memory_space<vmem>>, vector<8x256xf32>,
    } else {
    }
    return
  }
  func.func @transform_0(%arg0: i32) -> (i32, i32) {
    %c0_i32 = arith.constant 0 : i32
    %c0_i32_0 = arith.constant 0 : i32
    return %c0_i32, %arg0 : i32, i32
  }
  func.func @transform_1(%arg0: i32) -> (i32, i32) {
    %c0_i32 = arith.constant 0 : i32
    %c0_i32_0 = arith.constant 0 : i32
    return %arg0, %c0_i32 : i32, i32
  }
  func.func @transform_2(%arg0: i32) -> (i32, i32) {
    %c0_i32 = arith.constant 0 : i32
    %c0_i32_0 = arith.constant 0 : i32
    %c0_i32_1 = arith.constant 0 : i32
    return %c0_i32, %c0_i32_0 : i32, i32
  }
  func.func @transform_3(%arg0: i32) -> (i32, i32) {
    %c0_i32 = arith.constant 0 : i32
    %c0_i32_0 = arith.constant 0 : i32
    %c0_i32_1 = arith.constant 0 : i32
    return %c0_i32, %c0_i32_0 : i32, i32
  }
}

</mosaic_0001>

<llo_original>
// kernel: extract_cl_forward.5
$region0: #{extract_cl_forward.5}
  #allocation0 [shape = 'u32[]', space=smem, size = 0x4, offset = 0x4, fixed_abs, tag = 'smem constant byte address 0x4 - core index']
  #allocation1 [shape = 'u32[144,128]{1,0:T(1,128)}', space=vmem, size = 0x12000, scoped, tag = 'internal scratch']
  #allocation2 [shape = 'f32[128,256]{1,0:T(8,128)}', space=vmem, size = 0x20000, scoped, tag = 'scratch operand']
  #allocation3 [shape = 'f32[128,256]{1,0:T(8,128)}', space=vmem, size = 0x20000, scoped, tag = 'scratch operand']
  #allocation4 [shape = 'bf16[128,256]{1,0:T(16,128)(2,1)}', space=vmem, size = 0x10000, scoped, tag = 'scratch operand']
  %s0 = inlined_call_operand.vmem [shape: bf16[128,128], index: 0, kind: input, shape index: {}]
  %s1 = inlined_call_operand.vmem [shape: f32[128,256], index: 1, kind: input, shape index: {}]
  %s2 = inlined_call_operand.vmem [shape: f32[2,2,128,128], index: 2, kind: input, shape index: {}]
  %s3 = inlined_call_operand.vmem [shape: f32[2,1,256], index: 3, kind: input, shape index: {}]
  %s4 = inlined_call_operand.vmem [shape: f32[2,128,256], index: 4, kind: output, shape index: {}]
  %s5 = sld [smem:[#allocation0]]
  $region65: #{extract_cl_forward.5} parent=0
    _
  %s7 = ssub.s32 1, %s5
  %s8 = scalar_select 0, %s7, %s5
  loop: start=0, step=1, limit=4
  $region2: #{extract_cl_forward.5} parent=0 // loop_pre_header
    _
  $region3: #{extract_cl_forward.5} parent=0 // loop_header
    %s10 = sphi 0, %s14
    %p11 = scmp.ge.s32.totalorder %s10, 4
    %s17 = sphi 0, %s36
    %s18 = sphi 0, %s32
    %s19 = sphi 0, %s28
    %s20 = sphi 0, %s17
    %s21 = sphi 0, %s18
    %s22 = sphi 0, %s19
    %s23 = sphi 0, %s20
    %s24 = sphi 0, %s21
    %s25 = sphi 0, %s22
    %s41 = sphi 0, %s43
    %s44 = sphi 0, %s41
    %s45 = sphi 0, %s44
    %s61 = sphi 0, %s45
    %s65 = sphi 0, %s65
    %s67 = sphi 0, %s65
    %s68 = sphi 0, %s67
    %s82 = sphi 0, %s68
    %s88 = sphi 0, %s90
    %s91 = sphi 0, %s88
    %s92 = sphi 0, %s91
    %s108 = sphi 0, %s92
    %s114 = sphi 0, %s116
    %s117 = sphi 0, %s114
    %s118 = sphi 0, %s117
    %s134 = sphi 0, %s118
    %s142 = sphi 0, %s144
    %s145 = sphi 0, %s142
    %s146 = sphi 0, %s145
    %s162 = sphi 0, %s146
  $region4: #{extract_cl_forward.5} parent=0 // loop_header_branch
    %13 = sbr.rel (%p11) target = $region8
  $region5: #{extract_cl_forward.5} parent=0 // loop_body
    %s15 = ssub.s32 %s10, 1
    %s16 = ssub.s32 %s10, 2
    %s26 = sadd.s32 1, %s19
    %p27 = scmp.ge.s32.totalorder %s26, 1
    %s28 = scalar_select %p27, 0, %s26
    %s29 = sadd.s32 1, %s18
    %s30 = scalar_select %p27, %s29, %s18
    %p31 = scmp.ge.s32.totalorder %s30, 1
    %s32 = scalar_select %p31, 0, %s30
    %s33 = sadd.s32 1, %s17
    %s34 = scalar_select %p31, %s33, %s17
    %p35 = scmp.ge.s32.totalorder %s34, 2
    %s36 = scalar_select %p35, 0, %s34
    %s37 = ssub.s32 %s18, %s32
    %s38 = ssub.s32 %s19, %s28
    %s39 = sor.u32 %s37, %s38
    %p40 = scmp.eq.s32.totalorder %s39, 0
    %s42 = sadd.s32 %s41, 1
    %s43 = scalar_select %p40, %s41, %s42
    %p46 = pneg %p40
    %p47 = scmp.eq.s32.totalorder %s10, 1
    %p48 = por %p46, %p47
    %p49 = scmp.ne.s32.totalorder %s41, %s44
    %p50 = scmp.eq.s32.totalorder %s10, 0
    %p51 = por %p49, %p50
    %p52 = scmp.ne.s32.totalorder %s41, %s44
    %p53 = scmp.eq.s32.totalorder %s15, 1
    %p54 = por %p52, %p53
    %p55 = scmp.ne.s32.totalorder %s44, %s45
    %p56 = scmp.eq.s32.totalorder %s15, 0
    %p57 = por %p55, %p56
    %p58 = scmp.ne.s32.totalorder %s44, %s45
    %p59 = scmp.eq.s32.totalorder %s16, 1
    %p60 = por %p58, %p59
    %p62 = scmp.ne.s32.totalorder %s45, %s61
    %p63 = scmp.eq.s32.totalorder %s16, 0
    %p64 = por %p62, %p63
    %s66 = sadd.s32 %s65, 1
    %p69 = scmp.eq.s32.totalorder %s10, 1
    %p70 = scmp.ne.s32.totalorder %s65, %s67
    %p71 = scmp.eq.s32.totalorder %s10, 0
    %p72 = por %p70, %p71
    %p73 = scmp.ne.s32.totalorder %s65, %s67
    %p74 = scmp.eq.s32.totalorder %s15, 1
    %p75 = por %p73, %p74
    %p76 = scmp.ne.s32.totalorder %s67, %s68
    %p77 = scmp.eq.s32.totalorder %s15, 0
    %p78 = por %p76, %p77
    %p79 = scmp.ne.s32.totalorder %s67, %s68
    %p80 = scmp.eq.s32.totalorder %s16, 1
    %p81 = por %p79, %p80
    %p83 = scmp.ne.s32.totalorder %s68, %s82
    %p84 = scmp.eq.s32.totalorder %s16, 0
    %p85 = por %p83, %p84
    %s86 = ssub.s32 %s17, %s36
    %p87 = scmp.eq.s32.totalorder %s86, 0
    %s89 = sadd.s32 %s88, 1
    %s90 = scalar_select %p87, %s88, %s89
    %p93 = pneg %p87
    %p94 = scmp.eq.s32.totalorder %s10, 1
    %p95 = por %p93, %p94
    %p96 = scmp.ne.s32.totalorder %s88, %s91
    %p97 = scmp.eq.s32.totalorder %s10, 0
    %p98 = por %p96, %p97
    %p99 = scmp.ne.s32.totalorder %s88, %s91
    %p100 = scmp.eq.s32.totalorder %s15, 1
    %p101 = por %p99, %p100
    %p102 = scmp.ne.s32.totalorder %s91, %s92
    %p103 = scmp.eq.s32.totalorder %s15, 0
    %p104 = por %p102, %p103
    %p105 = scmp.ne.s32.totalorder %s91, %s92
    %p106 = scmp.eq.s32.totalorder %s16, 1
    %p107 = por %p105, %p106
    %p109 = scmp.ne.s32.totalorder %s92, %s108
    %p110 = scmp.eq.s32.totalorder %s16, 0
    %p111 = por %p109, %p110
    %s112 = ssub.s32 %s17, %s36
    %p113 = scmp.eq.s32.totalorder %s112, 0
    %s115 = sadd.s32 %s114, 1
    %s116 = scalar_select %p113, %s114, %s115
    %p119 = pneg %p113
    %p120 = scmp.eq.s32.totalorder %s10, 1
    %p121 = por %p119, %p120
    %p122 = scmp.ne.s32.totalorder %s114, %s117
    %p123 = scmp.eq.s32.totalorder %s10, 0
    %p124 = por %p122, %p123
    %p125 = scmp.ne.s32.totalorder %s114, %s117
    %p126 = scmp.eq.s32.totalorder %s15, 1
    %p127 = por %p125, %p126
    %p128 = scmp.ne.s32.totalorder %s117, %s118
    %p129 = scmp.eq.s32.totalorder %s15, 0
    %p130 = por %p128, %p129
    %p131 = scmp.ne.s32.totalorder %s117, %s118
    %p132 = scmp.eq.s32.totalorder %s16, 1
    %p133 = por %p131, %p132
    %p135 = scmp.ne.s32.totalorder %s118, %s134
    %p136 = scmp.eq.s32.totalorder %s16, 0
    %p137 = por %p135, %p136
    %s138 = ssub.s32 %s17, %s36
    %s139 = ssub.s32 %s18, %s32
    %s140 = sor.u32 %s138, %s139
    %p141 = scmp.eq.s32.totalorder %s140, 0
    %s143 = sadd.s32 %s142, 1
    %s144 = scalar_select %p141, %s142, %s143
    %p147 = pneg %p141
    %p148 = scmp.eq.s32.totalorder %s10, 1
    %p149 = por %p147, %p148
    %p150 = scmp.ne.s32.totalorder %s142, %s145
    %p151 = scmp.eq.s32.totalorder %s10, 0
    %p152 = por %p150, %p151
    %p153 = scmp.ne.s32.totalorder %s142, %s145
    %p154 = scmp.eq.s32.totalorder %s15, 1
    %p155 = por %p153, %p154
    %p156 = scmp.ne.s32.totalorder %s145, %s146
    %p157 = scmp.eq.s32.totalorder %s15, 0
    %p158 = por %p156, %p157
    %p159 = scmp.ne.s32.totalorder %s145, %s146
    %p160 = scmp.eq.s32.totalorder %s16, 1
    %p161 = por %p159, %p160
    %p163 = scmp.ne.s32.totalorder %s146, %s162
    %p164 = scmp.eq.s32.totalorder %s16, 0
    %p165 = por %p163, %p164
    %p166 = scmp.le.s32.totalorder 1, %s10
    %p167 = scmp.lt.s32.totalorder %s10, 3
    %p168 = pnand %p166, %p167
    %p169 = pneg %p168
    // Predicated region
    $region9: #{extract_cl_forward.5} parent=5 // pred_check
      _
    $region10: #{extract_cl_forward.5} parent=5 // pred_check_branch
      %171 = sbr.rel (%p168) target = $region12
    $region11: #{extract_cl_forward.5} parent=5 // pred_region
      %s172 = ssub.s32 %s10, 1
      // Predicated region
      $region13: #{extract_cl_forward.5} parent=11 // pred_check
        %p173 = pneg %p57
      $region14: #{extract_cl_forward.5} parent=11 // pred_check_branch
        %175 = sbr.rel (%p173) target = $region16
      $region15: #{extract_cl_forward.5} parent=11 // pred_region
        %s176 = smul.u32 16, %s21
        %p177 = scmp.lt.s32.totalorder %s176, 15
        %s178 = scalar_select %p177, %s176, 15
        %p179 = scmp.lt.s32.totalorder %s22, 0
        %s180 = scalar_select %p179, %s22, 0
        %s181 = sadd.s32 %s180, %s178
        %s182 = smul.addr %s181, 4
        %s183 = scalar_lea.vmem %s0, %s182
        %s184 = smul.u32 16, %s21
      $region16: #{extract_cl_forward.5} parent=11 // pred_fallthru
        _
      // Predicated region
      $region17: #{extract_cl_forward.5} parent=11 // pred_check
        %p185 = pneg %p78
      $region18: #{extract_cl_forward.5} parent=11 // pred_check_branch
        %187 = sbr.rel (%p185) target = $region20
      $region19: #{extract_cl_forward.5} parent=11 // pred_region
        _
      $region20: #{extract_cl_forward.5} parent=11 // pred_fallthru
        _
    $region12: #{extract_cl_forward.5} parent=5 // pred_fallthru
      _
    %p188 = scmp.lt.s32.totalorder %s10, 2
    // Predicated region
    $region21: #{extract_cl_forward.5} parent=5 // pred_check
      %p189 = pneg %p188
    $region22: #{extract_cl_forward.5} parent=5 // pred_check_branch
      %191 = sbr.rel (%p189) target = $region24
    $region23: #{extract_cl_forward.5} parent=5 // pred_region
      // Predicated region
      $region25: #{extract_cl_forward.5} parent=23 // pred_check
        %p192 = pneg %p98
      $region26: #{extract_cl_forward.5} parent=23 // pred_check_branch
        %194 = sbr.rel (%p192) target = $region28
      $region27: #{extract_cl_forward.5} parent=23 // pred_region
        %p195 = scmp.lt.s32.totalorder %s17, 1
        %s196 = scalar_select %p195, %s17, 1
        %s197 = smul.addr %s196, 32
        %s198 = smul.addr %s197, 8
        %s199 = scalar_lea.vmem %s2, %s198
      $region28: #{extract_cl_forward.5} parent=23 // pred_fallthru
        _
      // Predicated region
      $region29: #{extract_cl_forward.5} parent=23 // pred_check
        %p200 = pneg %p124
      $region30: #{extract_cl_forward.5} parent=23 // pred_check_branch
        %202 = sbr.rel (%p200) target = $region32
      $region31: #{extract_cl_forward.5} parent=23 // pred_region
        %p203 = scmp.lt.s32.totalorder %s17, 1
        %s204 = scalar_select %p203, %s17, 1
        %s205 = smul.addr %s204, 2
        %s206 = scalar_lea.vmem %s3, %s205
      $region32: #{extract_cl_forward.5} parent=23 // pred_fallthru
        _
    $region24: #{extract_cl_forward.5} parent=5 // pred_fallthru
      _
    %p207 = scmp.le.s32.totalorder 1, %s10
    %p208 = scmp.lt.s32.totalorder %s10, 3
    %p209 = pnand %p207, %p208
    %p210 = pneg %p209
    // Predicated region
    $region33: #{extract_cl_forward.5} parent=5 // pred_check
      _
    $region34: #{extract_cl_forward.5} parent=5 // pred_check_branch
      %212 = sbr.rel (%p209) target = $region36
    $region35: #{extract_cl_forward.5} parent=5 // pred_region
      %s213 = ssub.s32 %s10, 1
      %s214 = smul.u32 16, %s21
      %p215 = scmp.lt.s32.totalorder %s214, 15
      %s216 = scalar_select %p215, %s214, 15
      %p217 = scmp.lt.s32.totalorder %s22, 0
      %s218 = scalar_select %p217, %s22, 0
      %s219 = sadd.s32 %s218, %s216
      %s220 = smul.addr %s219, 4
      %s221 = scalar_lea.vmem %s0, %s220
      %p222 = pneg %p57
      %p223 = pneg %p54
      %p224 = pneg %p78
      %p225 = pneg %p75
      %p226 = scmp.lt.s32.totalorder %s20, 1
      %s227 = scalar_select %p226, %s20, 1
      %s228 = smul.addr %s227, 32
      %s229 = smul.addr %s228, 8
      %s230 = scalar_lea.vmem %s2, %s229
      %p231 = pneg %p104
      %p232 = pneg %p101
      %p233 = scmp.lt.s32.totalorder %s20, 1
      %s234 = scalar_select %p233, %s20, 1
      %s235 = smul.addr %s234, 2
      %s236 = scalar_lea.vmem %s3, %s235
      %p237 = pneg %p130
      %p238 = pneg %p127
      %p239 = pneg %p158
      %p240 = pneg %p155
      %s241 = smul.u32 16, %s21
      %p242 = scmp.lt.s32.totalorder %s20, 1
      %s243 = scalar_select %p242, %s20, 1
      %p244 = scmp.lt.s32.totalorder %s241, 15
      %s245 = scalar_select %p244, %s241, 15
      %s246 = smul.addr %s245, 2
      %s247 = smul.addr %s243, 32
      %s248 = sadd.s32 %s246, %s247
      %s249 = smul.addr %s248, 8
      %s250 = scalar_lea.vmem %s4, %s249
      %s251 = smul.u32 16, %s21
      %p252 = scmp.lt.s32.totalorder %s251, 15
      %s253 = scalar_select %p252, %s251, 15
      %p254 = scmp.lt.s32.totalorder %s22, 0
      %s255 = scalar_select %p254, %s22, 0
      %s256 = sadd.s32 %s255, %s253
      %s257 = smul.addr %s256, 4
      %s258 = scalar_lea.vmem %s0, %s257
      %s259 = smul.u32 16, %s21
      %p260 = scmp.lt.s32.totalorder %s20, 1
      %s261 = scalar_select %p260, %s20, 1
      %s262 = smul.addr %s261, 32
      %s263 = smul.addr %s262, 8
      %s264 = scalar_lea.vmem %s2, %s263
      %p265 = scmp.lt.s32.totalorder %s20, 1
      %s266 = scalar_select %p265, %s20, 1
      %s267 = smul.addr %s266, 2
      %s268 = scalar_lea.vmem %s3, %s267
      %s269 = smul.u32 16, %s21
      %p270 = scmp.lt.s32.totalorder %s20, 1
      %s271 = scalar_select %p270, %s20, 1
      %p272 = scmp.lt.s32.totalorder %s269, 15
      %s273 = scalar_select %p272, %s269, 15
      %s274 = smul.addr %s273, 2
      %s275 = smul.addr %s271, 32
      %s276 = sadd.s32 %s274, %s275
      %s277 = smul.addr %s276, 8
      %s278 = scalar_lea.vmem %s4, %s277
      %s279 = smul.u32 16, %s21
      %p281 = scmp.eq.s32.totalorder %s20, 0
      %p282 = scmp.eq.s32.totalorder %s21, 0
      %p283 = pnand %p281, %p282
      %p284 = pneg %p283
      %p285 = scmp.eq.s32.totalorder %s22, 0
      %p286 = pnand %p284, %p285
      %p287 = pneg %p286
      // Predicated region
      $region37: #{extract_cl_forward.5} parent=35 // pred_check
        _
      $region38: #{extract_cl_forward.5} parent=35 // pred_check_branch
        %289 = sbr.rel (%p286) target = $region40
      $region39: #{extract_cl_forward.5} parent=35 // pred_region
        %v290 = vld [vmem:[%s1] sm:$0xff]
        %v291 = vld [vmem:[%s1 + $0x8] sm:$0xff]
        %v292 = vld [vmem:[%s1 + $0x10] sm:$0xff]
        %v293 = vld [vmem:[%s1 + $0x18] sm:$0xff]
        %v294 = vld [vmem:[%s1 + $0x20] sm:$0xff]
        %v295 = vld [vmem:[%s1 + $0x28] sm:$0xff]
        %v296 = vld [vmem:[%s1 + $0x30] sm:$0xff]
        %v297 = vld [vmem:[%s1 + $0x38] sm:$0xff]
        %v298 = vld [vmem:[%s1 + $0x40] sm:$0xff]
        %v299 = vld [vmem:[%s1 + $0x48] sm:$0xff]
        %v300 = vld [vmem:[%s1 + $0x50] sm:$0xff]
        %v301 = vld [vmem:[%s1 + $0x58] sm:$0xff]
        %v302 = vld [vmem:[%s1 + $0x60] sm:$0xff]
        %v303 = vld [vmem:[%s1 + $0x68] sm:$0xff]
        %v304 = vld [vmem:[%s1 + $0x70] sm:$0xff]
        %v305 = vld [vmem:[%s1 + $0x78] sm:$0xff]
        %v306 = vld [vmem:[%s1 + $0x80] sm:$0xff]
        %v307 = vld [vmem:[%s1 + $0x88] sm:$0xff]
        %v308 = vld [vmem:[%s1 + $0x90] sm:$0xff]
        %v309 = vld [vmem:[%s1 + $0x98] sm:$0xff]
        %v310 = vld [vmem:[%s1 + $0xa0] sm:$0xff]
        %v311 = vld [vmem:[%s1 + $0xa8] sm:$0xff]
        %v312 = vld [vmem:[%s1 + $0xb0] sm:$0xff]
        %v313 = vld [vmem:[%s1 + $0xb8] sm:$0xff]
        %v314 = vld [vmem:[%s1 + $0xc0] sm:$0xff]
        %v315 = vld [vmem:[%s1 + $0xc8] sm:$0xff]
        %v316 = vld [vmem:[%s1 + $0xd0] sm:$0xff]
        %v317 = vld [vmem:[%s1 + $0xd8] sm:$0xff]
        %v318 = vld [vmem:[%s1 + $0xe0] sm:$0xff]
        %v319 = vld [vmem:[%s1 + $0xe8] sm:$0xff]
        %v320 = vld [vmem:[%s1 + $0xf0] sm:$0xff]
        %v321 = vld [vmem:[%s1 + $0xf8] sm:$0xff]
        %322 = vst [vmem:[#allocation3] sm:$0xff] %v290
        %323 = vst [vmem:[#allocation3 + $0x8] sm:$0xff] %v291
        %324 = vst [vmem:[#allocation3 + $0x10] sm:$0xff] %v292
        %325 = vst [vmem:[#allocation3 + $0x18] sm:$0xff] %v293
        %326 = vst [vmem:[#allocation3 + $0x20] sm:$0xff] %v294
        %327 = vst [vmem:[#allocation3 + $0x28] sm:$0xff] %v295
        %328 = vst [vmem:[#allocation3 + $0x30] sm:$0xff] %v296
        %329 = vst [vmem:[#allocation3 + $0x38] sm:$0xff] %v297
        %330 = vst [vmem:[#allocation3 + $0x40] sm:$0xff] %v298
        %331 = vst [vmem:[#allocation3 + $0x48] sm:$0xff] %v299
        %332 = vst [vmem:[#allocation3 + $0x50] sm:$0xff] %v300
        %333 = vst [vmem:[#allocation3 + $0x58] sm:$0xff] %v301
        %334 = vst [vmem:[#allocation3 + $0x60] sm:$0xff] %v302
        %335 = vst [vmem:[#allocation3 + $0x68] sm:$0xff] %v303
        %336 = vst [vmem:[#allocation3 + $0x70] sm:$0xff] %v304
        %337 = vst [vmem:[#allocation3 + $0x78] sm:$0xff] %v305
        %338 = vst [vmem:[#allocation3 + $0x80] sm:$0xff] %v306
        %339 = vst [vmem:[#allocation3 + $0x88] sm:$0xff] %v307
        %340 = vst [vmem:[#allocation3 + $0x90] sm:$0xff] %v308
        %341 = vst [vmem:[#allocation3 + $0x98] sm:$0xff] %v309
        %342 = vst [vmem:[#allocation3 + $0xa0] sm:$0xff] %v310
        %343 = vst [vmem:[#allocation3 + $0xa8] sm:$0xff] %v311
        %344 = vst [vmem:[#allocation3 + $0xb0] sm:$0xff] %v312
        %345 = vst [vmem:[#allocation3 + $0xb8] sm:$0xff] %v313
        %346 = vst [vmem:[#allocation3 + $0xc0] sm:$0xff] %v314
        %347 = vst [vmem:[#allocation3 + $0xc8] sm:$0xff] %v315
        %348 = vst [vmem:[#allocation3 + $0xd0] sm:$0xff] %v316
        %349 = vst [vmem:[#allocation3 + $0xd8] sm:$0xff] %v317
        %350 = vst [vmem:[#allocation3 + $0xe0] sm:$0xff] %v318
        %351 = vst [vmem:[#allocation3 + $0xe8] sm:$0xff] %v319
        %352 = vst [vmem:[#allocation3 + $0xf0] sm:$0xff] %v320
        %353 = vst [vmem:[#allocation3 + $0xf8] sm:$0xff] %v321
      $region40: #{extract_cl_forward.5} parent=35 // pred_fallthru
        _
      %p354 = pnand %p282, %p285
      %p355 = pneg %p354
      // Predicated region
      $region41: #{extract_cl_forward.5} parent=35 // pred_check
        _
      $region42: #{extract_cl_forward.5} parent=35 // pred_check_branch
        %357 = sbr.rel (%p354) target = $region44
      $region43: #{extract_cl_forward.5} parent=35 // pred_region
        %v358 = vld [vmem:[#allocation3] sm:$0xff]
        %v359 = vld [vmem:[#allocation3 + $0x10] sm:$0xff]
        %v360 = vld [vmem:[#allocation3 + $0x20] sm:$0xff]
        %v361 = vld [vmem:[#allocation3 + $0x30] sm:$0xff]
        %v362 = vld [vmem:[#allocation3 + $0x40] sm:$0xff]
        %v363 = vld [vmem:[#allocation3 + $0x50] sm:$0xff]
        %v364 = vld [vmem:[#allocation3 + $0x60] sm:$0xff]
        %v365 = vld [vmem:[#allocation3 + $0x70] sm:$0xff]
        %v366 = vld [vmem:[#allocation3 + $0x80] sm:$0xff]
        %v367 = vld [vmem:[#allocation3 + $0x90] sm:$0xff]
        %v368 = vld [vmem:[#allocation3 + $0xa0] sm:$0xff]
        %v369 = vld [vmem:[#allocation3 + $0xb0] sm:$0xff]
        %v370 = vld [vmem:[#allocation3 + $0xc0] sm:$0xff]
        %v371 = vld [vmem:[#allocation3 + $0xd0] sm:$0xff]
        %v372 = vld [vmem:[#allocation3 + $0xe0] sm:$0xff]
        %v373 = vld [vmem:[#allocation3 + $0xf0] sm:$0xff]
        %v374 = vld [vmem:[%s264] sm:$0xff]
        %v375 = vld [vmem:[%s264 + $0x8] sm:$0xff]
        %v376 = vld [vmem:[%s264 + $0x10] sm:$0xff]
        %v377 = vld [vmem:[%s264 + $0x18] sm:$0xff]
        %v378 = vld [vmem:[%s264 + $0x20] sm:$0xff]
        %v379 = vld [vmem:[%s264 + $0x28] sm:$0xff]
        %v380 = vld [vmem:[%s264 + $0x30] sm:$0xff]
        %v381 = vld [vmem:[%s264 + $0x38] sm:$0xff]
        %v382 = vld [vmem:[%s264 + $0x40] sm:$0xff]
        %v383 = vld [vmem:[%s264 + $0x48] sm:$0xff]
        %v384 = vld [vmem:[%s264 + $0x50] sm:$0xff]
        %v385 = vld [vmem:[%s264 + $0x58] sm:$0xff]
        %v386 = vld [vmem:[%s264 + $0x60] sm:$0xff]
        %v387 = vld [vmem:[%s264 + $0x68] sm:$0xff]
        %v388 = vld [vmem:[%s264 + $0x70] sm:$0xff]
        %v389 = vld [vmem:[%s264 + $0x78] sm:$0xff]
        %390 = vmatprep.subr.mxu0 0.0
        %391 = vmatpush1.msra.mxu0 %v374
        %392 = vmatprep.subr.mxu0 0.0
        %393 = vmatpush1.msra.mxu0 %v375
        %394 = vmatprep.subr.mxu0 0.0
        %395 = vmatpush1.msra.mxu0 %v376
        %396 = vmatprep.subr.mxu0 0.0
        %397 = vmatpush1.msra.mxu0 %v377
        %398 = vmatprep.subr.mxu0 0.0
        %399 = vmatpush1.msra.mxu0 %v378
        %400 = vmatprep.subr.mxu0 0.0
        %401 = vmatpush1.msra.mxu0 %v379
        %402 = vmatprep.subr.mxu0 0.0
        %403 = vmatpush1.msra.mxu0 %v380
        %404 = vmatprep.subr.mxu0 0.0
        %405 = vmatpush1.msra.mxu0 %v381
        %406 = vmatprep.subr.mxu0 0.0
        %407 = vmatpush1.msra.mxu0 %v382
        %408 = vmatprep.subr.mxu0 0.0
        %409 = vmatpush1.msra.mxu0 %v383
        %410 = vmatprep.subr.mxu0 0.0
        %411 = vmatpush1.msra.mxu0 %v384
        %412 = vmatprep.subr.mxu0 0.0
        %413 = vmatpush1.msra.mxu0 %v385
        %414 = vmatprep.subr.mxu0 0.0
        %415 = vmatpush1.msra.mxu0 %v386
        %416 = vmatprep.subr.mxu0 0.0
        %417 = vmatpush1.msra.mxu0 %v387
        %418 = vmatprep.subr.mxu0 0.0
        %419 = vmatpush1.msra.mxu0 %v388
        %420 = vmatprep.subr.mxu0 0.0
        %421 = vmatpush1.msra.mxu0 %v389
        %422 = vmatprep.subr.mxu0 0.0
        %423 = vmatpush1.msra.mxu0 0.0
        %424 = vmatprep.subr.mxu0 0.0
        %425 = vmatpush1.msra.mxu0 0.0
        %426 = vmatprep.subr.mxu0 0.0
        %427 = vmatpush1.msra.mxu0 0.0
        %428 = vmatprep.subr.mxu0 0.0
        %429 = vmatpush1.msra.mxu0 0.0
        %430 = vmatprep.subr.mxu0 0.0
        %431 = vmatpush1.msra.mxu0 0.0
        %432 = vmatprep.subr.mxu0 0.0
        %433 = vmatpush1.msra.mxu0 0.0
        %434 = vmatprep.subr.mxu0 0.0
        %435 = vmatpush1.msra.mxu0 0.0
        %436 = vmatprep.subr.mxu0 0.0
        %437 = vmatpush1.msra.mxu0 0.0
        %438 = vmatprep.subr.mxu0 0.0
        %439 = vmatpush1.msra.mxu0 0.0
        %440 = vmatprep.subr.mxu0 0.0
        %441 = vmatpush1.msra.mxu0 0.0
        %442 = vmatprep.subr.mxu0 0.0
        %443 = vmatpush1.msra.mxu0 0.0
        %444 = vmatprep.subr.mxu0 0.0
        %445 = vmatpush1.msra.mxu0 0.0
        %446 = vmatprep.subr.mxu0 0.0
        %447 = vmatpush1.msra.mxu0 0.0
        %448 = vmatprep.subr.mxu0 0.0
        %449 = vmatpush1.msra.mxu0 0.0
        %450 = vmatprep.subr.mxu0 0.0
        %451 = vmatpush1.msra.mxu0 0.0
        %452 = vmatprep.subr.mxu0 0.0
        %453 = vmatpush1.msra.mxu0 0.0
        %454 = vmatprep.mubr.f32.mxu0 0.0
        %455 = vmatmul.mubr.f32.gmra.mrb[0].mxu0 %v358
        %v456 = vpop.f32.mrb[0].mxu0
        %v457 = vadd.f32 0.0, %v456
        %v458 = vpop.f32.mrb[0].mxu0
        %459 = vmatprep.mubr.f32.mxu0 0.0
        %460 = vmatmul.mubr.f32.gmra.mrb[0].mxu0 %v359
        %v461 = vpop.f32.mrb[0].mxu0
        %v462 = vadd.f32 0.0, %v461
        %v463 = vpop.f32.mrb[0].mxu0
        %464 = vmatprep.mubr.f32.mxu0 0.0
        %465 = vmatmul.mubr.f32.gmra.mrb[0].mxu0 %v360
        %v466 = vpop.f32.mrb[0].mxu0
        %v467 = vadd.f32 0.0, %v466
        %v468 = vpop.f32.mrb[0].mxu0
        %469 = vmatprep.mubr.f32.mxu0 0.0
        %470 = vmatmul.mubr.f32.gmra.mrb[0].mxu0 %v361
        %v471 = vpop.f32.mrb[0].mxu0
        %v472 = vadd.f32 0.0, %v471
        %v473 = vpop.f32.mrb[0].mxu0
        %474 = vmatprep.mubr.f32.mxu0 0.0
        %475 = vmatmul.mubr.f32.gmra.mrb[0].mxu0 %v362
        %v476 = vpop.f32.mrb[0].mxu0
        %v477 = vadd.f32 0.0, %v476
        %v478 = vpop.f32.mrb[0].mxu0
        %479 = vmatprep.mubr.f32.mxu0 0.0
        %480 = vmatmul.mubr.f32.gmra.mrb[0].mxu0 %v363
        %v481 = vpop.f32.mrb[0].mxu0
        %v482 = vadd.f32 0.0, %v481
        %v483 = vpop.f32.mrb[0].mxu0
        %484 = vmatprep.mubr.f32.mxu0 0.0
        %485 = vmatmul.mubr.f32.gmra.mrb[0].mxu0 %v364
        %v486 = vpop.f32.mrb[0].mxu0
        %v487 = vadd.f32 0.0, %v486
        %v488 = vpop.f32.mrb[0].mxu0
        %489 = vmatprep.mubr.f32.mxu0 0.0
        %490 = vmatmul.mubr.f32.gmra.mrb[0].mxu0 %v365
        %v491 = vpop.f32.mrb[0].mxu0
        %v492 = vadd.f32 0.0, %v491
        %v493 = vpop.f32.mrb[0].mxu0
        %494 = vmatprep.mubr.f32.mxu0 0.0
        %495 = vmatmul.mubr.f32.gmra.mrb[0].mxu0 %v366
        %v496 = vpop.f32.mrb[0].mxu0
        %v497 = vadd.f32 0.0, %v496
        %v498 = vpop.f32.mrb[0].mxu0
        %499 = vmatprep.mubr.f32.mxu0 0.0
        %500 = vmatmul.mubr.f32.gmra.mrb[0].mxu0 %v367
        %v501 = vpop.f32.mrb[0].mxu0
        %v502 = vadd.f32 0.0, %v501
        %v503 = vpop.f32.mrb[0].mxu0
        %504 = vmatprep.mubr.f32.mxu0 0.0
        %505 = vmatmul.mubr.f32.gmra.mrb[0].mxu0 %v368
        %v506 = vpop.f32.mrb[0].mxu0
        %v507 = vadd.f32 0.0, %v506
        %v508 = vpop.f32.mrb[0].mxu0
        %509 = vmatprep.mubr.f32.mxu0 0.0
        %510 = vmatmul.mubr.f32.gmra.mrb[0].mxu0 %v369
        %v511 = vpop.f32.mrb[0].mxu0
        %v512 = vadd.f32 0.0, %v511
        %v513 = vpop.f32.mrb[0].mxu0
        %514 = vmatprep.mubr.f32.mxu0 0.0
        %515 = vmatmul.mubr.f32.gmra.mrb[0].mxu0 %v370
        %v516 = vpop.f32.mrb[0].mxu0
        %v517 = vadd.f32 0.0, %v516
        %v518 = vpop.f32.mrb[0].mxu0
        %519 = vmatprep.mubr.f32.mxu0 0.0
        %520 = vmatmul.mubr.f32.gmra.mrb[0].mxu0 %v371
        %v521 = vpop.f32.mrb[0].mxu0
        %v522 = vadd.f32 0.0, %v521
        %v523 = vpop.f32.mrb[0].mxu0
        %524 = vmatprep.mubr.f32.mxu0 0.0
        %525 = vmatmul.mubr.f32.gmra.mrb[0].mxu0 %v372
        %v526 = vpop.f32.mrb[0].mxu0
        %v527 = vadd.f32 0.0, %v526
        %v528 = vpop.f32.mrb[0].mxu0
        %529 = vmatprep.mubr.f32.mxu0 0.0
        %530 = vmatmul.mubr.f32.gmra.mrb[0].mxu0 %v373
        %v531 = vpop.f32.mrb[0].mxu0
        %v532 = vadd.f32 0.0, %v531
        %v533 = vpop.f32.mrb[0].mxu0
        %534 = vdwg.mxu0
        %v535 = vpack.c.bf16 %v462, %v457
        %v536 = vpack.c.bf16 %v472, %v467
        %v537 = vpack.c.bf16 %v482, %v477
        %v538 = vpack.c.bf16 %v492, %v487
        %v539 = vpack.c.bf16 %v502, %v497
        %v540 = vpack.c.bf16 %v512, %v507
        %v541 = vpack.c.bf16 %v522, %v517
        %v542 = vpack.c.bf16 %v532, %v527
        %543 = vst [vmem:[#allocation4] sm:$0xff] %v535
        %544 = vst [vmem:[#allocation4 + $0x10] sm:$0xff] %v536
        %545 = vst [vmem:[#allocation4 + $0x20] sm:$0xff] %v537
        %546 = vst [vmem:[#allocation4 + $0x30] sm:$0xff] %v538
        %547 = vst [vmem:[#allocation4 + $0x40] sm:$0xff] %v539
        %548 = vst [vmem:[#allocation4 + $0x50] sm:$0xff] %v540
        %549 = vst [vmem:[#allocation4 + $0x60] sm:$0xff] %v541
        %550 = vst [vmem:[#allocation4 + $0x70] sm:$0xff] %v542
        %v551 = vld [vmem:[#allocation3 + $0x8] sm:$0xff]
        %v552 = vld [vmem:[#allocation3 + $0x18] sm:$0xff]
        %v553 = vld [vmem:[#allocation3 + $0x28] sm:$0xff]
        %v554 = vld [vmem:[#allocation3 + $0x38] sm:$0xff]
        %v555 = vld [vmem:[#allocation3 + $0x48] sm:$0xff]
        %v556 = vld [vmem:[#allocation3 + $0x58] sm:$0xff]
        %v557 = vld [vmem:[#allocation3 + $0x68] sm:$0xff]
        %v558 = vld [vmem:[#allocation3 + $0x78] sm:$0xff]
        %v559 = vld [vmem:[#allocation3 + $0x88] sm:$0xff]
        %v560 = vld [vmem:[#allocation3 + $0x98] sm:$0xff]
        %v561 = vld [vmem:[#allocation3 + $0xa8] sm:$0xff]
        %v562 = vld [vmem:[#allocation3 + $0xb8] sm:$0xff]
        %v563 = vld [vmem:[#allocation3 + $0xc8] sm:$0xff]
        %v564 = vld [vmem:[#allocation3 + $0xd8] sm:$0xff]
        %v565 = vld [vmem:[#allocation3 + $0xe8] sm:$0xff]
        %v566 = vld [vmem:[#allocation3 + $0xf8] sm:$0xff]
        %s567 = scalar_lea.vmem %s264, 128
        %v568 = vld [vmem:[%s567] sm:$0xff]
        %v569 = vld [vmem:[%s567 + $0x8] sm:$0xff]
        %v570 = vld [vmem:[%s567 + $0x10] sm:$0xff]
        %v571 = vld [vmem:[%s567 + $0x18] sm:$0xff]
        %v572 = vld [vmem:[%s567 + $0x20] sm:$0xff]
        %v573 = vld [vmem:[%s567 + $0x28] sm:$0xff]
        %v574 = vld [vmem:[%s567 + $0x30] sm:$0xff]
        %v575 = vld [vmem:[%s567 + $0x38] sm:$0xff]
        %v576 = vld [vmem:[%s567 + $0x40] sm:$0xff]
        %v577 = vld [vmem:[%s567 + $0x48] sm:$0xff]
        %v578 = vld [vmem:[%s567 + $0x50] sm:$0xff]
        %v579 = vld [vmem:[%s567 + $0x58] sm:$0xff]
        %v580 = vld [vmem:[%s567 + $0x60] sm:$0xff]
        %v581 = vld [vmem:[%s567 + $0x68] sm:$0xff]
        %v582 = vld [vmem:[%s567 + $0x70] sm:$0xff]
        %v583 = vld [vmem:[%s567 + $0x78] sm:$0xff]
        %584 = vmatprep.subr.mxu0 0.0
        %585 = vmatpush1.msra.mxu0 %v568
        %586 = vmatprep.subr.mxu0 0.0
        %587 = vmatpush1.msra.mxu0 %v569
        %588 = vmatprep.subr.mxu0 0.0
        %589 = vmatpush1.msra.mxu0 %v570
        %590 = vmatprep.subr.mxu0 0.0
        %591 = vmatpush1.msra.mxu0 %v571
        %592 = vmatprep.subr.mxu0 0.0
        %593 = vmatpush1.msra.mxu0 %v572
        %594 = vmatprep.subr.mxu0 0.0
        %595 = vmatpush1.msra.mxu0 %v573
        %596 = vmatprep.subr.mxu0 0.0
        %597 = vmatpush1.msra.mxu0 %v574
        %598 = vmatprep.subr.mxu0 0.0
        %599 = vmatpush1.msra.mxu0 %v575
        %600 = vmatprep.subr.mxu0 0.0
        %601 = vmatpush1.msra.mxu0 %v576
        %602 = vmatprep.subr.mxu0 0.0
        %603 = vmatpush1.msra.mxu0 %v577
        %604 = vmatprep.subr.mxu0 0.0
        %605 = vmatpush1.msra.mxu0 %v578
        %606 = vmatprep.subr.mxu0 0.0
        %607 = vmatpush1.msra.mxu0 %v579
        %608 = vmatprep.subr.mxu0 0.0
        %609 = vmatpush1.msra.mxu0 %v580
        %610 = vmatprep.subr.mxu0 0.0
        %611 = vmatpush1.msra.mxu0 %v581
        %612 = vmatprep.subr.mxu0 0.0
        %613 = vmatpush1.msra.mxu0 %v582
        %614 = vmatprep.subr.mxu0 0.0
        %615 = vmatpush1.msra.mxu0 %v583
        %616 = vmatprep.subr.mxu0 0.0
        %617 = vmatpush1.msra.mxu0 0.0
        %618 = vmatprep.subr.mxu0 0.0
        %619 = vmatpush1.msra.mxu0 0.0
        %620 = vmatprep.subr.mxu0 0.0
        %621 = vmatpush1.msra.mxu0 0.0
        %622 = vmatprep.subr.mxu0 0.0
        %623 = vmatpush1.msra.mxu0 0.0
        %624 = vmatprep.subr.mxu0 0.0
        %625 = vmatpush1.msra.mxu0 0.0
        %626 = vmatprep.subr.mxu0 0.0
        %627 = vmatpush1.msra.mxu0 0.0
        %628 = vmatprep.subr.mxu0 0.0
        %629 = vmatpush1.msra.mxu0 0.0
        %630 = vmatprep.subr.mxu0 0.0
        %631 = vmatpush1.msra.mxu0 0.0
        %632 = vmatprep.subr.mxu0 0.0
        %633 = vmatpush1.msra.mxu0 0.0
        %634 = vmatprep.subr.mxu0 0.0
        %635 = vmatpush1.msra.mxu0 0.0
        %636 = vmatprep.subr.mxu0 0.0
        %637 = vmatpush1.msra.mxu0 0.0
        %638 = vmatprep.subr.mxu0 0.0
        %639 = vmatpush1.msra.mxu0 0.0
        %640 = vmatprep.subr.mxu0 0.0
        %641 = vmatpush1.msra.mxu0 0.0
        %642 = vmatprep.subr.mxu0 0.0
        %643 = vmatpush1.msra.mxu0 0.0
        %644 = vmatprep.subr.mxu0 0.0
        %645 = vmatpush1.msra.mxu0 0.0
        %646 = vmatprep.subr.mxu0 0.0
        %647 = vmatpush1.msra.mxu0 0.0
        %648 = vmatprep.mubr.f32.mxu0 0.0
        %649 = vmatmul.mubr.f32.gmra.mrb[0].mxu0 %v551
        %v650 = vpop.f32.mrb[0].mxu0
        %v651 = vadd.f32 0.0, %v650
        %v652 = vpop.f32.mrb[0].mxu0
        %653 = vmatprep.mubr.f32.mxu0 0.0
        %654 = vmatmul.mubr.f32.gmra.mrb[0].mxu0 %v552
        %v655 = vpop.f32.mrb[0].mxu0
        %v656 = vadd.f32 0.0, %v655
        %v657 = vpop.f32.mrb[0].mxu0
        %658 = vmatprep.mubr.f32.mxu0 0.0
        %659 = vmatmul.mubr.f32.gmra.mrb[0].mxu0 %v553
        %v660 = vpop.f32.mrb[0].mxu0
        %v661 = vadd.f32 0.0, %v660
        %v662 = vpop.f32.mrb[0].mxu0
        %663 = vmatprep.mubr.f32.mxu0 0.0
        %664 = vmatmul.mubr.f32.gmra.mrb[0].mxu0 %v554
        %v665 = vpop.f32.mrb[0].mxu0
        %v666 = vadd.f32 0.0, %v665
        %v667 = vpop.f32.mrb[0].mxu0
        %668 = vmatprep.mubr.f32.mxu0 0.0
        %669 = vmatmul.mubr.f32.gmra.mrb[0].mxu0 %v555
        %v670 = vpop.f32.mrb[0].mxu0
        %v671 = vadd.f32 0.0, %v670
        %v672 = vpop.f32.mrb[0].mxu0
        %673 = vmatprep.mubr.f32.mxu0 0.0
        %674 = vmatmul.mubr.f32.gmra.mrb[0].mxu0 %v556
        %v675 = vpop.f32.mrb[0].mxu0
        %v676 = vadd.f32 0.0, %v675
        %v677 = vpop.f32.mrb[0].mxu0
        %678 = vmatprep.mubr.f32.mxu0 0.0
        %679 = vmatmul.mubr.f32.gmra.mrb[0].mxu0 %v557
        %v680 = vpop.f32.mrb[0].mxu0
        %v681 = vadd.f32 0.0, %v680
        %v682 = vpop.f32.mrb[0].mxu0
        %683 = vmatprep.mubr.f32.mxu0 0.0
        %684 = vmatmul.mubr.f32.gmra.mrb[0].mxu0 %v558
        %v685 = vpop.f32.mrb[0].mxu0
        %v686 = vadd.f32 0.0, %v685
        %v687 = vpop.f32.mrb[0].mxu0
        %688 = vmatprep.mubr.f32.mxu0 0.0
        %689 = vmatmul.mubr.f32.gmra.mrb[0].mxu0 %v559
        %v690 = vpop.f32.mrb[0].mxu0
        %v691 = vadd.f32 0.0, %v690
        %v692 = vpop.f32.mrb[0].mxu0
        %693 = vmatprep.mubr.f32.mxu0 0.0
        %694 = vmatmul.mubr.f32.gmra.mrb[0].mxu0 %v560
        %v695 = vpop.f32.mrb[0].mxu0
        %v696 = vadd.f32 0.0, %v695
        %v697 = vpop.f32.mrb[0].mxu0
        %698 = vmatprep.mubr.f32.mxu0 0.0
        %699 = vmatmul.mubr.f32.gmra.mrb[0].mxu0 %v561
        %v700 = vpop.f32.mrb[0].mxu0
        %v701 = vadd.f32 0.0, %v700
        %v702 = vpop.f32.mrb[0].mxu0
        %703 = vmatprep.mubr.f32.mxu0 0.0
        %704 = vmatmul.mubr.f32.gmra.mrb[0].mxu0 %v562
        %v705 = vpop.f32.mrb[0].mxu0
        %v706 = vadd.f32 0.0, %v705
        %v707 = vpop.f32.mrb[0].mxu0
        %708 = vmatprep.mubr.f32.mxu0 0.0
        %709 = vmatmul.mubr.f32.gmra.mrb[0].mxu0 %v563
        %v710 = vpop.f32.mrb[0].mxu0
        %v711 = vadd.f32 0.0, %v710
        %v712 = vpop.f32.mrb[0].mxu0
        %713 = vmatprep.mubr.f32.mxu0 0.0
        %714 = vmatmul.mubr.f32.gmra.mrb[0].mxu0 %v564
        %v715 = vpop.f32.mrb[0].mxu0
        %v716 = vadd.f32 0.0, %v715
        %v717 = vpop.f32.mrb[0].mxu0
        %718 = vmatprep.mubr.f32.mxu0 0.0
        %719 = vmatmul.mubr.f32.gmra.mrb[0].mxu0 %v565
        %v720 = vpop.f32.mrb[0].mxu0
        %v721 = vadd.f32 0.0, %v720
        %v722 = vpop.f32.mrb[0].mxu0
        %723 = vmatprep.mubr.f32.mxu0 0.0
        %724 = vmatmul.mubr.f32.gmra.mrb[0].mxu0 %v566
        %v725 = vpop.f32.mrb[0].mxu0
        %v726 = vadd.f32 0.0, %v725
        %v727 = vpop.f32.mrb[0].mxu0
        %728 = vdwg.mxu0
        %v729 = vpack.c.bf16 %v656, %v651
        %v730 = vpack.c.bf16 %v666, %v661
        %v731 = vpack.c.bf16 %v676, %v671
        %v732 = vpack.c.bf16 %v686, %v681
        %v733 = vpack.c.bf16 %v696, %v691
        %v734 = vpack.c.bf16 %v706, %v701
        %v735 = vpack.c.bf16 %v716, %v711
        %v736 = vpack.c.bf16 %v726, %v721
        %737 = vst [vmem:[#allocation4 + $0x8] sm:$0xff] %v729
        %738 = vst [vmem:[#allocation4 + $0x18] sm:$0xff] %v730
        %739 = vst [vmem:[#allocation4 + $0x28] sm:$0xff] %v731
        %740 = vst [vmem:[#allocation4 + $0x38] sm:$0xff] %v732
        %741 = vst [vmem:[#allocation4 + $0x48] sm:$0xff] %v733
        %742 = vst [vmem:[#allocation4 + $0x58] sm:$0xff] %v734
        %743 = vst [vmem:[#allocation4 + $0x68] sm:$0xff] %v735
        %744 = vst [vmem:[#allocation4 + $0x78] sm:$0xff] %v736
      $region44: #{extract_cl_forward.5} parent=35 // pred_fallthru
        _
      // Predicated region
      $region45: #{extract_cl_forward.5} parent=35 // pred_check
        %p745 = pneg %p285
      $region46: #{extract_cl_forward.5} parent=35 // pred_check_branch
        %747 = sbr.rel (%p745) target = $region48
      $region47: #{extract_cl_forward.5} parent=35 // pred_region
        %748 = vst [vmem:[#allocation2] sm:$0xff] 0.0
        %749 = vst [vmem:[#allocation2 + $0x8] sm:$0xff] 0.0
        %750 = vst [vmem:[#allocation2 + $0x10] sm:$0xff] 0.0
        %751 = vst [vmem:[#allocation2 + $0x18] sm:$0xff] 0.0
        %752 = vst [vmem:[#allocation2 + $0x20] sm:$0xff] 0.0
        %753 = vst [vmem:[#allocation2 + $0x28] sm:$0xff] 0.0
        %754 = vst [vmem:[#allocation2 + $0x30] sm:$0xff] 0.0
        %755 = vst [vmem:[#allocation2 + $0x38] sm:$0xff] 0.0
        %756 = vst [vmem:[#allocation2 + $0x40] sm:$0xff] 0.0
        %757 = vst [vmem:[#allocation2 + $0x48] sm:$0xff] 0.0
        %758 = vst [vmem:[#allocation2 + $0x50] sm:$0xff] 0.0
        %759 = vst [vmem:[#allocation2 + $0x58] sm:$0xff] 0.0
        %760 = vst [vmem:[#allocation2 + $0x60] sm:$0xff] 0.0
        %761 = vst [vmem:[#allocation2 + $0x68] sm:$0xff] 0.0
        %762 = vst [vmem:[#allocation2 + $0x70] sm:$0xff] 0.0
        %763 = vst [vmem:[#allocation2 + $0x78] sm:$0xff] 0.0
        %764 = vst [vmem:[#allocation2 + $0x80] sm:$0xff] 0.0
        %765 = vst [vmem:[#allocation2 + $0x88] sm:$0xff] 0.0
        %766 = vst [vmem:[#allocation2 + $0x90] sm:$0xff] 0.0
        %767 = vst [vmem:[#allocation2 + $0x98] sm:$0xff] 0.0
        %768 = vst [vmem:[#allocation2 + $0xa0] sm:$0xff] 0.0
        %769 = vst [vmem:[#allocation2 + $0xa8] sm:$0xff] 0.0
        %770 = vst [vmem:[#allocation2 + $0xb0] sm:$0xff] 0.0
        %771 = vst [vmem:[#allocation2 + $0xb8] sm:$0xff] 0.0
        %772 = vst [vmem:[#allocation2 + $0xc0] sm:$0xff] 0.0
        %773 = vst [vmem:[#allocation2 + $0xc8] sm:$0xff] 0.0
        %774 = vst [vmem:[#allocation2 + $0xd0] sm:$0xff] 0.0
        %775 = vst [vmem:[#allocation2 + $0xd8] sm:$0xff] 0.0
        %776 = vst [vmem:[#allocation2 + $0xe0] sm:$0xff] 0.0
        %777 = vst [vmem:[#allocation2 + $0xe8] sm:$0xff] 0.0
        %778 = vst [vmem:[#allocation2 + $0xf0] sm:$0xff] 0.0
        %779 = vst [vmem:[#allocation2 + $0xf8] sm:$0xff] 0.0
      $region48: #{extract_cl_forward.5} parent=35 // pred_fallthru
        _
      %s780 = smul.u32 %s22, 128
      %v781 = vld [vmem:[#allocation2] sm:$0xff]
      %v782 = vld [vmem:[#allocation2 + $0x8] sm:$0xff]
      %v783 = vld [vmem:[#allocation2 + $0x10] sm:$0xff]
      %v784 = vld [vmem:[#allocation2 + $0x18] sm:$0xff]
      %v785 = vld [vmem:[#allocation2 + $0x20] sm:$0xff]
      %v786 = vld [vmem:[#allocation2 + $0x28] sm:$0xff]
      %v787 = vld [vmem:[#allocation2 + $0x30] sm:$0xff]
      %v788 = vld [vmem:[#allocation2 + $0x38] sm:$0xff]
      %v789 = vld [vmem:[#allocation2 + $0x40] sm:$0xff]
      %v790 = vld [vmem:[#allocation2 + $0x48] sm:$0xff]
      %v791 = vld [vmem:[#allocation2 + $0x50] sm:$0xff]
      %v792 = vld [vmem:[#allocation2 + $0x58] sm:$0xff]
      %v793 = vld [vmem:[#allocation2 + $0x60] sm:$0xff]
      %v794 = vld [vmem:[#allocation2 + $0x68] sm:$0xff]
      %v795 = vld [vmem:[#allocation2 + $0x70] sm:$0xff]
      %v796 = vld [vmem:[#allocation2 + $0x78] sm:$0xff]
      %v797 = vld [vmem:[#allocation2 + $0x80] sm:$0xff]
      %v798 = vld [vmem:[#allocation2 + $0x88] sm:$0xff]
      %v799 = vld [vmem:[#allocation2 + $0x90] sm:$0xff]
      %v800 = vld [vmem:[#allocation2 + $0x98] sm:$0xff]
      %v801 = vld [vmem:[#allocation2 + $0xa0] sm:$0xff]
      %v802 = vld [vmem:[#allocation2 + $0xa8] sm:$0xff]
      %v803 = vld [vmem:[#allocation2 + $0xb0] sm:$0xff]
      %v804 = vld [vmem:[#allocation2 + $0xb8] sm:$0xff]
      %v805 = vld [vmem:[#allocation2 + $0xc0] sm:$0xff]
      %v806 = vld [vmem:[#allocation2 + $0xc8] sm:$0xff]
      %v807 = vld [vmem:[#allocation2 + $0xd0] sm:$0xff]
      %v808 = vld [vmem:[#allocation2 + $0xd8] sm:$0xff]
      %v809 = vld [vmem:[#allocation2 + $0xe0] sm:$0xff]
      %v810 = vld [vmem:[#allocation2 + $0xe8] sm:$0xff]
      %v811 = vld [vmem:[#allocation2 + $0xf0] sm:$0xff]
      %v812 = vld [vmem:[#allocation2 + $0xf8] sm:$0xff]
      %v813 = vld [vmem:[%s258] sm:$0xf]
      %v814 = vld [vmem:[%s258 + $0x4] sm:$0xf]
      %v815 = vld [vmem:[%s258 + $0x8] sm:$0xf]
      %v816 = vld [vmem:[%s258 + $0xc] sm:$0xf]
      %v817 = vld [vmem:[%s258 + $0x10] sm:$0xf]
      %v818 = vld [vmem:[%s258 + $0x14] sm:$0xf]
      %v819 = vld [vmem:[%s258 + $0x18] sm:$0xf]
      %v820 = vld [vmem:[%s258 + $0x1c] sm:$0xf]
      %v821 = vld [vmem:[%s258 + $0x20] sm:$0xf]
      %v822 = vld [vmem:[%s258 + $0x24] sm:$0xf]
      %v823 = vld [vmem:[%s258 + $0x28] sm:$0xf]
      %v824 = vld [vmem:[%s258 + $0x2c] sm:$0xf]
      %v825 = vld [vmem:[%s258 + $0x30] sm:$0xf]
      %v826 = vld [vmem:[%s258 + $0x34] sm:$0xf]
      %v827 = vld [vmem:[%s258 + $0x38] sm:$0xf]
      %v828 = vld [vmem:[%s258 + $0x3c] sm:$0xf]
      %s829 = sshra.s32 %s780, 4
      %s830 = sand.u32 %s780, 15
      %s831 = smul.u32 %s829, 2
      %s832 = smul.addr %s831, 8
      %s833 = scalar_lea.vmem [#allocation4], %s832
      %v834 = vld [vmem:[%s833] sm:$0xff]
      %v835 = vld [vmem:[%s833 + $0x8] sm:$0xff]
      %v836 = vld [vmem:[%s833 + $0x10] sm:$0xff]
      %v837 = vld [vmem:[%s833 + $0x18] sm:$0xff]
      %v838 = vld [vmem:[%s833 + $0x20] sm:$0xff]
      %v839 = vld [vmem:[%s833 + $0x28] sm:$0xff]
      %v840 = vld [vmem:[%s833 + $0x30] sm:$0xff]
      %v841 = vld [vmem:[%s833 + $0x38] sm:$0xff]
      %v842 = vld [vmem:[%s833 + $0x40] sm:$0xff]
      %v843 = vld [vmem:[%s833 + $0x48] sm:$0xff]
      %v844 = vld [vmem:[%s833 + $0x50] sm:$0xff]
      %v845 = vld [vmem:[%s833 + $0x58] sm:$0xff]
      %v846 = vld [vmem:[%s833 + $0x60] sm:$0xff]
      %v847 = vld [vmem:[%s833 + $0x68] sm:$0xff]
      %v848 = vld [vmem:[%s833 + $0x70] sm:$0xff]
      %v849 = vld [vmem:[%s833 + $0x78] sm:$0xff]
      %v866 = vunpack.c.l.b16 %v813
      %v867 = vunpack.c.l.b16 %v814
      %v868 = vunpack.c.l.b16 %v815
      %v869 = vunpack.c.l.b16 %v816
      %v870 = vunpack.c.l.b16 %v817
      %v871 = vunpack.c.l.b16 %v818
      %v872 = vunpack.c.l.b16 %v819
      %v873 = vunpack.c.l.b16 %v820
      %v874 = vunpack.c.l.b16 %v821
      %v875 = vunpack.c.l.b16 %v822
      %v876 = vunpack.c.l.b16 %v823
      %v877 = vunpack.c.l.b16 %v824
      %v878 = vunpack.c.l.b16 %v825
      %v879 = vunpack.c.l.b16 %v826
      %v880 = vunpack.c.l.b16 %v827
      %v881 = vunpack.c.l.b16 %v828
      %v882 = vpack.c.b16 %v867, %v866
      %v883 = vpack.c.b16 %v869, %v868
      %v884 = vpack.c.b16 %v871, %v870
      %v885 = vpack.c.b16 %v873, %v872
      %v886 = vpack.c.b16 %v875, %v874
      %v887 = vpack.c.b16 %v877, %v876
      %v888 = vpack.c.b16 %v879, %v878
      %v889 = vpack.c.b16 %v881, %v880
      %898 = vmatprep.subr.bf16.mxu0 %v835
      %899 = vmatpush1.bf16.msra.mxu0 %v834
      %900 = vmatprep.subr.bf16.mxu0 %v837
      %901 = vmatpush1.bf16.msra.mxu0 %v836
      %902 = vmatprep.subr.bf16.mxu0 %v839
      %903 = vmatpush1.bf16.msra.mxu0 %v838
      %904 = vmatprep.subr.bf16.mxu0 %v841
      %905 = vmatpush1.bf16.msra.mxu0 %v840
      %906 = vmatprep.subr.bf16.mxu0 %v843
      %907 = vmatpush1.bf16.msra.mxu0 %v842
      %908 = vmatprep.subr.bf16.mxu0 %v845
      %909 = vmatpush1.bf16.msra.mxu0 %v844
      %910 = vmatprep.subr.bf16.mxu0 %v847
      %911 = vmatpush1.bf16.msra.mxu0 %v846
      %912 = vmatprep.subr.bf16.mxu0 %v849
      %913 = vmatpush1.bf16.msra.mxu0 %v848
      %914 = vmatprep.subr.bf16.mxu0 0
      %915 = vmatpush1.bf16.msra.mxu0 0
      %916 = vmatprep.subr.bf16.mxu0 0
      %917 = vmatpush1.bf16.msra.mxu0 0
      %918 = vmatprep.subr.bf16.mxu0 0
      %919 = vmatpush1.bf16.msra.mxu0 0
      %920 = vmatprep.subr.bf16.mxu0 0
      %921 = vmatpush1.bf16.msra.mxu0 0
      %922 = vmatprep.subr.bf16.mxu0 0
      %923 = vmatpush1.bf16.msra.mxu0 0
      %924 = vmatprep.subr.bf16.mxu0 0
      %925 = vmatpush1.bf16.msra.mxu0 0
      %926 = vmatprep.subr.bf16.mxu0 0
      %927 = vmatpush1.bf16.msra.mxu0 0
      %928 = vmatprep.subr.bf16.mxu0 0
      %929 = vmatpush1.bf16.msra.mxu0 0
      %930 = vmatprep.mubr.bf16.mxu0 0
      %931 = vmatmul.mubr.bf16.gmra.mrb[0].mxu0 %v882
      %v932 = vpop.f32.mrb[0].mxu0
      %v933 = vadd.f32 0.0, %v932
      %v934 = vpop.f32.mrb[0].mxu0
      %v935 = vadd.f32 0.0, %v934
      %v936 = vpop.f32.mrb[0].mxu0
      %v937 = vadd.f32 0.0, %v936
      %v938 = vpop.f32.mrb[0].mxu0
      %v939 = vadd.f32 0.0, %v938
      %940 = vmatprep.mubr.bf16.mxu0 0
      %941 = vmatmul.mubr.bf16.gmra.mrb[0].mxu0 %v883
      %v942 = vpop.f32.mrb[0].mxu0
      %v943 = vadd.f32 0.0, %v942
      %v944 = vpop.f32.mrb[0].mxu0
      %v945 = vadd.f32 0.0, %v944
      %v946 = vpop.f32.mrb[0].mxu0
      %v947 = vadd.f32 0.0, %v946
      %v948 = vpop.f32.mrb[0].mxu0
      %v949 = vadd.f32 0.0, %v948
      %950 = vmatprep.mubr.bf16.mxu0 0
      %951 = vmatmul.mubr.bf16.gmra.mrb[0].mxu0 %v884
      %v952 = vpop.f32.mrb[0].mxu0
      %v953 = vadd.f32 0.0, %v952
      %v954 = vpop.f32.mrb[0].mxu0
      %v955 = vadd.f32 0.0, %v954
      %v956 = vpop.f32.mrb[0].mxu0
      %v957 = vadd.f32 0.0, %v956
      %v958 = vpop.f32.mrb[0].mxu0
      %v959 = vadd.f32 0.0, %v958
      %960 = vmatprep.mubr.bf16.mxu0 0
      %961 = vmatmul.mubr.bf16.gmra.mrb[0].mxu0 %v885
      %v962 = vpop.f32.mrb[0].mxu0
      %v963 = vadd.f32 0.0, %v962
      %v964 = vpop.f32.mrb[0].mxu0
      %v965 = vadd.f32 0.0, %v964
      %v966 = vpop.f32.mrb[0].mxu0
      %v967 = vadd.f32 0.0, %v966
      %v968 = vpop.f32.mrb[0].mxu0
      %v969 = vadd.f32 0.0, %v968
      %970 = vmatprep.mubr.bf16.mxu0 0
      %971 = vmatmul.mubr.bf16.gmra.mrb[0].mxu0 %v886
      %v972 = vpop.f32.mrb[0].mxu0
      %v973 = vadd.f32 0.0, %v972
      %v974 = vpop.f32.mrb[0].mxu0
      %v975 = vadd.f32 0.0, %v974
      %v976 = vpop.f32.mrb[0].mxu0
      %v977 = vadd.f32 0.0, %v976
      %v978 = vpop.f32.mrb[0].mxu0
      %v979 = vadd.f32 0.0, %v978
      %980 = vmatprep.mubr.bf16.mxu0 0
      %981 = vmatmul.mubr.bf16.gmra.mrb[0].mxu0 %v887
      %v982 = vpop.f32.mrb[0].mxu0
      %v983 = vadd.f32 0.0, %v982
      %v984 = vpop.f32.mrb[0].mxu0
      %v985 = vadd.f32 0.0, %v984
      %v986 = vpop.f32.mrb[0].mxu0
      %v987 = vadd.f32 0.0, %v986
      %v988 = vpop.f32.mrb[0].mxu0
      %v989 = vadd.f32 0.0, %v988
      %990 = vmatprep.mubr.bf16.mxu0 0
      %991 = vmatmul.mubr.bf16.gmra.mrb[0].mxu0 %v888
      %v992 = vpop.f32.mrb[0].mxu0
      %v993 = vadd.f32 0.0, %v992
      %v994 = vpop.f32.mrb[0].mxu0
      %v995 = vadd.f32 0.0, %v994
      %v996 = vpop.f32.mrb[0].mxu0
      %v997 = vadd.f32 0.0, %v996
      %v998 = vpop.f32.mrb[0].mxu0
      %v999 = vadd.f32 0.0, %v998
      %1000 = vmatprep.mubr.bf16.mxu0 0
      %1001 = vmatmul.mubr.bf16.gmra.mrb[0].mxu0 %v889
      %v1002 = vpop.f32.mrb[0].mxu0
      %v1003 = vadd.f32 0.0, %v1002
      %v1004 = vpop.f32.mrb[0].mxu0
      %v1005 = vadd.f32 0.0, %v1004
      %v1006 = vpop.f32.mrb[0].mxu0
      %v1007 = vadd.f32 0.0, %v1006
      %v1008 = vpop.f32.mrb[0].mxu0
      %v1009 = vadd.f32 0.0, %v1008
      %1010 = vdwg.mxu0
      %v1011 = vadd.f32 %v781, %v933
      %v1012 = vadd.f32 %v782, %v935
      %v1013 = vadd.f32 %v783, %v937
      %v1014 = vadd.f32 %v784, %v939
      %v1015 = vadd.f32 %v785, %v943
      %v1016 = vadd.f32 %v786, %v945
      %v1017 = vadd.f32 %v787, %v947
      %v1018 = vadd.f32 %v788, %v949
      %v1019 = vadd.f32 %v789, %v953
      %v1020 = vadd.f32 %v790, %v955
      %v1021 = vadd.f32 %v791, %v957
      %v1022 = vadd.f32 %v792, %v959
      %v1023 = vadd.f32 %v793, %v963
      %v1024 = vadd.f32 %v794, %v965
      %v1025 = vadd.f32 %v795, %v967
      %v1026 = vadd.f32 %v796, %v969
      %v1027 = vadd.f32 %v797, %v973
      %v1028 = vadd.f32 %v798, %v975
      %v1029 = vadd.f32 %v799, %v977
      %v1030 = vadd.f32 %v800, %v979
      %v1031 = vadd.f32 %v801, %v983
      %v1032 = vadd.f32 %v802, %v985
      %v1033 = vadd.f32 %v803, %v987
      %v1034 = vadd.f32 %v804, %v989
      %v1035 = vadd.f32 %v805, %v993
      %v1036 = vadd.f32 %v806, %v995
      %v1037 = vadd.f32 %v807, %v997
      %v1038 = vadd.f32 %v808, %v999
      %v1039 = vadd.f32 %v809, %v1003
      %v1040 = vadd.f32 %v810, %v1005
      %v1041 = vadd.f32 %v811, %v1007
      %v1042 = vadd.f32 %v812, %v1009
      %1043 = vst [vmem:[#allocation2] sm:$0xff] %v1011
      %1044 = vst [vmem:[#allocation2 + $0x8] sm:$0xff] %v1012
      %1045 = vst [vmem:[#allocation2 + $0x10] sm:$0xff] %v1013
      %1046 = vst [vmem:[#allocation2 + $0x18] sm:$0xff] %v1014
      %1047 = vst [vmem:[#allocation2 + $0x20] sm:$0xff] %v1015
      %1048 = vst [vmem:[#allocation2 + $0x28] sm:$0xff] %v1016
      %1049 = vst [vmem:[#allocation2 + $0x30] sm:$0xff] %v1017
      %1050 = vst [vmem:[#allocation2 + $0x38] sm:$0xff] %v1018
      %1051 = vst [vmem:[#allocation2 + $0x40] sm:$0xff] %v1019
      %1052 = vst [vmem:[#allocation2 + $0x48] sm:$0xff] %v1020
      %1053 = vst [vmem:[#allocation2 + $0x50] sm:$0xff] %v1021
      %1054 = vst [vmem:[#allocation2 + $0x58] sm:$0xff] %v1022
      %1055 = vst [vmem:[#allocation2 + $0x60] sm:$0xff] %v1023
      %1056 = vst [vmem:[#allocation2 + $0x68] sm:$0xff] %v1024
      %1057 = vst [vmem:[#allocation2 + $0x70] sm:$0xff] %v1025
      %1058 = vst [vmem:[#allocation2 + $0x78] sm:$0xff] %v1026
      %1059 = vst [vmem:[#allocation2 + $0x80] sm:$0xff] %v1027
      %1060 = vst [vmem:[#allocation2 + $0x88] sm:$0xff] %v1028
      %1061 = vst [vmem:[#allocation2 + $0x90] sm:$0xff] %v1029
      %1062 = vst [vmem:[#allocation2 + $0x98] sm:$0xff] %v1030
      %1063 = vst [vmem:[#allocation2 + $0xa0] sm:$0xff] %v1031
      %1064 = vst [vmem:[#allocation2 + $0xa8] sm:$0xff] %v1032
      %1065 = vst [vmem:[#allocation2 + $0xb0] sm:$0xff] %v1033
      %1066 = vst [vmem:[#allocation2 + $0xb8] sm:$0xff] %v1034
      %1067 = vst [vmem:[#allocation2 + $0xc0] sm:$0xff] %v1035
      %1068 = vst [vmem:[#allocation2 + $0xc8] sm:$0xff] %v1036
      %1069 = vst [vmem:[#allocation2 + $0xd0] sm:$0xff] %v1037
      %1070 = vst [vmem:[#allocation2 + $0xd8] sm:$0xff] %v1038
      %1071 = vst [vmem:[#allocation2 + $0xe0] sm:$0xff] %v1039
      %1072 = vst [vmem:[#allocation2 + $0xe8] sm:$0xff] %v1040
      %1073 = vst [vmem:[#allocation2 + $0xf0] sm:$0xff] %v1041
      %1074 = vst [vmem:[#allocation2 + $0xf8] sm:$0xff] %v1042
      // Predicated region
      $region49: #{extract_cl_forward.5} parent=35 // pred_check
        %p1075 = pneg %p285
      $region50: #{extract_cl_forward.5} parent=35 // pred_check_branch
        %1077 = sbr.rel (%p1075) target = $region52
      $region51: #{extract_cl_forward.5} parent=35 // pred_region
        %v1078 = vld [vmem:[#allocation2] sm:$0xff]
        %v1079 = vld [vmem:[#allocation2 + $0x8] sm:$0xff]
        %v1080 = vld [vmem:[#allocation2 + $0x10] sm:$0xff]
        %v1081 = vld [vmem:[#allocation2 + $0x18] sm:$0xff]
        %v1082 = vld [vmem:[#allocation2 + $0x20] sm:$0xff]
        %v1083 = vld [vmem:[#allocation2 + $0x28] sm:$0xff]
        %v1084 = vld [vmem:[#allocation2 + $0x30] sm:$0xff]
        %v1085 = vld [vmem:[#allocation2 + $0x38] sm:$0xff]
        %v1086 = vld [vmem:[#allocation2 + $0x40] sm:$0xff]
        %v1087 = vld [vmem:[#allocation2 + $0x48] sm:$0xff]
        %v1088 = vld [vmem:[#allocation2 + $0x50] sm:$0xff]
        %v1089 = vld [vmem:[#allocation2 + $0x58] sm:$0xff]
        %v1090 = vld [vmem:[#allocation2 + $0x60] sm:$0xff]
        %v1091 = vld [vmem:[#allocation2 + $0x68] sm:$0xff]
        %v1092 = vld [vmem:[#allocation2 + $0x70] sm:$0xff]
        %v1093 = vld [vmem:[#allocation2 + $0x78] sm:$0xff]
        %v1094 = vld [vmem:[#allocation2 + $0x80] sm:$0xff]
        %v1095 = vld [vmem:[#allocation2 + $0x88] sm:$0xff]
        %v1096 = vld [vmem:[#allocation2 + $0x90] sm:$0xff]
        %v1097 = vld [vmem:[#allocation2 + $0x98] sm:$0xff]
        %v1098 = vld [vmem:[#allocation2 + $0xa0] sm:$0xff]
        %v1099 = vld [vmem:[#allocation2 + $0xa8] sm:$0xff]
        %v1100 = vld [vmem:[#allocation2 + $0xb0] sm:$0xff]
        %v1101 = vld [vmem:[#allocation2 + $0xb8] sm:$0xff]
        %v1102 = vld [vmem:[#allocation2 + $0xc0] sm:$0xff]
        %v1103 = vld [vmem:[#allocation2 + $0xc8] sm:$0xff]
        %v1104 = vld [vmem:[#allocation2 + $0xd0] sm:$0xff]
        %v1105 = vld [vmem:[#allocation2 + $0xd8] sm:$0xff]
        %v1106 = vld [vmem:[#allocation2 + $0xe0] sm:$0xff]
        %v1107 = vld [vmem:[#allocation2 + $0xe8] sm:$0xff]
        %v1108 = vld [vmem:[#allocation2 + $0xf0] sm:$0xff]
        %v1109 = vld [vmem:[#allocation2 + $0xf8] sm:$0xff]
        %v1110 = vld [vmem:[%s268] sm:$0x3]
        %v1112 = vlaneseq
        %v1113 = vshrl.u32 %v1112, 7
        %v1114 = vsub.s32 0, %v1113
        %v1115 = vrot.slane %v1110, %v1114
        %v1116 = vlaneseq
        %v1117 = vshrl.u32 %v1116, 7
        %v1118 = vsub.s32 1, %v1117
        %v1119 = vrot.slane %v1110, %v1118
        %v1122 = vadd.f32 %v1078, %v1115
        %v1123 = vadd.f32 %v1079, %v1119
        %v1124 = vadd.f32 %v1080, %v1115
        %v1125 = vadd.f32 %v1081, %v1119
        %v1126 = vadd.f32 %v1082, %v1115
        %v1127 = vadd.f32 %v1083, %v1119
        %v1128 = vadd.f32 %v1084, %v1115
        %v1129 = vadd.f32 %v1085, %v1119
        %v1130 = vadd.f32 %v1086, %v1115
        %v1131 = vadd.f32 %v1087, %v1119
        %v1132 = vadd.f32 %v1088, %v1115
        %v1133 = vadd.f32 %v1089, %v1119
        %v1134 = vadd.f32 %v1090, %v1115
        %v1135 = vadd.f32 %v1091, %v1119
        %v1136 = vadd.f32 %v1092, %v1115
        %v1137 = vadd.f32 %v1093, %v1119
        %v1138 = vadd.f32 %v1094, %v1115
        %v1139 = vadd.f32 %v1095, %v1119
        %v1140 = vadd.f32 %v1096, %v1115
        %v1141 = vadd.f32 %v1097, %v1119
        %v1142 = vadd.f32 %v1098, %v1115
        %v1143 = vadd.f32 %v1099, %v1119
        %v1144 = vadd.f32 %v1100, %v1115
        %v1145 = vadd.f32 %v1101, %v1119
        %v1146 = vadd.f32 %v1102, %v1115
        %v1147 = vadd.f32 %v1103, %v1119
        %v1148 = vadd.f32 %v1104, %v1115
        %v1149 = vadd.f32 %v1105, %v1119
        %v1150 = vadd.f32 %v1106, %v1115
        %v1151 = vadd.f32 %v1107, %v1119
        %v1152 = vadd.f32 %v1108, %v1115
        %v1153 = vadd.f32 %v1109, %v1119
        %v1154 = vtanh.pop %v1122
        %v1155 = vtanh.pop %v1123
        %v1156 = vtanh.pop %v1124
        %v1157 = vtanh.pop %v1125
        %v1158 = vtanh.pop %v1126
        %v1159 = vtanh.pop %v1127
        %v1160 = vtanh.pop %v1128
        %v1161 = vtanh.pop %v1129
        %v1162 = vtanh.pop %v1130
        %v1163 = vtanh.pop %v1131
        %v1164 = vtanh.pop %v1132
        %v1165 = vtanh.pop %v1133
        %v1166 = vtanh.pop %v1134
        %v1167 = vtanh.pop %v1135
        %v1168 = vtanh.pop %v1136
        %v1169 = vtanh.pop %v1137
        %v1170 = vtanh.pop %v1138
        %v1171 = vtanh.pop %v1139
        %v1172 = vtanh.pop %v1140
        %v1173 = vtanh.pop %v1141
        %v1174 = vtanh.pop %v1142
        %v1175 = vtanh.pop %v1143
        %v1176 = vtanh.pop %v1144
        %v1177 = vtanh.pop %v1145
        %v1178 = vtanh.pop %v1146
        %v1179 = vtanh.pop %v1147
        %v1180 = vtanh.pop %v1148
        %v1181 = vtanh.pop %v1149
        %v1182 = vtanh.pop %v1150
        %v1183 = vtanh.pop %v1151
        %v1184 = vtanh.pop %v1152
        %v1185 = vtanh.pop %v1153
        %s1186 = smul.u32 %s21, 128
        %s1187 = sshra.s32 %s1186, 3
        %s1188 = sand.u32 %s1186, 7
        %s1189 = smul.u32 %s1187, 2
        %s1190 = smul.addr %s1189, 8
        %s1191 = scalar_lea.vmem [#allocation3], %s1190
        %1192 = vst [vmem:[%s1191] sm:$0xff] %v1154
        %1193 = vst [vmem:[%s1191 + $0x8] sm:$0xff] %v1155
        %1194 = vst [vmem:[%s1191 + $0x10] sm:$0xff] %v1156
        %1195 = vst [vmem:[%s1191 + $0x18] sm:$0xff] %v1157
        %1196 = vst [vmem:[%s1191 + $0x20] sm:$0xff] %v1158
        %1197 = vst [vmem:[%s1191 + $0x28] sm:$0xff] %v1159
        %1198 = vst [vmem:[%s1191 + $0x30] sm:$0xff] %v1160
        %1199 = vst [vmem:[%s1191 + $0x38] sm:$0xff] %v1161
        %1200 = vst [vmem:[%s1191 + $0x40] sm:$0xff] %v1162
        %1201 = vst [vmem:[%s1191 + $0x48] sm:$0xff] %v1163
        %1202 = vst [vmem:[%s1191 + $0x50] sm:$0xff] %v1164
        %1203 = vst [vmem:[%s1191 + $0x58] sm:$0xff] %v1165
        %1204 = vst [vmem:[%s1191 + $0x60] sm:$0xff] %v1166
        %1205 = vst [vmem:[%s1191 + $0x68] sm:$0xff] %v1167
        %1206 = vst [vmem:[%s1191 + $0x70] sm:$0xff] %v1168
        %1207 = vst [vmem:[%s1191 + $0x78] sm:$0xff] %v1169
        %1208 = vst [vmem:[%s1191 + $0x80] sm:$0xff] %v1170
        %1209 = vst [vmem:[%s1191 + $0x88] sm:$0xff] %v1171
        %1210 = vst [vmem:[%s1191 + $0x90] sm:$0xff] %v1172
        %1211 = vst [vmem:[%s1191 + $0x98] sm:$0xff] %v1173
        %1212 = vst [vmem:[%s1191 + $0xa0] sm:$0xff] %v1174
        %1213 = vst [vmem:[%s1191 + $0xa8] sm:$0xff] %v1175
        %1214 = vst [vmem:[%s1191 + $0xb0] sm:$0xff] %v1176
        %1215 = vst [vmem:[%s1191 + $0xb8] sm:$0xff] %v1177
        %1216 = vst [vmem:[%s1191 + $0xc0] sm:$0xff] %v1178
        %1217 = vst [vmem:[%s1191 + $0xc8] sm:$0xff] %v1179
        %1218 = vst [vmem:[%s1191 + $0xd0] sm:$0xff] %v1180
        %1219 = vst [vmem:[%s1191 + $0xd8] sm:$0xff] %v1181
        %1220 = vst [vmem:[%s1191 + $0xe0] sm:$0xff] %v1182
        %1221 = vst [vmem:[%s1191 + $0xe8] sm:$0xff] %v1183
        %1222 = vst [vmem:[%s1191 + $0xf0] sm:$0xff] %v1184
        %1223 = vst [vmem:[%s1191 + $0xf8] sm:$0xff] %v1185
        %1224 = vst [vmem:[%s278] sm:$0xff] %v1154
        %1225 = vst [vmem:[%s278 + $0x8] sm:$0xff] %v1155
        %1226 = vst [vmem:[%s278 + $0x10] sm:$0xff] %v1156
        %1227 = vst [vmem:[%s278 + $0x18] sm:$0xff] %v1157
        %1228 = vst [vmem:[%s278 + $0x20] sm:$0xff] %v1158
        %1229 = vst [vmem:[%s278 + $0x28] sm:$0xff] %v1159
        %1230 = vst [vmem:[%s278 + $0x30] sm:$0xff] %v1160
        %1231 = vst [vmem:[%s278 + $0x38] sm:$0xff] %v1161
        %1232 = vst [vmem:[%s278 + $0x40] sm:$0xff] %v1162
        %1233 = vst [vmem:[%s278 + $0x48] sm:$0xff] %v1163
        %1234 = vst [vmem:[%s278 + $0x50] sm:$0xff] %v1164
        %1235 = vst [vmem:[%s278 + $0x58] sm:$0xff] %v1165
        %1236 = vst [vmem:[%s278 + $0x60] sm:$0xff] %v1166
        %1237 = vst [vmem:[%s278 + $0x68] sm:$0xff] %v1167
        %1238 = vst [vmem:[%s278 + $0x70] sm:$0xff] %v1168
        %1239 = vst [vmem:[%s278 + $0x78] sm:$0xff] %v1169
        %1240 = vst [vmem:[%s278 + $0x80] sm:$0xff] %v1170
        %1241 = vst [vmem:[%s278 + $0x88] sm:$0xff] %v1171
        %1242 = vst [vmem:[%s278 + $0x90] sm:$0xff] %v1172
        %1243 = vst [vmem:[%s278 + $0x98] sm:$0xff] %v1173
        %1244 = vst [vmem:[%s278 + $0xa0] sm:$0xff] %v1174
        %1245 = vst [vmem:[%s278 + $0xa8] sm:$0xff] %v1175
        %1246 = vst [vmem:[%s278 + $0xb0] sm:$0xff] %v1176
        %1247 = vst [vmem:[%s278 + $0xb8] sm:$0xff] %v1177
        %1248 = vst [vmem:[%s278 + $0xc0] sm:$0xff] %v1178
        %1249 = vst [vmem:[%s278 + $0xc8] sm:$0xff] %v1179
        %1250 = vst [vmem:[%s278 + $0xd0] sm:$0xff] %v1180
        %1251 = vst [vmem:[%s278 + $0xd8] sm:$0xff] %v1181
        %1252 = vst [vmem:[%s278 + $0xe0] sm:$0xff] %v1182
        %1253 = vst [vmem:[%s278 + $0xe8] sm:$0xff] %v1183
        %1254 = vst [vmem:[%s278 + $0xf0] sm:$0xff] %v1184
        %1255 = vst [vmem:[%s278 + $0xf8] sm:$0xff] %v1185
      $region52: #{extract_cl_forward.5} parent=35 // pred_fallthru
        _
      %s1256 = smul.u32 16, %s21
      %p1257 = scmp.lt.s32.totalorder %s20, 1
      %s1258 = scalar_select %p1257, %s20, 1
      %p1259 = scmp.lt.s32.totalorder %s1256, 15
      %s1260 = scalar_select %p1259, %s1256, 15
      %s1261 = smul.addr %s1260, 2
      %s1262 = smul.addr %s1258, 32
      %s1263 = sadd.s32 %s1261, %s1262
      %s1264 = smul.addr %s1263, 8
      %s1265 = scalar_lea.vmem %s4, %s1264
      // Predicated region
      $region53: #{extract_cl_forward.5} parent=35 // pred_check
        %p1266 = pneg %p155
      $region54: #{extract_cl_forward.5} parent=35 // pred_check_branch
        %1268 = sbr.rel (%p1266) target = $region56
      $region55: #{extract_cl_forward.5} parent=35 // pred_region
        %s1269 = smul.u32 16, %s21
      $region56: #{extract_cl_forward.5} parent=35 // pred_fallthru
        _
    $region36: #{extract_cl_forward.5} parent=5 // pred_fallthru
      _
    %p1270 = scmp.le.s32.totalorder 2, %s10
    // Predicated region
    $region57: #{extract_cl_forward.5} parent=5 // pred_check
      %p1271 = pneg %p1270
    $region58: #{extract_cl_forward.5} parent=5 // pred_check_branch
      %1273 = sbr.rel (%p1271) target = $region60
    $region59: #{extract_cl_forward.5} parent=5 // pred_region
      %s1274 = ssub.s32 %s10, 2
      // Predicated region
      $region61: #{extract_cl_forward.5} parent=59 // pred_check
        %p1275 = pneg %p161
      $region62: #{extract_cl_forward.5} parent=59 // pred_check_branch
        %1277 = sbr.rel (%p1275) target = $region64
      $region63: #{extract_cl_forward.5} parent=59 // pred_region
        %s1278 = smul.u32 16, %s24
        %p1279 = scmp.lt.s32.totalorder %s23, 1
        %s1280 = scalar_select %p1279, %s23, 1
        %p1281 = scmp.lt.s32.totalorder %s1278, 15
        %s1282 = scalar_select %p1281, %s1278, 15
        %s1283 = smul.addr %s1282, 2
        %s1284 = smul.addr %s1280, 32
        %s1285 = sadd.s32 %s1283, %s1284
        %s1286 = smul.addr %s1285, 8
        %s1287 = scalar_lea.vmem %s4, %s1286
      $region64: #{extract_cl_forward.5} parent=59 // pred_fallthru
        _
    $region60: #{extract_cl_forward.5} parent=5 // pred_fallthru
      _
  $region6: #{extract_cl_forward.5} parent=0 // loop_footer
    %s14 = sadd.s32 1, %s10
  $region7: #{extract_cl_forward.5} parent=0 // loop_footer_branch
    %9 = sbr.rel target = $region3
  $region8: #{extract_cl_forward.5} parent=0 // loop_exit
    _

// kernel: extract_cl_forward.9
$region0: #{extract_cl_forward.9}
  #allocation0 [shape = 'u32[]', space=smem, size = 0x4, offset = 0x4, fixed_abs, tag = 'smem constant byte address 0x4 - core index']
  #allocation1 [shape = 'u32[144,128]{1,0:T(1,128)}', space=vmem, size = 0x12000, scoped, tag = 'internal scratch']
  #allocation2 [shape = 'f32[128,128]{1,0:T(8,128)}', space=vmem, size = 0x10000, scoped, tag = 'scratch operand']
  #allocation3 [shape = 'f32[128,128]{1,0:T(8,128)}', space=vmem, size = 0x10000, scoped, tag = 'scratch operand']
  #allocation4 [shape = 'bf16[128,128]{1,0:T(16,128)(2,1)}', space=vmem, size = 0x8000, scoped, tag = 'scratch operand']
  %s0 = inlined_call_operand.vmem [shape: bf16[128,128], index: 0, kind: input, shape index: {}]
  %s1 = inlined_call_operand.vmem [shape: f32[128,128], index: 1, kind: input, shape index: {}]
  %s2 = inlined_call_operand.vmem [shape: f32[1,1,128,128], index: 2, kind: input, shape index: {}]
  %s3 = inlined_call_operand.vmem [shape: f32[1,1,128], index: 3, kind: input, shape index: {}]
  %s4 = inlined_call_operand.vmem [shape: f32[1,128,128], index: 4, kind: output, shape index: {}]
  %s5 = sld [smem:[#allocation0]]
  $region42: #{extract_cl_forward.9} parent=0
    _
  %s7 = ssub.s32 1, %s5
  %s8 = scalar_select 0, %s7, %s5
  // Predicated region
  $region2: #{extract_cl_forward.9} parent=0 // pred_check
    _
  $region3: #{extract_cl_forward.9} parent=0 // pred_check_branch
    %10 = sbr.rel (0) target = $region5
  $region4: #{extract_cl_forward.9} parent=0 // pred_region
    _
  $region5: #{extract_cl_forward.9} parent=0 // pred_fallthru
    _
  // Predicated region
  $region6: #{extract_cl_forward.9} parent=0 // pred_check
    _
  $region7: #{extract_cl_forward.9} parent=0 // pred_check_branch
    %12 = sbr.rel (0) target = $region9
  $region8: #{extract_cl_forward.9} parent=0 // pred_region
    _
  $region9: #{extract_cl_forward.9} parent=0 // pred_fallthru
    _
  // Predicated region
  $region10: #{extract_cl_forward.9} parent=0 // pred_check
    _
  $region11: #{extract_cl_forward.9} parent=0 // pred_check_branch
    %14 = sbr.rel (0) target = $region13
  $region12: #{extract_cl_forward.9} parent=0 // pred_region
    _
  $region13: #{extract_cl_forward.9} parent=0 // pred_fallthru
    _
  // Predicated region
  $region14: #{extract_cl_forward.9} parent=0 // pred_check
    _
  $region15: #{extract_cl_forward.9} parent=0 // pred_check_branch
    %16 = sbr.rel (0) target = $region17
  $region16: #{extract_cl_forward.9} parent=0 // pred_region
    _
  $region17: #{extract_cl_forward.9} parent=0 // pred_fallthru
    _
  %p18 = scmp.eq.s32.totalorder 0, 0
  %p19 = scmp.eq.s32.totalorder 0, 0
  %p20 = pnand %p18, %p19
  %p21 = pneg %p20
  %p22 = scmp.eq.s32.totalorder 0, 0
  %p23 = pnand %p21, %p22
  %p24 = pneg %p23
  // Predicated region
  $region18: #{extract_cl_forward.9} parent=0 // pred_check
    _
  $region19: #{extract_cl_forward.9} parent=0 // pred_check_branch
    %26 = sbr.rel (%p23) target = $region21
  $region20: #{extract_cl_forward.9} parent=0 // pred_region
    %v27 = vld [vmem:[%s1] sm:$0xff]
    %v28 = vld [vmem:[%s1 + $0x8] sm:$0xff]
    %v29 = vld [vmem:[%s1 + $0x10] sm:$0xff]
    %v30 = vld [vmem:[%s1 + $0x18] sm:$0xff]
    %v31 = vld [vmem:[%s1 + $0x20] sm:$0xff]
    %v32 = vld [vmem:[%s1 + $0x28] sm:$0xff]
    %v33 = vld [vmem:[%s1 + $0x30] sm:$0xff]
    %v34 = vld [vmem:[%s1 + $0x38] sm:$0xff]
    %v35 = vld [vmem:[%s1 + $0x40] sm:$0xff]
    %v36 = vld [vmem:[%s1 + $0x48] sm:$0xff]
    %v37 = vld [vmem:[%s1 + $0x50] sm:$0xff]
    %v38 = vld [vmem:[%s1 + $0x58] sm:$0xff]
    %v39 = vld [vmem:[%s1 + $0x60] sm:$0xff]
    %v40 = vld [vmem:[%s1 + $0x68] sm:$0xff]
    %v41 = vld [vmem:[%s1 + $0x70] sm:$0xff]
    %v42 = vld [vmem:[%s1 + $0x78] sm:$0xff]
    %43 = vst [vmem:[#allocation3] sm:$0xff] %v27
    %44 = vst [vmem:[#allocation3 + $0x8] sm:$0xff] %v28
    %45 = vst [vmem:[#allocation3 + $0x10] sm:$0xff] %v29
    %46 = vst [vmem:[#allocation3 + $0x18] sm:$0xff] %v30
    %47 = vst [vmem:[#allocation3 + $0x20] sm:$0xff] %v31
    %48 = vst [vmem:[#allocation3 + $0x28] sm:$0xff] %v32
    %49 = vst [vmem:[#allocation3 + $0x30] sm:$0xff] %v33
    %50 = vst [vmem:[#allocation3 + $0x38] sm:$0xff] %v34
    %51 = vst [vmem:[#allocation3 + $0x40] sm:$0xff] %v35
    %52 = vst [vmem:[#allocation3 + $0x48] sm:$0xff] %v36
    %53 = vst [vmem:[#allocation3 + $0x50] sm:$0xff] %v37
    %54 = vst [vmem:[#allocation3 + $0x58] sm:$0xff] %v38
    %55 = vst [vmem:[#allocation3 + $0x60] sm:$0xff] %v39
    %56 = vst [vmem:[#allocation3 + $0x68] sm:$0xff] %v40
    %57 = vst [vmem:[#allocation3 + $0x70] sm:$0xff] %v41
    %58 = vst [vmem:[#allocation3 + $0x78] sm:$0xff] %v42
  $region21: #{extract_cl_forward.9} parent=0 // pred_fallthru
    _
  %p59 = pnand %p19, %p22
  %p60 = pneg %p59
  // Predicated region
  $region22: #{extract_cl_forward.9} parent=0 // pred_check
    _
  $region23: #{extract_cl_forward.9} parent=0 // pred_check_branch
    %62 = sbr.rel (%p59) target = $region25
  $region24: #{extract_cl_forward.9} parent=0 // pred_region
    %v63 = vld [vmem:[#allocation3] sm:$0xff]
    %v64 = vld [vmem:[#allocation3 + $0x8] sm:$0xff]
    %v65 = vld [vmem:[#allocation3 + $0x10] sm:$0xff]
    %v66 = vld [vmem:[#allocation3 + $0x18] sm:$0xff]
    %v67 = vld [vmem:[#allocation3 + $0x20] sm:$0xff]
    %v68 = vld [vmem:[#allocation3 + $0x28] sm:$0xff]
    %v69 = vld [vmem:[#allocation3 + $0x30] sm:$0xff]
    %v70 = vld [vmem:[#allocation3 + $0x38] sm:$0xff]
    %v71 = vld [vmem:[#allocation3 + $0x40] sm:$0xff]
    %v72 = vld [vmem:[#allocation3 + $0x48] sm:$0xff]
    %v73 = vld [vmem:[#allocation3 + $0x50] sm:$0xff]
    %v74 = vld [vmem:[#allocation3 + $0x58] sm:$0xff]
    %v75 = vld [vmem:[#allocation3 + $0x60] sm:$0xff]
    %v76 = vld [vmem:[#allocation3 + $0x68] sm:$0xff]
    %v77 = vld [vmem:[#allocation3 + $0x70] sm:$0xff]
    %v78 = vld [vmem:[#allocation3 + $0x78] sm:$0xff]
    %v79 = vld [vmem:[%s2] sm:$0xff]
    %v80 = vld [vmem:[%s2 + $0x8] sm:$0xff]
    %v81 = vld [vmem:[%s2 + $0x10] sm:$0xff]
    %v82 = vld [vmem:[%s2 + $0x18] sm:$0xff]
    %v83 = vld [vmem:[%s2 + $0x20] sm:$0xff]
    %v84 = vld [vmem:[%s2 + $0x28] sm:$0xff]
    %v85 = vld [vmem:[%s2 + $0x30] sm:$0xff]
    %v86 = vld [vmem:[%s2 + $0x38] sm:$0xff]
    %v87 = vld [vmem:[%s2 + $0x40] sm:$0xff]
    %v88 = vld [vmem:[%s2 + $0x48] sm:$0xff]
    %v89 = vld [vmem:[%s2 + $0x50] sm:$0xff]
    %v90 = vld [vmem:[%s2 + $0x58] sm:$0xff]
    %v91 = vld [vmem:[%s2 + $0x60] sm:$0xff]
    %v92 = vld [vmem:[%s2 + $0x68] sm:$0xff]
    %v93 = vld [vmem:[%s2 + $0x70] sm:$0xff]
    %v94 = vld [vmem:[%s2 + $0x78] sm:$0xff]
    %95 = vmatprep.subr.mxu0 0.0
    %96 = vmatpush1.msra.mxu0 %v79
    %97 = vmatprep.subr.mxu0 0.0
    %98 = vmatpush1.msra.mxu0 %v80
    %99 = vmatprep.subr.mxu0 0.0
    %100 = vmatpush1.msra.mxu0 %v81
    %101 = vmatprep.subr.mxu0 0.0
    %102 = vmatpush1.msra.mxu0 %v82
    %103 = vmatprep.subr.mxu0 0.0
    %104 = vmatpush1.msra.mxu0 %v83
    %105 = vmatprep.subr.mxu0 0.0
    %106 = vmatpush1.msra.mxu0 %v84
    %107 = vmatprep.subr.mxu0 0.0
    %108 = vmatpush1.msra.mxu0 %v85
    %109 = vmatprep.subr.mxu0 0.0
    %110 = vmatpush1.msra.mxu0 %v86
    %111 = vmatprep.subr.mxu0 0.0
    %112 = vmatpush1.msra.mxu0 %v87
    %113 = vmatprep.subr.mxu0 0.0
    %114 = vmatpush1.msra.mxu0 %v88
    %115 = vmatprep.subr.mxu0 0.0
    %116 = vmatpush1.msra.mxu0 %v89
    %117 = vmatprep.subr.mxu0 0.0
    %118 = vmatpush1.msra.mxu0 %v90
    %119 = vmatprep.subr.mxu0 0.0
    %120 = vmatpush1.msra.mxu0 %v91
    %121 = vmatprep.subr.mxu0 0.0
    %122 = vmatpush1.msra.mxu0 %v92
    %123 = vmatprep.subr.mxu0 0.0
    %124 = vmatpush1.msra.mxu0 %v93
    %125 = vmatprep.subr.mxu0 0.0
    %126 = vmatpush1.msra.mxu0 %v94
    %127 = vmatprep.subr.mxu0 0.0
    %128 = vmatpush1.msra.mxu0 0.0
    %129 = vmatprep.subr.mxu0 0.0
    %130 = vmatpush1.msra.mxu0 0.0
    %131 = vmatprep.subr.mxu0 0.0
    %132 = vmatpush1.msra.mxu0 0.0
    %133 = vmatprep.subr.mxu0 0.0
    %134 = vmatpush1.msra.mxu0 0.0
    %135 = vmatprep.subr.mxu0 0.0
    %136 = vmatpush1.msra.mxu0 0.0
    %137 = vmatprep.subr.mxu0 0.0
    %138 = vmatpush1.msra.mxu0 0.0
    %139 = vmatprep.subr.mxu0 0.0
    %140 = vmatpush1.msra.mxu0 0.0
    %141 = vmatprep.subr.mxu0 0.0
    %142 = vmatpush1.msra.mxu0 0.0
    %143 = vmatprep.subr.mxu0 0.0
    %144 = vmatpush1.msra.mxu0 0.0
    %145 = vmatprep.subr.mxu0 0.0
    %146 = vmatpush1.msra.mxu0 0.0
    %147 = vmatprep.subr.mxu0 0.0
    %148 = vmatpush1.msra.mxu0 0.0
    %149 = vmatprep.subr.mxu0 0.0
    %150 = vmatpush1.msra.mxu0 0.0
    %151 = vmatprep.subr.mxu0 0.0
    %152 = vmatpush1.msra.mxu0 0.0
    %153 = vmatprep.subr.mxu0 0.0
    %154 = vmatpush1.msra.mxu0 0.0
    %155 = vmatprep.subr.mxu0 0.0
    %156 = vmatpush1.msra.mxu0 0.0
    %157 = vmatprep.subr.mxu0 0.0
    %158 = vmatpush1.msra.mxu0 0.0
    %159 = vmatprep.mubr.f32.mxu0 0.0
    %160 = vmatmul.mubr.f32.gmra.mrb[0].mxu0 %v63
    %v161 = vpop.f32.mrb[0].mxu0
    %v162 = vadd.f32 0.0, %v161
    %v163 = vpop.f32.mrb[0].mxu0
    %164 = vmatprep.mubr.f32.mxu0 0.0
    %165 = vmatmul.mubr.f32.gmra.mrb[0].mxu0 %v64
    %v166 = vpop.f32.mrb[0].mxu0
    %v167 = vadd.f32 0.0, %v166
    %v168 = vpop.f32.mrb[0].mxu0
    %169 = vmatprep.mubr.f32.mxu0 0.0
    %170 = vmatmul.mubr.f32.gmra.mrb[0].mxu0 %v65
    %v171 = vpop.f32.mrb[0].mxu0
    %v172 = vadd.f32 0.0, %v171
    %v173 = vpop.f32.mrb[0].mxu0
    %174 = vmatprep.mubr.f32.mxu0 0.0
    %175 = vmatmul.mubr.f32.gmra.mrb[0].mxu0 %v66
    %v176 = vpop.f32.mrb[0].mxu0
    %v177 = vadd.f32 0.0, %v176
    %v178 = vpop.f32.mrb[0].mxu0
    %179 = vmatprep.mubr.f32.mxu0 0.0
    %180 = vmatmul.mubr.f32.gmra.mrb[0].mxu0 %v67
    %v181 = vpop.f32.mrb[0].mxu0
    %v182 = vadd.f32 0.0, %v181
    %v183 = vpop.f32.mrb[0].mxu0
    %184 = vmatprep.mubr.f32.mxu0 0.0
    %185 = vmatmul.mubr.f32.gmra.mrb[0].mxu0 %v68
    %v186 = vpop.f32.mrb[0].mxu0
    %v187 = vadd.f32 0.0, %v186
    %v188 = vpop.f32.mrb[0].mxu0
    %189 = vmatprep.mubr.f32.mxu0 0.0
    %190 = vmatmul.mubr.f32.gmra.mrb[0].mxu0 %v69
    %v191 = vpop.f32.mrb[0].mxu0
    %v192 = vadd.f32 0.0, %v191
    %v193 = vpop.f32.mrb[0].mxu0
    %194 = vmatprep.mubr.f32.mxu0 0.0
    %195 = vmatmul.mubr.f32.gmra.mrb[0].mxu0 %v70
    %v196 = vpop.f32.mrb[0].mxu0
    %v197 = vadd.f32 0.0, %v196
    %v198 = vpop.f32.mrb[0].mxu0
    %199 = vmatprep.mubr.f32.mxu0 0.0
    %200 = vmatmul.mubr.f32.gmra.mrb[0].mxu0 %v71
    %v201 = vpop.f32.mrb[0].mxu0
    %v202 = vadd.f32 0.0, %v201
    %v203 = vpop.f32.mrb[0].mxu0
    %204 = vmatprep.mubr.f32.mxu0 0.0
    %205 = vmatmul.mubr.f32.gmra.mrb[0].mxu0 %v72
    %v206 = vpop.f32.mrb[0].mxu0
    %v207 = vadd.f32 0.0, %v206
    %v208 = vpop.f32.mrb[0].mxu0
    %209 = vmatprep.mubr.f32.mxu0 0.0
    %210 = vmatmul.mubr.f32.gmra.mrb[0].mxu0 %v73
    %v211 = vpop.f32.mrb[0].mxu0
    %v212 = vadd.f32 0.0, %v211
    %v213 = vpop.f32.mrb[0].mxu0
    %214 = vmatprep.mubr.f32.mxu0 0.0
    %215 = vmatmul.mubr.f32.gmra.mrb[0].mxu0 %v74
    %v216 = vpop.f32.mrb[0].mxu0
    %v217 = vadd.f32 0.0, %v216
    %v218 = vpop.f32.mrb[0].mxu0
    %219 = vmatprep.mubr.f32.mxu0 0.0
    %220 = vmatmul.mubr.f32.gmra.mrb[0].mxu0 %v75
    %v221 = vpop.f32.mrb[0].mxu0
    %v222 = vadd.f32 0.0, %v221
    %v223 = vpop.f32.mrb[0].mxu0
    %224 = vmatprep.mubr.f32.mxu0 0.0
    %225 = vmatmul.mubr.f32.gmra.mrb[0].mxu0 %v76
    %v226 = vpop.f32.mrb[0].mxu0
    %v227 = vadd.f32 0.0, %v226
    %v228 = vpop.f32.mrb[0].mxu0
    %229 = vmatprep.mubr.f32.mxu0 0.0
    %230 = vmatmul.mubr.f32.gmra.mrb[0].mxu0 %v77
    %v231 = vpop.f32.mrb[0].mxu0
    %v232 = vadd.f32 0.0, %v231
    %v233 = vpop.f32.mrb[0].mxu0
    %234 = vmatprep.mubr.f32.mxu0 0.0
    %235 = vmatmul.mubr.f32.gmra.mrb[0].mxu0 %v78
    %v236 = vpop.f32.mrb[0].mxu0
    %v237 = vadd.f32 0.0, %v236
    %v238 = vpop.f32.mrb[0].mxu0
    %239 = vdwg.mxu0
    %v240 = vpack.c.bf16 %v167, %v162
    %v241 = vpack.c.bf16 %v177, %v172
    %v242 = vpack.c.bf16 %v187, %v182
    %v243 = vpack.c.bf16 %v197, %v192
    %v244 = vpack.c.bf16 %v207, %v202
    %v245 = vpack.c.bf16 %v217, %v212
    %v246 = vpack.c.bf16 %v227, %v222
    %v247 = vpack.c.bf16 %v237, %v232
    %248 = vst [vmem:[#allocation4] sm:$0xff] %v240
    %249 = vst [vmem:[#allocation4 + $0x8] sm:$0xff] %v241
    %250 = vst [vmem:[#allocation4 + $0x10] sm:$0xff] %v242
    %251 = vst [vmem:[#allocation4 + $0x18] sm:$0xff] %v243
    %252 = vst [vmem:[#allocation4 + $0x20] sm:$0xff] %v244
    %253 = vst [vmem:[#allocation4 + $0x28] sm:$0xff] %v245
    %254 = vst [vmem:[#allocation4 + $0x30] sm:$0xff] %v246
    %255 = vst [vmem:[#allocation4 + $0x38] sm:$0xff] %v247
  $region25: #{extract_cl_forward.9} parent=0 // pred_fallthru
    _
  // Predicated region
  $region26: #{extract_cl_forward.9} parent=0 // pred_check
    %p256 = pneg %p22
  $region27: #{extract_cl_forward.9} parent=0 // pred_check_branch
    %258 = sbr.rel (%p256) target = $region29
  $region28: #{extract_cl_forward.9} parent=0 // pred_region
    %259 = vst [vmem:[#allocation2] sm:$0xff] 0.0
    %260 = vst [vmem:[#allocation2 + $0x8] sm:$0xff] 0.0
    %261 = vst [vmem:[#allocation2 + $0x10] sm:$0xff] 0.0
    %262 = vst [vmem:[#allocation2 + $0x18] sm:$0xff] 0.0
    %263 = vst [vmem:[#allocation2 + $0x20] sm:$0xff] 0.0
    %264 = vst [vmem:[#allocation2 + $0x28] sm:$0xff] 0.0
    %265 = vst [vmem:[#allocation2 + $0x30] sm:$0xff] 0.0
    %266 = vst [vmem:[#allocation2 + $0x38] sm:$0xff] 0.0
    %267 = vst [vmem:[#allocation2 + $0x40] sm:$0xff] 0.0
    %268 = vst [vmem:[#allocation2 + $0x48] sm:$0xff] 0.0
    %269 = vst [vmem:[#allocation2 + $0x50] sm:$0xff] 0.0
    %270 = vst [vmem:[#allocation2 + $0x58] sm:$0xff] 0.0
    %271 = vst [vmem:[#allocation2 + $0x60] sm:$0xff] 0.0
    %272 = vst [vmem:[#allocation2 + $0x68] sm:$0xff] 0.0
    %273 = vst [vmem:[#allocation2 + $0x70] sm:$0xff] 0.0
    %274 = vst [vmem:[#allocation2 + $0x78] sm:$0xff] 0.0
  $region29: #{extract_cl_forward.9} parent=0 // pred_fallthru
    _
  %s275 = smul.u32 0, 128
  %v276 = vld [vmem:[#allocation2] sm:$0xff]
  %v277 = vld [vmem:[#allocation2 + $0x8] sm:$0xff]
  %v278 = vld [vmem:[#allocation2 + $0x10] sm:$0xff]
  %v279 = vld [vmem:[#allocation2 + $0x18] sm:$0xff]
  %v280 = vld [vmem:[#allocation2 + $0x20] sm:$0xff]
  %v281 = vld [vmem:[#allocation2 + $0x28] sm:$0xff]
  %v282 = vld [vmem:[#allocation2 + $0x30] sm:$0xff]
  %v283 = vld [vmem:[#allocation2 + $0x38] sm:$0xff]
  %v284 = vld [vmem:[#allocation2 + $0x40] sm:$0xff]
  %v285 = vld [vmem:[#allocation2 + $0x48] sm:$0xff]
  %v286 = vld [vmem:[#allocation2 + $0x50] sm:$0xff]
  %v287 = vld [vmem:[#allocation2 + $0x58] sm:$0xff]
  %v288 = vld [vmem:[#allocation2 + $0x60] sm:$0xff]
  %v289 = vld [vmem:[#allocation2 + $0x68] sm:$0xff]
  %v290 = vld [vmem:[#allocation2 + $0x70] sm:$0xff]
  %v291 = vld [vmem:[#allocation2 + $0x78] sm:$0xff]
  %v292 = vld [vmem:[%s0] sm:$0xf]
  %v293 = vld [vmem:[%s0 + $0x4] sm:$0xf]
  %v294 = vld [vmem:[%s0 + $0x8] sm:$0xf]
  %v295 = vld [vmem:[%s0 + $0xc] sm:$0xf]
  %v296 = vld [vmem:[%s0 + $0x10] sm:$0xf]
  %v297 = vld [vmem:[%s0 + $0x14] sm:$0xf]
  %v298 = vld [vmem:[%s0 + $0x18] sm:$0xf]
  %v299 = vld [vmem:[%s0 + $0x1c] sm:$0xf]
  %v300 = vld [vmem:[%s0 + $0x20] sm:$0xf]
  %v301 = vld [vmem:[%s0 + $0x24] sm:$0xf]
  %v302 = vld [vmem:[%s0 + $0x28] sm:$0xf]
  %v303 = vld [vmem:[%s0 + $0x2c] sm:$0xf]
  %v304 = vld [vmem:[%s0 + $0x30] sm:$0xf]
  %v305 = vld [vmem:[%s0 + $0x34] sm:$0xf]
  %v306 = vld [vmem:[%s0 + $0x38] sm:$0xf]
  %v307 = vld [vmem:[%s0 + $0x3c] sm:$0xf]
  %s308 = sshra.s32 %s275, 4
  %s309 = sand.u32 %s275, 15
  %s310 = smul.addr %s308, 8
  %s311 = scalar_lea.vmem [#allocation4], %s310
  %v312 = vld [vmem:[%s311] sm:$0xff]
  %v313 = vld [vmem:[%s311 + $0x8] sm:$0xff]
  %v314 = vld [vmem:[%s311 + $0x10] sm:$0xff]
  %v315 = vld [vmem:[%s311 + $0x18] sm:$0xff]
  %v316 = vld [vmem:[%s311 + $0x20] sm:$0xff]
  %v317 = vld [vmem:[%s311 + $0x28] sm:$0xff]
  %v318 = vld [vmem:[%s311 + $0x30] sm:$0xff]
  %v319 = vld [vmem:[%s311 + $0x38] sm:$0xff]
  %v336 = vunpack.c.l.b16 %v292
  %v337 = vunpack.c.l.b16 %v293
  %v338 = vunpack.c.l.b16 %v294
  %v339 = vunpack.c.l.b16 %v295
  %v340 = vunpack.c.l.b16 %v296
  %v341 = vunpack.c.l.b16 %v297
  %v342 = vunpack.c.l.b16 %v298
  %v343 = vunpack.c.l.b16 %v299
  %v344 = vunpack.c.l.b16 %v300
  %v345 = vunpack.c.l.b16 %v301
  %v346 = vunpack.c.l.b16 %v302
  %v347 = vunpack.c.l.b16 %v303
  %v348 = vunpack.c.l.b16 %v304
  %v349 = vunpack.c.l.b16 %v305
  %v350 = vunpack.c.l.b16 %v306
  %v351 = vunpack.c.l.b16 %v307
  %v352 = vpack.c.b16 %v337, %v336
  %v353 = vpack.c.b16 %v339, %v338
  %v354 = vpack.c.b16 %v341, %v340
  %v355 = vpack.c.b16 %v343, %v342
  %v356 = vpack.c.b16 %v345, %v344
  %v357 = vpack.c.b16 %v347, %v346
  %v358 = vpack.c.b16 %v349, %v348
  %v359 = vpack.c.b16 %v351, %v350
  %368 = vmatprep.subr.bf16.mxu0 0
  %369 = vmatpush1.bf16.msra.mxu0 %v312
  %370 = vmatprep.subr.bf16.mxu0 0
  %371 = vmatpush1.bf16.msra.mxu0 %v313
  %372 = vmatprep.subr.bf16.mxu0 0
  %373 = vmatpush1.bf16.msra.mxu0 %v314
  %374 = vmatprep.subr.bf16.mxu0 0
  %375 = vmatpush1.bf16.msra.mxu0 %v315
  %376 = vmatprep.subr.bf16.mxu0 0
  %377 = vmatpush1.bf16.msra.mxu0 %v316
  %378 = vmatprep.subr.bf16.mxu0 0
  %379 = vmatpush1.bf16.msra.mxu0 %v317
  %380 = vmatprep.subr.bf16.mxu0 0
  %381 = vmatpush1.bf16.msra.mxu0 %v318
  %382 = vmatprep.subr.bf16.mxu0 0
  %383 = vmatpush1.bf16.msra.mxu0 %v319
  %384 = vmatprep.subr.bf16.mxu0 0
  %385 = vmatpush1.bf16.msra.mxu0 0
  %386 = vmatprep.subr.bf16.mxu0 0
  %387 = vmatpush1.bf16.msra.mxu0 0
  %388 = vmatprep.subr.bf16.mxu0 0
  %389 = vmatpush1.bf16.msra.mxu0 0
  %390 = vmatprep.subr.bf16.mxu0 0
  %391 = vmatpush1.bf16.msra.mxu0 0
  %392 = vmatprep.subr.bf16.mxu0 0
  %393 = vmatpush1.bf16.msra.mxu0 0
  %394 = vmatprep.subr.bf16.mxu0 0
  %395 = vmatpush1.bf16.msra.mxu0 0
  %396 = vmatprep.subr.bf16.mxu0 0
  %397 = vmatpush1.bf16.msra.mxu0 0
  %398 = vmatprep.subr.bf16.mxu0 0
  %399 = vmatpush1.bf16.msra.mxu0 0
  %400 = vmatprep.mubr.bf16.mxu0 0
  %401 = vmatmul.mubr.bf16.gmra.mrb[0].mxu0 %v352
  %v402 = vpop.f32.mrb[0].mxu0
  %v403 = vadd.f32 0.0, %v402
  %v404 = vpop.f32.mrb[0].mxu0
  %v405 = vpop.f32.mrb[0].mxu0
  %v406 = vadd.f32 0.0, %v405
  %v407 = vpop.f32.mrb[0].mxu0
  %408 = vmatprep.mubr.bf16.mxu0 0
  %409 = vmatmul.mubr.bf16.gmra.mrb[0].mxu0 %v353
  %v410 = vpop.f32.mrb[0].mxu0
  %v411 = vadd.f32 0.0, %v410
  %v412 = vpop.f32.mrb[0].mxu0
  %v413 = vpop.f32.mrb[0].mxu0
  %v414 = vadd.f32 0.0, %v413
  %v415 = vpop.f32.mrb[0].mxu0
  %416 = vmatprep.mubr.bf16.mxu0 0
  %417 = vmatmul.mubr.bf16.gmra.mrb[0].mxu0 %v354
  %v418 = vpop.f32.mrb[0].mxu0
  %v419 = vadd.f32 0.0, %v418
  %v420 = vpop.f32.mrb[0].mxu0
  %v421 = vpop.f32.mrb[0].mxu0
  %v422 = vadd.f32 0.0, %v421
  %v423 = vpop.f32.mrb[0].mxu0
  %424 = vmatprep.mubr.bf16.mxu0 0
  %425 = vmatmul.mubr.bf16.gmra.mrb[0].mxu0 %v355
  %v426 = vpop.f32.mrb[0].mxu0
  %v427 = vadd.f32 0.0, %v426
  %v428 = vpop.f32.mrb[0].mxu0
  %v429 = vpop.f32.mrb[0].mxu0
  %v430 = vadd.f32 0.0, %v429
  %v431 = vpop.f32.mrb[0].mxu0
  %432 = vmatprep.mubr.bf16.mxu0 0
  %433 = vmatmul.mubr.bf16.gmra.mrb[0].mxu0 %v356
  %v434 = vpop.f32.mrb[0].mxu0
  %v435 = vadd.f32 0.0, %v434
  %v436 = vpop.f32.mrb[0].mxu0
  %v437 = vpop.f32.mrb[0].mxu0
  %v438 = vadd.f32 0.0, %v437
  %v439 = vpop.f32.mrb[0].mxu0
  %440 = vmatprep.mubr.bf16.mxu0 0
  %441 = vmatmul.mubr.bf16.gmra.mrb[0].mxu0 %v357
  %v442 = vpop.f32.mrb[0].mxu0
  %v443 = vadd.f32 0.0, %v442
  %v444 = vpop.f32.mrb[0].mxu0
  %v445 = vpop.f32.mrb[0].mxu0
  %v446 = vadd.f32 0.0, %v445
  %v447 = vpop.f32.mrb[0].mxu0
  %448 = vmatprep.mubr.bf16.mxu0 0
  %449 = vmatmul.mubr.bf16.gmra.mrb[0].mxu0 %v358
  %v450 = vpop.f32.mrb[0].mxu0
  %v451 = vadd.f32 0.0, %v450
  %v452 = vpop.f32.mrb[0].mxu0
  %v453 = vpop.f32.mrb[0].mxu0
  %v454 = vadd.f32 0.0, %v453
  %v455 = vpop.f32.mrb[0].mxu0
  %456 = vmatprep.mubr.bf16.mxu0 0
  %457 = vmatmul.mubr.bf16.gmra.mrb[0].mxu0 %v359
  %v458 = vpop.f32.mrb[0].mxu0
  %v459 = vadd.f32 0.0, %v458
  %v460 = vpop.f32.mrb[0].mxu0
  %v461 = vpop.f32.mrb[0].mxu0
  %v462 = vadd.f32 0.0, %v461
  %v463 = vpop.f32.mrb[0].mxu0
  %464 = vdwg.mxu0
  %v465 = vadd.f32 %v276, %v403
  %v466 = vadd.f32 %v277, %v406
  %v467 = vadd.f32 %v278, %v411
  %v468 = vadd.f32 %v279, %v414
  %v469 = vadd.f32 %v280, %v419
  %v470 = vadd.f32 %v281, %v422
  %v471 = vadd.f32 %v282, %v427
  %v472 = vadd.f32 %v283, %v430
  %v473 = vadd.f32 %v284, %v435
  %v474 = vadd.f32 %v285, %v438
  %v475 = vadd.f32 %v286, %v443
  %v476 = vadd.f32 %v287, %v446
  %v477 = vadd.f32 %v288, %v451
  %v478 = vadd.f32 %v289, %v454
  %v479 = vadd.f32 %v290, %v459
  %v480 = vadd.f32 %v291, %v462
  %481 = vst [vmem:[#allocation2] sm:$0xff] %v465
  %482 = vst [vmem:[#allocation2 + $0x8] sm:$0xff] %v466
  %483 = vst [vmem:[#allocation2 + $0x10] sm:$0xff] %v467
  %484 = vst [vmem:[#allocation2 + $0x18] sm:$0xff] %v468
  %485 = vst [vmem:[#allocation2 + $0x20] sm:$0xff] %v469
  %486 = vst [vmem:[#allocation2 + $0x28] sm:$0xff] %v470
  %487 = vst [vmem:[#allocation2 + $0x30] sm:$0xff] %v471
  %488 = vst [vmem:[#allocation2 + $0x38] sm:$0xff] %v472
  %489 = vst [vmem:[#allocation2 + $0x40] sm:$0xff] %v473
  %490 = vst [vmem:[#allocation2 + $0x48] sm:$0xff] %v474
  %491 = vst [vmem:[#allocation2 + $0x50] sm:$0xff] %v475
  %492 = vst [vmem:[#allocation2 + $0x58] sm:$0xff] %v476
  %493 = vst [vmem:[#allocation2 + $0x60] sm:$0xff] %v477
  %494 = vst [vmem:[#allocation2 + $0x68] sm:$0xff] %v478
  %495 = vst [vmem:[#allocation2 + $0x70] sm:$0xff] %v479
  %496 = vst [vmem:[#allocation2 + $0x78] sm:$0xff] %v480
  // Predicated region
  $region30: #{extract_cl_forward.9} parent=0 // pred_check
    %p497 = pneg %p22
  $region31: #{extract_cl_forward.9} parent=0 // pred_check_branch
    %499 = sbr.rel (%p497) target = $region33
  $region32: #{extract_cl_forward.9} parent=0 // pred_region
    %v500 = vld [vmem:[#allocation2] sm:$0xff]
    %v501 = vld [vmem:[#allocation2 + $0x8] sm:$0xff]
    %v502 = vld [vmem:[#allocation2 + $0x10] sm:$0xff]
    %v503 = vld [vmem:[#allocation2 + $0x18] sm:$0xff]
    %v504 = vld [vmem:[#allocation2 + $0x20] sm:$0xff]
    %v505 = vld [vmem:[#allocation2 + $0x28] sm:$0xff]
    %v506 = vld [vmem:[#allocation2 + $0x30] sm:$0xff]
    %v507 = vld [vmem:[#allocation2 + $0x38] sm:$0xff]
    %v508 = vld [vmem:[#allocation2 + $0x40] sm:$0xff]
    %v509 = vld [vmem:[#allocation2 + $0x48] sm:$0xff]
    %v510 = vld [vmem:[#allocation2 + $0x50] sm:$0xff]
    %v511 = vld [vmem:[#allocation2 + $0x58] sm:$0xff]
    %v512 = vld [vmem:[#allocation2 + $0x60] sm:$0xff]
    %v513 = vld [vmem:[#allocation2 + $0x68] sm:$0xff]
    %v514 = vld [vmem:[#allocation2 + $0x70] sm:$0xff]
    %v515 = vld [vmem:[#allocation2 + $0x78] sm:$0xff]
    %v516 = vld [vmem:[%s3] sm:$0x1]
    %v518 = vlaneseq
    %v519 = vshrl.u32 %v518, 7
    %v520 = vsub.s32 0, %v519
    %v521 = vrot.slane %v516, %v520
    %v523 = vadd.f32 %v500, %v521
    %v524 = vadd.f32 %v501, %v521
    %v525 = vadd.f32 %v502, %v521
    %v526 = vadd.f32 %v503, %v521
    %v527 = vadd.f32 %v504, %v521
    %v528 = vadd.f32 %v505, %v521
    %v529 = vadd.f32 %v506, %v521
    %v530 = vadd.f32 %v507, %v521
    %v531 = vadd.f32 %v508, %v521
    %v532 = vadd.f32 %v509, %v521
    %v533 = vadd.f32 %v510, %v521
    %v534 = vadd.f32 %v511, %v521
    %v535 = vadd.f32 %v512, %v521
    %v536 = vadd.f32 %v513, %v521
    %v537 = vadd.f32 %v514, %v521
    %v538 = vadd.f32 %v515, %v521
    %v539 = vtanh.pop %v523
    %v540 = vtanh.pop %v524
    %v541 = vtanh.pop %v525
    %v542 = vtanh.pop %v526
    %v543 = vtanh.pop %v527
    %v544 = vtanh.pop %v528
    %v545 = vtanh.pop %v529
    %v546 = vtanh.pop %v530
    %v547 = vtanh.pop %v531
    %v548 = vtanh.pop %v532
    %v549 = vtanh.pop %v533
    %v550 = vtanh.pop %v534
    %v551 = vtanh.pop %v535
    %v552 = vtanh.pop %v536
    %v553 = vtanh.pop %v537
    %v554 = vtanh.pop %v538
    %s555 = smul.u32 0, 128
    %s556 = scalar_lea.vmem [#allocation3], %s555
    %557 = vst [vmem:[%s556] sm:$0xff] %v539
    %558 = vst [vmem:[%s556 + $0x8] sm:$0xff] %v540
    %559 = vst [vmem:[%s556 + $0x10] sm:$0xff] %v541
    %560 = vst [vmem:[%s556 + $0x18] sm:$0xff] %v542
    %561 = vst [vmem:[%s556 + $0x20] sm:$0xff] %v543
    %562 = vst [vmem:[%s556 + $0x28] sm:$0xff] %v544
    %563 = vst [vmem:[%s556 + $0x30] sm:$0xff] %v545
    %564 = vst [vmem:[%s556 + $0x38] sm:$0xff] %v546
    %565 = vst [vmem:[%s556 + $0x40] sm:$0xff] %v547
    %566 = vst [vmem:[%s556 + $0x48] sm:$0xff] %v548
    %567 = vst [vmem:[%s556 + $0x50] sm:$0xff] %v549
    %568 = vst [vmem:[%s556 + $0x58] sm:$0xff] %v550
    %569 = vst [vmem:[%s556 + $0x60] sm:$0xff] %v551
    %570 = vst [vmem:[%s556 + $0x68] sm:$0xff] %v552
    %571 = vst [vmem:[%s556 + $0x70] sm:$0xff] %v553
    %572 = vst [vmem:[%s556 + $0x78] sm:$0xff] %v554
    %573 = vst [vmem:[%s4] sm:$0xff] %v539
    %574 = vst [vmem:[%s4 + $0x8] sm:$0xff] %v540
    %575 = vst [vmem:[%s4 + $0x10] sm:$0xff] %v541
    %576 = vst [vmem:[%s4 + $0x18] sm:$0xff] %v542
    %577 = vst [vmem:[%s4 + $0x20] sm:$0xff] %v543
    %578 = vst [vmem:[%s4 + $0x28] sm:$0xff] %v544
    %579 = vst [vmem:[%s4 + $0x30] sm:$0xff] %v545
    %580 = vst [vmem:[%s4 + $0x38] sm:$0xff] %v546
    %581 = vst [vmem:[%s4 + $0x40] sm:$0xff] %v547
    %582 = vst [vmem:[%s4 + $0x48] sm:$0xff] %v548
    %583 = vst [vmem:[%s4 + $0x50] sm:$0xff] %v549
    %584 = vst [vmem:[%s4 + $0x58] sm:$0xff] %v550
    %585 = vst [vmem:[%s4 + $0x60] sm:$0xff] %v551
    %586 = vst [vmem:[%s4 + $0x68] sm:$0xff] %v552
    %587 = vst [vmem:[%s4 + $0x70] sm:$0xff] %v553
    %588 = vst [vmem:[%s4 + $0x78] sm:$0xff] %v554
  $region33: #{extract_cl_forward.9} parent=0 // pred_fallthru
    _
  // Predicated region
  $region34: #{extract_cl_forward.9} parent=0 // pred_check
    _
  $region35: #{extract_cl_forward.9} parent=0 // pred_check_branch
    %590 = sbr.rel (0) target = $region37
  $region36: #{extract_cl_forward.9} parent=0 // pred_region
    _
  $region37: #{extract_cl_forward.9} parent=0 // pred_fallthru
    _
  // Predicated region
  $region38: #{extract_cl_forward.9} parent=0 // pred_check
    _
  $region39: #{extract_cl_forward.9} parent=0 // pred_check_branch
    %592 = sbr.rel (0) target = $region41
  $region40: #{extract_cl_forward.9} parent=0 // pred_region
    _
  $region41: #{extract_cl_forward.9} parent=0 // pred_fallthru
    _

// kernel: extract_cl_forward.8
$region0: #{extract_cl_forward.8}
  #allocation0 [shape = 'u32[]', space=smem, size = 0x4, offset = 0x4, fixed_abs, tag = 'smem constant byte address 0x4 - core index']
  #allocation1 [shape = 'u32[144,128]{1,0:T(1,128)}', space=vmem, size = 0x12000, scoped, tag = 'internal scratch']
  %s0 = inlined_call_operand.vmem [shape: bf16[128,128], index: 0, kind: input, shape index: {}, may-alias: {0,1}]
  %s1 = inlined_call_operand.vmem [shape: bf16[128,128], index: 1, kind: input, shape index: {}, may-alias: {0,1}]
  %s2 = inlined_call_operand.vmem [shape: f32[128,1], index: 2, kind: input, shape index: {}]
  %s3 = inlined_call_operand.vmem [shape: f32[1,128], index: 3, kind: input, shape index: {}]
  %s4 = inlined_call_operand.vmem [shape: f32[128,128], index: 4, kind: output, shape index: {}]
  %s5 = sld [smem:[#allocation0]]
  $region26: #{extract_cl_forward.8} parent=0
    _
  %s7 = ssub.s32 1, %s5
  %s8 = scalar_select 0, %s7, %s5
  // Predicated region
  $region2: #{extract_cl_forward.8} parent=0 // pred_check
    _
  $region3: #{extract_cl_forward.8} parent=0 // pred_check_branch
    %10 = sbr.rel (0) target = $region5
  $region4: #{extract_cl_forward.8} parent=0 // pred_region
    _
  $region5: #{extract_cl_forward.8} parent=0 // pred_fallthru
    _
  // Predicated region
  $region6: #{extract_cl_forward.8} parent=0 // pred_check
    _
  $region7: #{extract_cl_forward.8} parent=0 // pred_check_branch
    %12 = sbr.rel (0) target = $region9
  $region8: #{extract_cl_forward.8} parent=0 // pred_region
    _
  $region9: #{extract_cl_forward.8} parent=0 // pred_fallthru
    _
  // Predicated region
  $region10: #{extract_cl_forward.8} parent=0 // pred_check
    _
  $region11: #{extract_cl_forward.8} parent=0 // pred_check_branch
    %14 = sbr.rel (0) target = $region13
  $region12: #{extract_cl_forward.8} parent=0 // pred_region
    _
  $region13: #{extract_cl_forward.8} parent=0 // pred_fallthru
    _
  // Predicated region
  $region14: #{extract_cl_forward.8} parent=0 // pred_check
    _
  $region15: #{extract_cl_forward.8} parent=0 // pred_check_branch
    %16 = sbr.rel (0) target = $region17
  $region16: #{extract_cl_forward.8} parent=0 // pred_region
    _
  $region17: #{extract_cl_forward.8} parent=0 // pred_fallthru
    _
  %v18 = vld [vmem:[%s0] sm:$0xf]
  %v19 = vld [vmem:[%s0 + $0x4] sm:$0xf]
  %v20 = vld [vmem:[%s0 + $0x8] sm:$0xf]
  %v21 = vld [vmem:[%s0 + $0xc] sm:$0xf]
  %v22 = vld [vmem:[%s0 + $0x10] sm:$0xf]
  %v23 = vld [vmem:[%s0 + $0x14] sm:$0xf]
  %v24 = vld [vmem:[%s0 + $0x18] sm:$0xf]
  %v25 = vld [vmem:[%s0 + $0x1c] sm:$0xf]
  %v26 = vld [vmem:[%s0 + $0x20] sm:$0xf]
  %v27 = vld [vmem:[%s0 + $0x24] sm:$0xf]
  %v28 = vld [vmem:[%s0 + $0x28] sm:$0xf]
  %v29 = vld [vmem:[%s0 + $0x2c] sm:$0xf]
  %v30 = vld [vmem:[%s0 + $0x30] sm:$0xf]
  %v31 = vld [vmem:[%s0 + $0x34] sm:$0xf]
  %v32 = vld [vmem:[%s0 + $0x38] sm:$0xf]
  %v33 = vld [vmem:[%s0 + $0x3c] sm:$0xf]
  %v34 = vld [vmem:[%s1] sm:$0xf]
  %v35 = vld [vmem:[%s1 + $0x4] sm:$0xf]
  %v36 = vld [vmem:[%s1 + $0x8] sm:$0xf]
  %v37 = vld [vmem:[%s1 + $0xc] sm:$0xf]
  %v38 = vld [vmem:[%s1 + $0x10] sm:$0xf]
  %v39 = vld [vmem:[%s1 + $0x14] sm:$0xf]
  %v40 = vld [vmem:[%s1 + $0x18] sm:$0xf]
  %v41 = vld [vmem:[%s1 + $0x1c] sm:$0xf]
  %v42 = vld [vmem:[%s1 + $0x20] sm:$0xf]
  %v43 = vld [vmem:[%s1 + $0x24] sm:$0xf]
  %v44 = vld [vmem:[%s1 + $0x28] sm:$0xf]
  %v45 = vld [vmem:[%s1 + $0x2c] sm:$0xf]
  %v46 = vld [vmem:[%s1 + $0x30] sm:$0xf]
  %v47 = vld [vmem:[%s1 + $0x34] sm:$0xf]
  %v48 = vld [vmem:[%s1 + $0x38] sm:$0xf]
  %v49 = vld [vmem:[%s1 + $0x3c] sm:$0xf]
  %v66 = vunpack.c.l.b16 %v18
  %v67 = vunpack.c.l.b16 %v19
  %v68 = vunpack.c.l.b16 %v20
  %v69 = vunpack.c.l.b16 %v21
  %v70 = vunpack.c.l.b16 %v22
  %v71 = vunpack.c.l.b16 %v23
  %v72 = vunpack.c.l.b16 %v24
  %v73 = vunpack.c.l.b16 %v25
  %v74 = vunpack.c.l.b16 %v26
  %v75 = vunpack.c.l.b16 %v27
  %v76 = vunpack.c.l.b16 %v28
  %v77 = vunpack.c.l.b16 %v29
  %v78 = vunpack.c.l.b16 %v30
  %v79 = vunpack.c.l.b16 %v31
  %v80 = vunpack.c.l.b16 %v32
  %v81 = vunpack.c.l.b16 %v33
  %v82 = vpack.c.b16 %v67, %v66
  %v83 = vpack.c.b16 %v69, %v68
  %v84 = vpack.c.b16 %v71, %v70
  %v85 = vpack.c.b16 %v73, %v72
  %v86 = vpack.c.b16 %v75, %v74
  %v87 = vpack.c.b16 %v77, %v76
  %v88 = vpack.c.b16 %v79, %v78
  %v89 = vpack.c.b16 %v81, %v80
  %v114 = vunpack.c.l.b16 %v34
  %v115 = vunpack.c.l.b16 %v35
  %v116 = vunpack.c.l.b16 %v36
  %v117 = vunpack.c.l.b16 %v37
  %v118 = vunpack.c.l.b16 %v38
  %v119 = vunpack.c.l.b16 %v39
  %v120 = vunpack.c.l.b16 %v40
  %v121 = vunpack.c.l.b16 %v41
  %v122 = vunpack.c.l.b16 %v42
  %v123 = vunpack.c.l.b16 %v43
  %v124 = vunpack.c.l.b16 %v44
  %v125 = vunpack.c.l.b16 %v45
  %v126 = vunpack.c.l.b16 %v46
  %v127 = vunpack.c.l.b16 %v47
  %v128 = vunpack.c.l.b16 %v48
  %v129 = vunpack.c.l.b16 %v49
  %v130 = vpack.c.b16 %v115, %v114
  %v131 = vpack.c.b16 %v117, %v116
  %v132 = vpack.c.b16 %v119, %v118
  %v133 = vpack.c.b16 %v121, %v120
  %v134 = vpack.c.b16 %v123, %v122
  %v135 = vpack.c.b16 %v125, %v124
  %v136 = vpack.c.b16 %v127, %v126
  %v137 = vpack.c.b16 %v129, %v128
  %146 = vmatprep.subr.bf16.mxu0 0
  %147 = vmatpush1.bf16.xpose.msra.mxu0 %v130
  %148 = vmatprep.subr.bf16.mxu0 0
  %149 = vmatpush1.bf16.xpose.msra.mxu0 %v131
  %150 = vmatprep.subr.bf16.mxu0 0
  %151 = vmatpush1.bf16.xpose.msra.mxu0 %v132
  %152 = vmatprep.subr.bf16.mxu0 0
  %153 = vmatpush1.bf16.xpose.msra.mxu0 %v133
  %154 = vmatprep.subr.bf16.mxu0 0
  %155 = vmatpush1.bf16.xpose.msra.mxu0 %v134
  %156 = vmatprep.subr.bf16.mxu0 0
  %157 = vmatpush1.bf16.xpose.msra.mxu0 %v135
  %158 = vmatprep.subr.bf16.mxu0 0
  %159 = vmatpush1.bf16.xpose.msra.mxu0 %v136
  %160 = vmatprep.subr.bf16.mxu0 0
  %161 = vmatpush1.bf16.xpose.msra.mxu0 %v137
  %162 = vmatprep.subr.bf16.mxu0 0
  %163 = vmatpush1.bf16.xpose.msra.mxu0 0
  %164 = vmatprep.subr.bf16.mxu0 0
  %165 = vmatpush1.bf16.xpose.msra.mxu0 0
  %166 = vmatprep.subr.bf16.mxu0 0
  %167 = vmatpush1.bf16.xpose.msra.mxu0 0
  %168 = vmatprep.subr.bf16.mxu0 0
  %169 = vmatpush1.bf16.xpose.msra.mxu0 0
  %170 = vmatprep.subr.bf16.mxu0 0
  %171 = vmatpush1.bf16.xpose.msra.mxu0 0
  %172 = vmatprep.subr.bf16.mxu0 0
  %173 = vmatpush1.bf16.xpose.msra.mxu0 0
  %174 = vmatprep.subr.bf16.mxu0 0
  %175 = vmatpush1.bf16.xpose.msra.mxu0 0
  %176 = vmatprep.subr.bf16.mxu0 0
  %177 = vmatpush1.bf16.xpose.msra.mxu0 0
  %178 = vmatprep.mubr.bf16.mxu0 0
  %179 = vmatmul.mubr.bf16.gmra.mrb[0].mxu0 %v82
  %v180 = vpop.f32.mrb[0].mxu0
  %v181 = vadd.f32 0.0, %v180
  %v182 = vpop.f32.mrb[0].mxu0
  %v183 = vpop.f32.mrb[0].mxu0
  %v184 = vadd.f32 0.0, %v183
  %v185 = vpop.f32.mrb[0].mxu0
  %186 = vmatprep.mubr.bf16.mxu0 0
  %187 = vmatmul.mubr.bf16.gmra.mrb[0].mxu0 %v83
  %v188 = vpop.f32.mrb[0].mxu0
  %v189 = vadd.f32 0.0, %v188
  %v190 = vpop.f32.mrb[0].mxu0
  %v191 = vpop.f32.mrb[0].mxu0
  %v192 = vadd.f32 0.0, %v191
  %v193 = vpop.f32.mrb[0].mxu0
  %194 = vmatprep.mubr.bf16.mxu0 0
  %195 = vmatmul.mubr.bf16.gmra.mrb[0].mxu0 %v84
  %v196 = vpop.f32.mrb[0].mxu0
  %v197 = vadd.f32 0.0, %v196
  %v198 = vpop.f32.mrb[0].mxu0
  %v199 = vpop.f32.mrb[0].mxu0
  %v200 = vadd.f32 0.0, %v199
  %v201 = vpop.f32.mrb[0].mxu0
  %202 = vmatprep.mubr.bf16.mxu0 0
  %203 = vmatmul.mubr.bf16.gmra.mrb[0].mxu0 %v85
  %v204 = vpop.f32.mrb[0].mxu0
  %v205 = vadd.f32 0.0, %v204
  %v206 = vpop.f32.mrb[0].mxu0
  %v207 = vpop.f32.mrb[0].mxu0
  %v208 = vadd.f32 0.0, %v207
  %v209 = vpop.f32.mrb[0].mxu0
  %210 = vmatprep.mubr.bf16.mxu0 0
  %211 = vmatmul.mubr.bf16.gmra.mrb[0].mxu0 %v86
  %v212 = vpop.f32.mrb[0].mxu0
  %v213 = vadd.f32 0.0, %v212
  %v214 = vpop.f32.mrb[0].mxu0
  %v215 = vpop.f32.mrb[0].mxu0
  %v216 = vadd.f32 0.0, %v215
  %v217 = vpop.f32.mrb[0].mxu0
  %218 = vmatprep.mubr.bf16.mxu0 0
  %219 = vmatmul.mubr.bf16.gmra.mrb[0].mxu0 %v87
  %v220 = vpop.f32.mrb[0].mxu0
  %v221 = vadd.f32 0.0, %v220
  %v222 = vpop.f32.mrb[0].mxu0
  %v223 = vpop.f32.mrb[0].mxu0
  %v224 = vadd.f32 0.0, %v223
  %v225 = vpop.f32.mrb[0].mxu0
  %226 = vmatprep.mubr.bf16.mxu0 0
  %227 = vmatmul.mubr.bf16.gmra.mrb[0].mxu0 %v88
  %v228 = vpop.f32.mrb[0].mxu0
  %v229 = vadd.f32 0.0, %v228
  %v230 = vpop.f32.mrb[0].mxu0
  %v231 = vpop.f32.mrb[0].mxu0
  %v232 = vadd.f32 0.0, %v231
  %v233 = vpop.f32.mrb[0].mxu0
  %234 = vmatprep.mubr.bf16.mxu0 0
  %235 = vmatmul.mubr.bf16.gmra.mrb[0].mxu0 %v89
  %v236 = vpop.f32.mrb[0].mxu0
  %v237 = vadd.f32 0.0, %v236
  %v238 = vpop.f32.mrb[0].mxu0
  %v239 = vpop.f32.mrb[0].mxu0
  %v240 = vadd.f32 0.0, %v239
  %v241 = vpop.f32.mrb[0].mxu0
  %242 = vdwg.mxu0
  %v243 = vsub.f32 0.0, %v181
  %v244 = vsub.f32 0.0, %v184
  %v245 = vsub.f32 0.0, %v189
  %v246 = vsub.f32 0.0, %v192
  %v247 = vsub.f32 0.0, %v197
  %v248 = vsub.f32 0.0, %v200
  %v249 = vsub.f32 0.0, %v205
  %v250 = vsub.f32 0.0, %v208
  %v251 = vsub.f32 0.0, %v213
  %v252 = vsub.f32 0.0, %v216
  %v253 = vsub.f32 0.0, %v221
  %v254 = vsub.f32 0.0, %v224
  %v255 = vsub.f32 0.0, %v229
  %v256 = vsub.f32 0.0, %v232
  %v257 = vsub.f32 0.0, %v237
  %v258 = vsub.f32 0.0, %v240
  %v259 = vmul.f32 %v243, 1.442695
  %v260 = vpow.pop %v259
  %v261 = vmul.f32 %v244, 1.442695
  %v262 = vpow.pop %v261
  %v263 = vmul.f32 %v245, 1.442695
  %v264 = vpow.pop %v263
  %v265 = vmul.f32 %v246, 1.442695
  %v266 = vpow.pop %v265
  %v267 = vmul.f32 %v247, 1.442695
  %v268 = vpow.pop %v267
  %v269 = vmul.f32 %v248, 1.442695
  %v270 = vpow.pop %v269
  %v271 = vmul.f32 %v249, 1.442695
  %v272 = vpow.pop %v271
  %v273 = vmul.f32 %v250, 1.442695
  %v274 = vpow.pop %v273
  %v275 = vmul.f32 %v251, 1.442695
  %v276 = vpow.pop %v275
  %v277 = vmul.f32 %v252, 1.442695
  %v278 = vpow.pop %v277
  %v279 = vmul.f32 %v253, 1.442695
  %v280 = vpow.pop %v279
  %v281 = vmul.f32 %v254, 1.442695
  %v282 = vpow.pop %v281
  %v283 = vmul.f32 %v255, 1.442695
  %v284 = vpow.pop %v283
  %v285 = vmul.f32 %v256, 1.442695
  %v286 = vpow.pop %v285
  %v287 = vmul.f32 %v257, 1.442695
  %v288 = vpow.pop %v287
  %v289 = vmul.f32 %v258, 1.442695
  %v290 = vpow.pop %v289
  %v291 = vadd.f32 %v260, 1.0
  %v292 = vadd.f32 %v262, 1.0
  %v293 = vadd.f32 %v264, 1.0
  %v294 = vadd.f32 %v266, 1.0
  %v295 = vadd.f32 %v268, 1.0
  %v296 = vadd.f32 %v270, 1.0
  %v297 = vadd.f32 %v272, 1.0
  %v298 = vadd.f32 %v274, 1.0
  %v299 = vadd.f32 %v276, 1.0
  %v300 = vadd.f32 %v278, 1.0
  %v301 = vadd.f32 %v280, 1.0
  %v302 = vadd.f32 %v282, 1.0
  %v303 = vadd.f32 %v284, 1.0
  %v304 = vadd.f32 %v286, 1.0
  %v305 = vadd.f32 %v288, 1.0
  %v306 = vadd.f32 %v290, 1.0
  %v307 = vrcp.pop %v291
  %v308 = vrcp.pop %v292
  %v309 = vrcp.pop %v293
  %v310 = vrcp.pop %v294
  %v311 = vrcp.pop %v295
  %v312 = vrcp.pop %v296
  %v313 = vrcp.pop %v297
  %v314 = vrcp.pop %v298
  %v315 = vrcp.pop %v299
  %v316 = vrcp.pop %v300
  %v317 = vrcp.pop %v301
  %v318 = vrcp.pop %v302
  %v319 = vrcp.pop %v303
  %v320 = vrcp.pop %v304
  %v321 = vrcp.pop %v305
  %v322 = vrcp.pop %v306
  %v323 = vld [vmem:[%s2] sm:$0xff]
  %v324 = vld [vmem:[%s2 + $0x8] sm:$0xff]
  %v325 = vld [vmem:[%s2 + $0x10] sm:$0xff]
  %v326 = vld [vmem:[%s2 + $0x18] sm:$0xff]
  %v327 = vld [vmem:[%s2 + $0x20] sm:$0xff]
  %v328 = vld [vmem:[%s2 + $0x28] sm:$0xff]
  %v329 = vld [vmem:[%s2 + $0x30] sm:$0xff]
  %v330 = vld [vmem:[%s2 + $0x38] sm:$0xff]
  %v331 = vld [vmem:[%s2 + $0x40] sm:$0xff]
  %v332 = vld [vmem:[%s2 + $0x48] sm:$0xff]
  %v333 = vld [vmem:[%s2 + $0x50] sm:$0xff]
  %v334 = vld [vmem:[%s2 + $0x58] sm:$0xff]
  %v335 = vld [vmem:[%s2 + $0x60] sm:$0xff]
  %v336 = vld [vmem:[%s2 + $0x68] sm:$0xff]
  %v337 = vld [vmem:[%s2 + $0x70] sm:$0xff]
  %v338 = vld [vmem:[%s2 + $0x78] sm:$0xff]
  %v339 = vld [vmem:[%s3] sm:$0x1]
  %341 = vset.pattern.permute.xlu0 0
  %342 = vperm.xlu0 %341, %v323
  %v343 = vpop.permute.xlu0 %342
  %346 = vset.pattern.permute.xlu0 0
  %347 = vperm.xlu0 %346, %v324
  %v348 = vpop.permute.xlu0 %347
  %351 = vset.pattern.permute.xlu0 0
  %352 = vperm.xlu0 %351, %v325
  %v353 = vpop.permute.xlu0 %352
  %356 = vset.pattern.permute.xlu0 0
  %357 = vperm.xlu0 %356, %v326
  %v358 = vpop.permute.xlu0 %357
  %361 = vset.pattern.permute.xlu0 0
  %362 = vperm.xlu0 %361, %v327
  %v363 = vpop.permute.xlu0 %362
  %366 = vset.pattern.permute.xlu0 0
  %367 = vperm.xlu0 %366, %v328
  %v368 = vpop.permute.xlu0 %367
  %371 = vset.pattern.permute.xlu0 0
  %372 = vperm.xlu0 %371, %v329
  %v373 = vpop.permute.xlu0 %372
  %376 = vset.pattern.permute.xlu0 0
  %377 = vperm.xlu0 %376, %v330
  %v378 = vpop.permute.xlu0 %377
  %381 = vset.pattern.permute.xlu0 0
  %382 = vperm.xlu0 %381, %v331
  %v383 = vpop.permute.xlu0 %382
  %386 = vset.pattern.permute.xlu0 0
  %387 = vperm.xlu0 %386, %v332
  %v388 = vpop.permute.xlu0 %387
  %391 = vset.pattern.permute.xlu0 0
  %392 = vperm.xlu0 %391, %v333
  %v393 = vpop.permute.xlu0 %392
  %396 = vset.pattern.permute.xlu0 0
  %397 = vperm.xlu0 %396, %v334
  %v398 = vpop.permute.xlu0 %397
  %401 = vset.pattern.permute.xlu0 0
  %402 = vperm.xlu0 %401, %v335
  %v403 = vpop.permute.xlu0 %402
  %406 = vset.pattern.permute.xlu0 0
  %407 = vperm.xlu0 %406, %v336
  %v408 = vpop.permute.xlu0 %407
  %411 = vset.pattern.permute.xlu0 0
  %412 = vperm.xlu0 %411, %v337
  %v413 = vpop.permute.xlu0 %412
  %416 = vset.pattern.permute.xlu0 0
  %417 = vperm.xlu0 %416, %v338
  %v418 = vpop.permute.xlu0 %417
  %v421 = vlaneseq
  %v422 = vshrl.u32 %v421, 7
  %v423 = vsub.s32 0, %v422
  %v424 = vrot.slane %v339, %v423
  %vm426 = vcmp.eq.f32.partialorder %v343, %v424
  %vm427 = vcmp.eq.f32.partialorder %v348, %v424
  %vm428 = vcmp.eq.f32.partialorder %v353, %v424
  %vm429 = vcmp.eq.f32.partialorder %v358, %v424
  %vm430 = vcmp.eq.f32.partialorder %v363, %v424
  %vm431 = vcmp.eq.f32.partialorder %v368, %v424
  %vm432 = vcmp.eq.f32.partialorder %v373, %v424
  %vm433 = vcmp.eq.f32.partialorder %v378, %v424
  %vm434 = vcmp.eq.f32.partialorder %v383, %v424
  %vm435 = vcmp.eq.f32.partialorder %v388, %v424
  %vm436 = vcmp.eq.f32.partialorder %v393, %v424
  %vm437 = vcmp.eq.f32.partialorder %v398, %v424
  %vm438 = vcmp.eq.f32.partialorder %v403, %v424
  %vm439 = vcmp.eq.f32.partialorder %v408, %v424
  %vm440 = vcmp.eq.f32.partialorder %v413, %v424
  %vm441 = vcmp.eq.f32.partialorder %v418, %v424
  %v442 = vsel %vm426, 1, 0
  %v443 = vsel %vm427, 1, 0
  %v444 = vsel %vm428, 1, 0
  %v445 = vsel %vm429, 1, 0
  %v446 = vsel %vm430, 1, 0
  %v447 = vsel %vm431, 1, 0
  %v448 = vsel %vm432, 1, 0
  %v449 = vsel %vm433, 1, 0
  %v450 = vsel %vm434, 1, 0
  %v451 = vsel %vm435, 1, 0
  %v452 = vsel %vm436, 1, 0
  %v453 = vsel %vm437, 1, 0
  %v454 = vsel %vm438, 1, 0
  %v455 = vsel %vm439, 1, 0
  %v456 = vsel %vm440, 1, 0
  %v457 = vsel %vm441, 1, 0
  %v458 = vcvt.s32.f32 %v442
  %v459 = vcvt.s32.f32 %v443
  %v460 = vcvt.s32.f32 %v444
  %v461 = vcvt.s32.f32 %v445
  %v462 = vcvt.s32.f32 %v446
  %v463 = vcvt.s32.f32 %v447
  %v464 = vcvt.s32.f32 %v448
  %v465 = vcvt.s32.f32 %v449
  %v466 = vcvt.s32.f32 %v450
  %v467 = vcvt.s32.f32 %v451
  %v468 = vcvt.s32.f32 %v452
  %v469 = vcvt.s32.f32 %v453
  %v470 = vcvt.s32.f32 %v454
  %v471 = vcvt.s32.f32 %v455
  %v472 = vcvt.s32.f32 %v456
  %v473 = vcvt.s32.f32 %v457
  %v474 = vmul.f32 %v307, %v458
  %v475 = vmul.f32 %v308, %v459
  %v476 = vmul.f32 %v309, %v460
  %v477 = vmul.f32 %v310, %v461
  %v478 = vmul.f32 %v311, %v462
  %v479 = vmul.f32 %v312, %v463
  %v480 = vmul.f32 %v313, %v464
  %v481 = vmul.f32 %v314, %v465
  %v482 = vmul.f32 %v315, %v466
  %v483 = vmul.f32 %v316, %v467
  %v484 = vmul.f32 %v317, %v468
  %v485 = vmul.f32 %v318, %v469
  %v486 = vmul.f32 %v319, %v470
  %v487 = vmul.f32 %v320, %v471
  %v488 = vmul.f32 %v321, %v472
  %v489 = vmul.f32 %v322, %v473
  %490 = vst [vmem:[%s4] sm:$0xff] %v474
  %491 = vst [vmem:[%s4 + $0x8] sm:$0xff] %v475
  %492 = vst [vmem:[%s4 + $0x10] sm:$0xff] %v476
  %493 = vst [vmem:[%s4 + $0x18] sm:$0xff] %v477
  %494 = vst [vmem:[%s4 + $0x20] sm:$0xff] %v478
  %495 = vst [vmem:[%s4 + $0x28] sm:$0xff] %v479
  %496 = vst [vmem:[%s4 + $0x30] sm:$0xff] %v480
  %497 = vst [vmem:[%s4 + $0x38] sm:$0xff] %v481
  %498 = vst [vmem:[%s4 + $0x40] sm:$0xff] %v482
  %499 = vst [vmem:[%s4 + $0x48] sm:$0xff] %v483
  %500 = vst [vmem:[%s4 + $0x50] sm:$0xff] %v484
  %501 = vst [vmem:[%s4 + $0x58] sm:$0xff] %v485
  %502 = vst [vmem:[%s4 + $0x60] sm:$0xff] %v486
  %503 = vst [vmem:[%s4 + $0x68] sm:$0xff] %v487
  %504 = vst [vmem:[%s4 + $0x70] sm:$0xff] %v488
  %505 = vst [vmem:[%s4 + $0x78] sm:$0xff] %v489
  // Predicated region
  $region18: #{extract_cl_forward.8} parent=0 // pred_check
    _
  $region19: #{extract_cl_forward.8} parent=0 // pred_check_branch
    %507 = sbr.rel (0) target = $region21
  $region20: #{extract_cl_forward.8} parent=0 // pred_region
    _
  $region21: #{extract_cl_forward.8} parent=0 // pred_fallthru
    _
  // Predicated region
  $region22: #{extract_cl_forward.8} parent=0 // pred_check
    _
  $region23: #{extract_cl_forward.8} parent=0 // pred_check_branch
    %509 = sbr.rel (0) target = $region25
  $region24: #{extract_cl_forward.8} parent=0 // pred_region
    _
  $region25: #{extract_cl_forward.8} parent=0 // pred_fallthru
    _

// kernel: extract_cl_forward.6
$region0: #{extract_cl_forward.6}
  #allocation0 [shape = 'u32[]', space=smem, size = 0x4, offset = 0x4, fixed_abs, tag = 'smem constant byte address 0x4 - core index']
  #allocation1 [shape = 'u32[144,128]{1,0:T(1,128)}', space=vmem, size = 0x12000, scoped, tag = 'internal scratch']
  #allocation2 [shape = 'f32[8,256]{1,0:T(8,128)}', space=vmem, size = 0x2000, scoped, tag = 'scratch operand']
  %s0 = inlined_call_operand.vmem [shape: f32[8,128], index: 0, kind: input, shape index: {}]
  %s1 = inlined_call_operand.vmem [shape: f32[128,256], index: 1, kind: input, shape index: {}]
  %s2 = inlined_call_operand.vmem [shape: f32[8,1], index: 2, kind: input, shape index: {}]
  %s3 = inlined_call_operand.vmem [shape: f32[8,256], index: 3, kind: output, shape index: {}]
  %s4 = sld [smem:[#allocation0]]
  $region30: #{extract_cl_forward.6} parent=0
    _
  %s6 = ssub.s32 1, %s4
  %s7 = scalar_select 0, %s6, %s4
  // Predicated region
  $region2: #{extract_cl_forward.6} parent=0 // pred_check
    _
  $region3: #{extract_cl_forward.6} parent=0 // pred_check_branch
    %9 = sbr.rel (0) target = $region5
  $region4: #{extract_cl_forward.6} parent=0 // pred_region
    _
  $region5: #{extract_cl_forward.6} parent=0 // pred_fallthru
    _
  // Predicated region
  $region6: #{extract_cl_forward.6} parent=0 // pred_check
    _
  $region7: #{extract_cl_forward.6} parent=0 // pred_check_branch
    %11 = sbr.rel (0) target = $region9
  $region8: #{extract_cl_forward.6} parent=0 // pred_region
    _
  $region9: #{extract_cl_forward.6} parent=0 // pred_fallthru
    _
  // Predicated region
  $region10: #{extract_cl_forward.6} parent=0 // pred_check
    _
  $region11: #{extract_cl_forward.6} parent=0 // pred_check_branch
    %13 = sbr.rel (0) target = $region13
  $region12: #{extract_cl_forward.6} parent=0 // pred_region
    _
  $region13: #{extract_cl_forward.6} parent=0 // pred_fallthru
    _
  %p14 = scmp.eq.s32.totalorder 0, 0
  // Predicated region
  $region14: #{extract_cl_forward.6} parent=0 // pred_check
    %p15 = pneg %p14
  $region15: #{extract_cl_forward.6} parent=0 // pred_check_branch
    %17 = sbr.rel (%p15) target = $region17
  $region16: #{extract_cl_forward.6} parent=0 // pred_region
    %18 = vst [vmem:[#allocation2] sm:$0xff] 0.0
    %19 = vst [vmem:[#allocation2 + $0x8] sm:$0xff] 0.0
  $region17: #{extract_cl_forward.6} parent=0 // pred_fallthru
    _
  %v20 = vld [vmem:[#allocation2] sm:$0xff]
  %v21 = vld [vmem:[#allocation2 + $0x8] sm:$0xff]
  %v22 = vld [vmem:[%s0] sm:$0xff]
  %v23 = vld [vmem:[%s1] sm:$0xff]
  %v24 = vld [vmem:[%s1 + $0x8] sm:$0xff]
  %v25 = vld [vmem:[%s1 + $0x10] sm:$0xff]
  %v26 = vld [vmem:[%s1 + $0x18] sm:$0xff]
  %v27 = vld [vmem:[%s1 + $0x20] sm:$0xff]
  %v28 = vld [vmem:[%s1 + $0x28] sm:$0xff]
  %v29 = vld [vmem:[%s1 + $0x30] sm:$0xff]
  %v30 = vld [vmem:[%s1 + $0x38] sm:$0xff]
  %v31 = vld [vmem:[%s1 + $0x40] sm:$0xff]
  %v32 = vld [vmem:[%s1 + $0x48] sm:$0xff]
  %v33 = vld [vmem:[%s1 + $0x50] sm:$0xff]
  %v34 = vld [vmem:[%s1 + $0x58] sm:$0xff]
  %v35 = vld [vmem:[%s1 + $0x60] sm:$0xff]
  %v36 = vld [vmem:[%s1 + $0x68] sm:$0xff]
  %v37 = vld [vmem:[%s1 + $0x70] sm:$0xff]
  %v38 = vld [vmem:[%s1 + $0x78] sm:$0xff]
  %v39 = vld [vmem:[%s1 + $0x80] sm:$0xff]
  %v40 = vld [vmem:[%s1 + $0x88] sm:$0xff]
  %v41 = vld [vmem:[%s1 + $0x90] sm:$0xff]
  %v42 = vld [vmem:[%s1 + $0x98] sm:$0xff]
  %v43 = vld [vmem:[%s1 + $0xa0] sm:$0xff]
  %v44 = vld [vmem:[%s1 + $0xa8] sm:$0xff]
  %v45 = vld [vmem:[%s1 + $0xb0] sm:$0xff]
  %v46 = vld [vmem:[%s1 + $0xb8] sm:$0xff]
  %v47 = vld [vmem:[%s1 + $0xc0] sm:$0xff]
  %v48 = vld [vmem:[%s1 + $0xc8] sm:$0xff]
  %v49 = vld [vmem:[%s1 + $0xd0] sm:$0xff]
  %v50 = vld [vmem:[%s1 + $0xd8] sm:$0xff]
  %v51 = vld [vmem:[%s1 + $0xe0] sm:$0xff]
  %v52 = vld [vmem:[%s1 + $0xe8] sm:$0xff]
  %v53 = vld [vmem:[%s1 + $0xf0] sm:$0xff]
  %v54 = vld [vmem:[%s1 + $0xf8] sm:$0xff]
  %55 = vmatprep.subr.mxu0 %v24
  %56 = vmatpush1.msra.mxu0 %v23
  %57 = vmatprep.subr.mxu0 %v26
  %58 = vmatpush1.msra.mxu0 %v25
  %59 = vmatprep.subr.mxu0 %v28
  %60 = vmatpush1.msra.mxu0 %v27
  %61 = vmatprep.subr.mxu0 %v30
  %62 = vmatpush1.msra.mxu0 %v29
  %63 = vmatprep.subr.mxu0 %v32
  %64 = vmatpush1.msra.mxu0 %v31
  %65 = vmatprep.subr.mxu0 %v34
  %66 = vmatpush1.msra.mxu0 %v33
  %67 = vmatprep.subr.mxu0 %v36
  %68 = vmatpush1.msra.mxu0 %v35
  %69 = vmatprep.subr.mxu0 %v38
  %70 = vmatpush1.msra.mxu0 %v37
  %71 = vmatprep.subr.mxu0 %v40
  %72 = vmatpush1.msra.mxu0 %v39
  %73 = vmatprep.subr.mxu0 %v42
  %74 = vmatpush1.msra.mxu0 %v41
  %75 = vmatprep.subr.mxu0 %v44
  %76 = vmatpush1.msra.mxu0 %v43
  %77 = vmatprep.subr.mxu0 %v46
  %78 = vmatpush1.msra.mxu0 %v45
  %79 = vmatprep.subr.mxu0 %v48
  %80 = vmatpush1.msra.mxu0 %v47
  %81 = vmatprep.subr.mxu0 %v50
  %82 = vmatpush1.msra.mxu0 %v49
  %83 = vmatprep.subr.mxu0 %v52
  %84 = vmatpush1.msra.mxu0 %v51
  %85 = vmatprep.subr.mxu0 %v54
  %86 = vmatpush1.msra.mxu0 %v53
  %87 = vmatprep.subr.mxu0 0.0
  %88 = vmatpush1.msra.mxu0 0.0
  %89 = vmatprep.subr.mxu0 0.0
  %90 = vmatpush1.msra.mxu0 0.0
  %91 = vmatprep.subr.mxu0 0.0
  %92 = vmatpush1.msra.mxu0 0.0
  %93 = vmatprep.subr.mxu0 0.0
  %94 = vmatpush1.msra.mxu0 0.0
  %95 = vmatprep.subr.mxu0 0.0
  %96 = vmatpush1.msra.mxu0 0.0
  %97 = vmatprep.subr.mxu0 0.0
  %98 = vmatpush1.msra.mxu0 0.0
  %99 = vmatprep.subr.mxu0 0.0
  %100 = vmatpush1.msra.mxu0 0.0
  %101 = vmatprep.subr.mxu0 0.0
  %102 = vmatpush1.msra.mxu0 0.0
  %103 = vmatprep.subr.mxu0 0.0
  %104 = vmatpush1.msra.mxu0 0.0
  %105 = vmatprep.subr.mxu0 0.0
  %106 = vmatpush1.msra.mxu0 0.0
  %107 = vmatprep.subr.mxu0 0.0
  %108 = vmatpush1.msra.mxu0 0.0
  %109 = vmatprep.subr.mxu0 0.0
  %110 = vmatpush1.msra.mxu0 0.0
  %111 = vmatprep.subr.mxu0 0.0
  %112 = vmatpush1.msra.mxu0 0.0
  %113 = vmatprep.subr.mxu0 0.0
  %114 = vmatpush1.msra.mxu0 0.0
  %115 = vmatprep.subr.mxu0 0.0
  %116 = vmatpush1.msra.mxu0 0.0
  %117 = vmatprep.subr.mxu0 0.0
  %118 = vmatpush1.msra.mxu0 0.0
  %119 = vmatprep.mubr.f32.mxu0 0.0
  %120 = vmatmul.mubr.f32.gmra.mrb[0].mxu0 %v22
  %v121 = vpop.f32.mrb[0].mxu0
  %v122 = vadd.f32 0.0, %v121
  %v123 = vpop.f32.mrb[0].mxu0
  %v124 = vadd.f32 0.0, %v123
  %125 = vdwg.mxu0
  %v126 = vadd.f32 %v20, %v122
  %v127 = vadd.f32 %v21, %v124
  %128 = vst [vmem:[#allocation2] sm:$0xff] %v126
  %129 = vst [vmem:[#allocation2 + $0x8] sm:$0xff] %v127
  // Predicated region
  $region18: #{extract_cl_forward.6} parent=0 // pred_check
    %p130 = pneg %p14
  $region19: #{extract_cl_forward.6} parent=0 // pred_check_branch
    %132 = sbr.rel (%p130) target = $region21
  $region20: #{extract_cl_forward.6} parent=0 // pred_region
    %v133 = vld [vmem:[#allocation2] sm:$0xff]
    %v134 = vld [vmem:[#allocation2 + $0x8] sm:$0xff]
    %v135 = vld [vmem:[%s2] sm:$0xff]
    %137 = vset.pattern.permute.xlu0 0
    %138 = vperm.xlu0 %137, %v135
    %v139 = vpop.permute.xlu0 %138
    %v141 = vmul.f32 %v133, %v139
    %v142 = vmul.f32 %v134, %v139
    %143 = vst [vmem:[%s3] sm:$0xff] %v141
    %144 = vst [vmem:[%s3 + $0x8] sm:$0xff] %v142
  $region21: #{extract_cl_forward.6} parent=0 // pred_fallthru
    _
  // Predicated region
  $region22: #{extract_cl_forward.6} parent=0 // pred_check
    _
  $region23: #{extract_cl_forward.6} parent=0 // pred_check_branch
    %146 = sbr.rel (0) target = $region25
  $region24: #{extract_cl_forward.6} parent=0 // pred_region
    _
  $region25: #{extract_cl_forward.6} parent=0 // pred_fallthru
    _
  // Predicated region
  $region26: #{extract_cl_forward.6} parent=0 // pred_check
    _
  $region27: #{extract_cl_forward.6} parent=0 // pred_check_branch
    %148 = sbr.rel (0) target = $region29
  $region28: #{extract_cl_forward.6} parent=0 // pred_region
    _
  $region29: #{extract_cl_forward.6} parent=0 // pred_fallthru
    _

</llo_original>
